<compile_context>
chip_gen: v6e
topology: v6e:2x2x1
jax: 0.10.0
libtpu: 0.0.40
codegen_flags: <defaults>
</compile_context>

<pallas_src>
import functools

import jax
import jax.numpy as jnp
import numpy as np
from jax.experimental import pallas as pl
from jax.experimental.pallas import tpu as pltpu

# ---------------- dimensions (small, consistent with the module) ----------------
D = 32      # word_embedding_dim
T = 8       # title_word_size
CD = 16     # category_dim
SD = 16     # subcategory_dim
F = 32      # cnn_num_filters
W = 3       # cnn window size (odd -> 'same' padding keeps T)
Q = 32      # query_vector_dim
NCAT = 10   # category_size
NSUB = 12   # subcategory_size
B = 2       # batch size
S = 3       # candidate news per batch row
K = 4       # clicked news per user
NC = B * S  # total candidate news items
NK = B * K  # total clicked news items
NTOT = NC + NK
EPS = 1e-5  # LayerNorm eps (torch default)

# ---------------- packed weight-slab layout (one (W_ROWS, 128) f32 array) ----------------
# Per-news-encoder region (all row offsets 8-aligned, all blocks at lane offset 0):
R_CONV = 0            # (W*D, F)  stacked conv weights [w0; w1; w2]
R_ATTW = 96           # (F, Q)    word-attention projection
R_NATTW = 128         # (F, Q)    view-attention projection
R_CSTAB = 160         # (32, 2F)  block-diag folded (emb1@fc1_w | emb2@fc2_w) table
R_VECS = 192          # 16 rows of (1, F) / (1, 2F) vectors
NEWS_ROWS = 208
# vector row indices inside R_VECS
(V_CONV_B, V_ATT_B, V_ATT_Q, V_NATT_B, V_NATT_Q, V_CS_B,
 V_N1G, V_N1B, V_N2G, V_N2B, V_N3G, V_N3B, V_N4G, V_N4B) = range(14)
# user-encoder region
U_BASE = 2 * NEWS_ROWS          # 416
U_ATTW = U_BASE                 # (F, Q)
U_VECS = U_BASE + 32            # 8 vector rows
(UV_B, UV_Q, UV_G, UV_BETA) = range(4)
W_ROWS = U_VECS + 8             # 456

OUT_ROWS = 16                   # lane-dense output slab rows (NC + NK = 14, padded)


# ---------------- shared math helpers (kernel + reference) ----------------
def _ln(x, g, b):
    """LayerNorm over the last axis. x: (..., F), g/b broadcastable (1, F)."""
    mu = jnp.mean(x, axis=-1, keepdims=True)
    var = jnp.mean(jnp.square(x - mu), axis=-1, keepdims=True)
    return (x - mu) * jax.lax.rsqrt(var + EPS) * g + b


def _segment_matrix(n_seg, seg_len):
    """(n_seg, n_seg*seg_len) 0/1 matrix: row i selects items [i*seg_len, (i+1)*seg_len)."""
    r = jax.lax.broadcasted_iota(jnp.int32, (n_seg, n_seg * seg_len), 0)
    c = jax.lax.broadcasted_iota(jnp.int32, (n_seg, n_seg * seg_len), 1)
    d = c - r * seg_len
    return ((d >= 0) & (d < seg_len)).astype(jnp.float32)


def _expand_matrix(n_rows, n_seg, seg_len):
    """(n_rows, n_seg) 0/1 matrix: row i selects segment i // seg_len (no integer division)."""
    i = jax.lax.broadcasted_iota(jnp.int32, (n_rows, n_seg), 0)
    b = jax.lax.broadcasted_iota(jnp.int32, (n_rows, n_seg), 1)
    d = i - b * seg_len
    return ((d >= 0) & (d < seg_len)).astype(jnp.float32)


# ---------------- the single fused kernel ----------------
def _naml_kernel(w_ref, words_ref, ids_ref, out_ref):
    f32 = jnp.float32
    dot = functools.partial(jnp.dot, preferred_element_type=f32)

    def vrow(vbase, i, lanes=F):
        return w_ref[vbase + i:vbase + i + 1, 0:lanes]

    def encode(n, x0, ids_n, base):
        """Batched NAML news encoder for n items. x0: (n*T, D), ids_n: (n, 2) int32."""
        vb = base + R_VECS
        conv_w = w_ref[base + R_CONV:base + R_CONV + W * D, 0:F]        # (96, F)
        att_w = w_ref[base + R_ATTW:base + R_ATTW + F, 0:Q]             # (F, Q)
        natt_w = w_ref[base + R_NATTW:base + R_NATTW + F, 0:Q]          # (F, Q)
        cs_tab = w_ref[base + R_CSTAB:base + R_CSTAB + 32, 0:2 * F]     # (32, 2F)

        # ---- title CNN: 'same' conv over words as ONE 96-deep matmul ----
        # shifted operands via sublane roll + boundary masks (XLU; no padded scratch)
        t_pos = jax.lax.broadcasted_iota(jnp.int32, (n, T, D), 1).reshape(n * T, D)
        xm1 = jnp.where(t_pos == 0, 0.0, pltpu.roll(x0, 1, axis=0))            # x[t-1]
        xp1 = jnp.where(t_pos == T - 1, 0.0, pltpu.roll(x0, n * T - 1, axis=0))  # x[t+1]
        xc = jnp.concatenate([xm1, x0, xp1], axis=1)                            # (n*T, 3D)
        conv = jnp.maximum(dot(xc, conv_w) + vrow(vb, V_CONV_B), 0.0)           # (n*T, F)

        # ---- word-level additive attention (per-item softmax via one segment matmul) ----
        a = jnp.tanh(dot(conv, att_w) + vrow(vb, V_ATT_B))                      # (n*T, Q)
        s = jnp.sum(a * vrow(vb, V_ATT_Q), axis=-1, keepdims=True)              # (n*T, 1)
        e = jnp.exp(s - jnp.max(s, axis=0, keepdims=True))                      # global max shift
        pooled = dot(_segment_matrix(n, T), jnp.concatenate([e * conv, e], axis=1))  # (n, F+1)
        word_rep = _ln(pooled[:, 0:F] / pooled[:, F:F + 1],
                       vrow(vb, V_N3G), vrow(vb, V_N3B))                        # (n, F)

        # ---- category / subcategory: folded block-diag table, one matmul ----
        col = jax.lax.broadcasted_iota(jnp.int32, (n, 32), 1)
        oh = ((col == ids_n[:, 0:1]) | (col == ids_n[:, 1:2])).astype(f32)      # (n, 32)
        cs = dot(oh, cs_tab) + vrow(vb, V_CS_B, 2 * F)                          # (n, 2F)
        cat_rep = _ln(cs[:, 0:F], vrow(vb, V_N1G), vrow(vb, V_N1B))             # (n, F)
        sub_rep = _ln(cs[:, F:2 * F], vrow(vb, V_N2G), vrow(vb, V_N2B))         # (n, F)

        # ---- view-level additive attention over [word, category, subcategory], batched ----
        views = jnp.concatenate([word_rep, cat_rep, sub_rep], axis=0)           # (3n, F)
        av = jnp.tanh(dot(views, natt_w) + vrow(vb, V_NATT_B))                  # (3n, Q)
        sv = jnp.sum(av * vrow(vb, V_NATT_Q), axis=-1, keepdims=True)           # (3n, 1)
        s_w, s_c, s_s = sv[0:n], sv[n:2 * n], sv[2 * n:3 * n]
        m = jnp.maximum(jnp.maximum(s_w, s_c), s_s)
        e_w, e_c, e_s = jnp.exp(s_w - m), jnp.exp(s_c - m), jnp.exp(s_s - m)
        rep = (e_w * word_rep + e_c * cat_rep + e_s * sub_rep) / (e_w + e_c + e_s)
        return _ln(rep, vrow(vb, V_N4G), vrow(vb, V_N4B))                       # (n, F)

    ids = ids_ref[...]                                                          # (NTOT, 2)
    cand_reps = encode(NC, words_ref[0:NC * T, :], ids[0:NC, :], 0)
    clicked_reps = encode(NK, words_ref[NC * T:NTOT * T, :], ids[NC:NTOT, :], NEWS_ROWS)

    # ---- user encoder: additive attention over the K clicked reps of each user ----
    uatt_w = w_ref[U_ATTW:U_ATTW + F, 0:Q]
    a = jnp.tanh(dot(clicked_reps, uatt_w) + vrow(U_VECS, UV_B))                # (NK, Q)
    s = jnp.sum(a * vrow(U_VECS, UV_Q), axis=-1, keepdims=True)                 # (NK, 1)
    e = jnp.exp(s - jnp.max(s, axis=0, keepdims=True))
    pooled = dot(_segment_matrix(B, K), jnp.concatenate([e * clicked_reps, e], axis=1))
    user_rep = _ln(pooled[:, 0:F] / pooled[:, F:F + 1],
                   vrow(U_VECS, UV_G), vrow(U_VECS, UV_BETA))                   # (B, F)

    # ---- dot-product scoring ----
    u_exp = dot(_expand_matrix(NC, B, S), user_rep)                             # (NC, F)
    sc = jnp.sum(cand_reps * u_exp, axis=-1, keepdims=True)                     # (NC, 1)

    # ---- one lane-dense (16, 128) output slab: reps @ lanes 0:F, scores @ lanes F:2F ----
    out = jnp.concatenate([
        jnp.concatenate([cand_reps, jnp.broadcast_to(sc, (NC, F)),
                         jnp.zeros((NC, 128 - 2 * F), f32)], axis=1),
        jnp.concatenate([clicked_reps, jnp.zeros((NK, 128 - F), f32)], axis=1),
        jnp.zeros((OUT_ROWS - NTOT, 128), f32)], axis=0)                        # (16, 128)
    out_ref[...] = out


# ---------------- host-side weight packing (runs ONCE at init, outside jit) ----------------
def pack_weights(params):
    pc = params["cand_news"]
    pu = params["user"]
    pn = pu["news"]
    w = np.zeros((W_ROWS, 128), np.float32)

    def put(r, a):
        a = np.asarray(a, np.float32)
        if a.ndim == 1:
            a = a[None, :]
        w[r:r + a.shape[0], :a.shape[1]] = a

    def put_news(base, p):
        put(base + R_CONV, np.asarray(p["conv_w"], np.float32).reshape(W * D, F))
        put(base + R_ATTW, p["att_w"])
        put(base + R_NATTW, p["natt_w"])
        cs = np.zeros((32, 2 * F), np.float32)
        cs[:NCAT, :F] = np.asarray(p["emb1"], np.float32) @ np.asarray(p["fc1_w"], np.float32)
        cs[NCAT:NCAT + NSUB, F:] = (np.asarray(p["emb2"], np.float32)
                                    @ np.asarray(p["fc2_w"], np.float32))
        put(base + R_CSTAB, cs)
        vb = base + R_VECS
        put(vb + V_CONV_B, p["conv_b"])
        put(vb + V_ATT_B, p["att_b"])
        put(vb + V_ATT_Q, p["att_q"])
        put(vb + V_NATT_B, p["natt_b"])
        put(vb + V_NATT_Q, p["natt_q"])
        put(vb + V_CS_B, np.concatenate([np.asarray(p["fc1_b"], np.float32),
                                         np.asarray(p["fc2_b"], np.float32)], axis=1))
        put(vb + V_N1G, p["n1_g"]); put(vb + V_N1B, p["n1_b"])
        put(vb + V_N2G, p["n2_g"]); put(vb + V_N2B, p["n2_b"])
        put(vb + V_N3G, p["n3_g"]); put(vb + V_N3B, p["n3_b"])
        put(vb + V_N4G, p["n4_g"]); put(vb + V_N4B, p["n4_b"])

    put_news(0, pc)
    put_news(NEWS_ROWS, pn)
    put(U_ATTW, pu["uatt_w"])
    put(U_VECS + UV_B, pu["uatt_b"])
    put(U_VECS + UV_Q, pu["uatt_q"])
    put(U_VECS + UV_G, pu["un_g"])
    put(U_VECS + UV_BETA, pu["un_b"])
    return jnp.asarray(w)


# ---------------- wrapper around pallas_call ----------------
def _full_spec(shape):
    return pl.BlockSpec(shape, lambda i, _nd=len(shape): (0,) * _nd)


@jax.jit
def naml_forward(w_slab, cand_word, clicked_word, cand_cat, clicked_cat, cand_sub, clicked_sub):
    words = jnp.concatenate([cand_word.reshape(NC * T, D),
                             clicked_word.reshape(NK * T, D)], axis=0)          # (NTOT*T, D)
    ids = jnp.concatenate([
        jnp.stack([cand_cat.reshape(-1), cand_sub.reshape(-1) + NCAT], axis=1),
        jnp.stack([clicked_cat.reshape(-1), clicked_sub.reshape(-1) + NCAT], axis=1)],
        axis=0).astype(jnp.int32)                                               # (NTOT, 2)

    out = pl.pallas_call(
        _naml_kernel,
        out_shape=jax.ShapeDtypeStruct((OUT_ROWS, 128), jnp.float32),
        grid=(1,),                                                 # single step, single core
        in_specs=[_full_spec((W_ROWS, 128)),
                  _full_spec((NTOT * T, D)),
                  _full_spec((NTOT, 2))],
        out_specs=_full_spec((OUT_ROWS, 128)),
        compiler_params=pltpu.CompilerParams(dimension_semantics=("arbitrary",)),
    )(w_slab, words, ids)

    score = out[0:NC, F].reshape(B, S)
    cand_rep = out[0:NC, 0:F]
    clicked_rep = out[NC:NTOT, 0:F]
    return score, cand_rep, clicked_rep


# ---------------- deterministic parameter init ----------------
def init_news_encoder_params(key):
    ks = jax.random.split(key, 14)
    nrm = lambda k, shp, s=0.1: jax.random.normal(k, shp, jnp.float32) * s
    ones = lambda: jnp.ones((1, F), jnp.float32)
    zeros = lambda: jnp.zeros((1, F), jnp.float32)
    return dict(
        emb1=nrm(ks[0], (NCAT, CD)),
        emb2=nrm(ks[1], (NSUB, SD)),
        fc1_w=nrm(ks[2], (CD, F)), fc1_b=nrm(ks[3], (1, F)),
        fc2_w=nrm(ks[4], (SD, F)), fc2_b=nrm(ks[5], (1, F)),
        conv_w=nrm(ks[6], (W, D, F)), conv_b=nrm(ks[7], (1, F)),
        att_w=nrm(ks[8], (F, Q)), att_b=nrm(ks[9], (1, Q)), att_q=nrm(ks[10], (1, Q)),
        natt_w=nrm(ks[11], (F, Q)), natt_b=nrm(ks[12], (1, Q)), natt_q=nrm(ks[13], (1, Q)),
        n1_g=ones(), n1_b=zeros(), n2_g=ones(), n2_b=zeros(),
        n3_g=ones(), n3_b=zeros(), n4_g=ones(), n4_b=zeros(),
    )


def init_user_encoder_params(key):
    k0, k1, k2, k3 = jax.random.split(key, 4)
    nrm = lambda k, shp, s=0.1: jax.random.normal(k, shp, jnp.float32) * s
    return dict(
        news=init_news_encoder_params(k0),
        uatt_w=nrm(k1, (F, Q)), uatt_b=nrm(k2, (1, Q)), uatt_q=nrm(k3, (1, Q)),
        un_g=jnp.ones((1, F), jnp.float32), un_b=jnp.zeros((1, F), jnp.float32),
    )


# ---------------- pure-JAX reference (same math, no Pallas) ----------------
_HIGH = jax.lax.Precision.HIGHEST


def _ref_news_encode(word_emb, cat_idx, sub_idx, p):
    n = word_emb.shape[0]
    pad = (W - 1) // 2
    wpad = jnp.pad(word_emb, ((0, 0), (pad, pad), (0, 0)))
    conv = jnp.zeros((n, T, F), jnp.float32) + p["conv_b"]
    for w in range(W):
        conv = conv + jnp.einsum("ntd,df->ntf", wpad[:, w:w + T, :], p["conv_w"][w],
                                 precision=_HIGH)
    conv = jnp.maximum(conv, 0.0)
    a = jnp.tanh(jnp.einsum("ntf,fq->ntq", conv, p["att_w"], precision=_HIGH) + p["att_b"])
    att = jax.nn.softmax(jnp.sum(a * p["att_q"], axis=-1, keepdims=True), axis=1)
    word_rep = _ln(jnp.sum(att * conv, axis=1), p["n3_g"], p["n3_b"])
    cat_rep = _ln(jnp.dot(p["emb1"][cat_idx], p["fc1_w"], precision=_HIGH) + p["fc1_b"],
                  p["n1_g"], p["n1_b"])
    sub_rep = _ln(jnp.dot(p["emb2"][sub_idx], p["fc2_w"], precision=_HIGH) + p["fc2_b"],
                  p["n2_g"], p["n2_b"])
    views = jnp.stack([word_rep, cat_rep, sub_rep], axis=1)                     # (n, 3, F)
    av = jnp.tanh(jnp.einsum("nvf,fq->nvq", views, p["natt_w"], precision=_HIGH) + p["natt_b"])
    vatt = jax.nn.softmax(jnp.sum(av * p["natt_q"], axis=-1, keepdims=True), axis=1)
    return _ln(jnp.sum(vatt * views, axis=1), p["n4_g"], p["n4_b"])


def ref_forward(params, cand_word, clicked_word, cand_cat, clicked_cat, cand_sub, clicked_sub):
    pc, pu = params["cand_news"], params["user"]
    cand_reps = _ref_news_encode(cand_word.reshape(NC, T, D), cand_cat.reshape(-1),
                                 cand_sub.reshape(-1), pc)
    clicked_reps = _ref_news_encode(clicked_word.reshape(NK, T, D), clicked_cat.reshape(-1),
                                    clicked_sub.reshape(-1), pu["news"])
    clk = clicked_reps.reshape(B, K, F)
    a = jnp.tanh(jnp.einsum("bkf,fq->bkq", clk, pu["uatt_w"], precision=_HIGH) + pu["uatt_b"])
    att = jax.nn.softmax(jnp.sum(a * pu["uatt_q"], axis=-1, keepdims=True), axis=1)
    user_rep = _ln(jnp.sum(att * clk, axis=1), pu["un_g"], pu["un_b"])          # (B, F)
    score = jnp.einsum("bsf,bf->bs", cand_reps.reshape(B, S, F), user_rep, precision=_HIGH)
    return score, cand_reps, clicked_reps


# ---------------- main ----------------
if __name__ == "__main__":
    key = jax.random.PRNGKey(0)
    k_cand, k_user, kx1, kx2, kc1, kc2, ks1, ks2 = jax.random.split(key, 8)

    params = dict(cand_news=init_news_encoder_params(k_cand),
                  user=init_user_encoder_params(k_user))
    # Pack all weights once, outside the jitted forward (perf review item).
    w_slab = pack_weights(params)

    cand_word = jax.random.normal(kx1, (B, S, T, D), jnp.float32)
    clicked_word = jax.random.normal(kx2, (B, K, T, D), jnp.float32)
    cand_cat = jax.random.randint(kc1, (B, S), 0, NCAT)
    clicked_cat = jax.random.randint(kc2, (B, K), 0, NCAT)
    cand_sub = jax.random.randint(ks1, (B, S), 0, NSUB)
    clicked_sub = jax.random.randint(ks2, (B, K), 0, NSUB)

    score, cand_rep, clicked_rep = naml_forward(
        w_slab, cand_word, clicked_word, cand_cat, clicked_cat, cand_sub, clicked_sub)
    score = jax.block_until_ready(score)
    assert score.shape == (B, S)

    ref_score, ref_cand, ref_clicked = ref_forward(
        params, cand_word, clicked_word, cand_cat, clicked_cat, cand_sub, clicked_sub)

    # Tolerance tightened 20x vs. the previous version (2e-2 -> 1e-3): all matmuls stay f32
    # (full-precision multi-pass on the MXU); residual slack only covers accumulation-order
    # differences and the host-side embedding@fc fold.
    np.testing.assert_allclose(np.asarray(cand_rep), np.asarray(ref_cand), rtol=1e-3, atol=1e-3)
    np.testing.assert_allclose(np.asarray(clicked_rep), np.asarray(ref_clicked),
                               rtol=1e-3, atol=1e-3)
    np.testing.assert_allclose(np.asarray(score), np.asarray(ref_score), rtol=1e-3, atol=1e-3)

    # TODO(synk): dropout layers are stochastic; implemented as identity (eval mode).
    print("KERNEL_OK")
</pallas_src>

<mosaic_0001>
module attributes {stable_mosaic.version = 11 : i64} {
  func.func @_naml_kernel(%arg0: i32, %arg1: memref<456x128xf32, #tpu.memory_space<vmem>>, %arg2: memref<112x32xf32, #tpu.memory_space<vmem>>, %arg3: memref<14x2xi32, #tpu.memory_space<vmem>>, %arg4: memref<16x128xf32, #tpu.memory_space<vmem>>) attributes {dimension_semantics = [#tpu.dimension_semantics<arbitrary>], iteration_bounds = array<i64: 1>, scalar_prefetch = 0 : i64, scratch_operands = 0 : i64, tpu.core_type = #tpu.core_type<tc>, window_params = [{pipeline_mode = #tpu.pipeline_mode<synchronous>, transform_indices = @transform_0, window_bounds = array<i64: 456, 128>}, {pipeline_mode = #tpu.pipeline_mode<synchronous>, transform_indices = @transform_1, window_bounds = array<i64: 112, 32>}, {pipeline_mode = #tpu.pipeline_mode<synchronous>, transform_indices = @transform_2, window_bounds = array<i64: 14, 2>}, {pipeline_mode = #tpu.pipeline_mode<synchronous>, transform_indices = @transform_3, window_bounds = array<i64: 16, 128>}]} {
    %c0 = arith.constant 0 : index
    %c0_0 = arith.constant 0 : index
    %0 = vector.load %arg3[%c0, %c0_0] : memref<14x2xi32, #tpu.memory_space<vmem>>, vector<14x2xi32>
    %c0_1 = arith.constant 0 : index
    %c0_2 = arith.constant 0 : index
    %1 = vector.load %arg2[%c0_1, %c0_2] : memref<112x32xf32, #tpu.memory_space<vmem>>, vector<48x32xf32>
    %2 = vector.extract_strided_slice %0 {offsets = [0, 0], sizes = [6, 2], strides = [1, 1]} : vector<14x2xi32> to vector<6x2xi32>
    %c0_3 = arith.constant 0 : index
    %c0_4 = arith.constant 0 : index
    %3 = vector.load %arg1[%c0_3, %c0_4] : memref<456x128xf32, #tpu.memory_space<vmem>>, vector<96x32xf32>
    %c96 = arith.constant 96 : index
    %c0_5 = arith.constant 0 : index
    %4 = vector.load %arg1[%c96, %c0_5] : memref<456x128xf32, #tpu.memory_space<vmem>>, vector<32x32xf32>
    %c128 = arith.constant 128 : index
    %c0_6 = arith.constant 0 : index
    %5 = vector.load %arg1[%c128, %c0_6] : memref<456x128xf32, #tpu.memory_space<vmem>>, vector<32x32xf32>
    %c160 = arith.constant 160 : index
    %c0_7 = arith.constant 0 : index
    %6 = vector.load %arg1[%c160, %c0_7] : memref<456x128xf32, #tpu.memory_space<vmem>>, vector<32x64xf32>
    %7 = tpu.iota {dimensions = array<i32: 1>} : vector<6x8x32xi32>
    %8 = vector.shape_cast %7 : vector<6x8x32xi32> to vector<48x32xi32>
    %c0_i32 = arith.constant 0 : i32
    %9 = vector.broadcast %c0_i32 : i32 to vector<48x32xi32>
    %10 = arith.cmpi eq, %8, %9 : vector<48x32xi32>
    %c1_i32 = arith.constant 1 : i32
    %11 = tpu.dynamic_rotate %1 by %c1_i32 dim 0 : vector<48x32xf32>, i32 -> vector<48x32xf32>
    %cst = arith.constant 0.000000e+00 : f32
    %12 = vector.broadcast %cst : f32 to vector<48x32xf32>
    %13 = arith.select %10, %12, %11 : vector<48x32xi1>, vector<48x32xf32>
    %c7_i32 = arith.constant 7 : i32
    %14 = vector.broadcast %c7_i32 : i32 to vector<48x32xi32>
    %15 = arith.cmpi eq, %8, %14 : vector<48x32xi32>
    %c47_i32 = arith.constant 47 : i32
    %16 = tpu.dynamic_rotate %1 by %c47_i32 dim 0 : vector<48x32xf32>, i32 -> vector<48x32xf32>
    %cst_8 = arith.constant 0.000000e+00 : f32
    %17 = vector.broadcast %cst_8 : f32 to vector<48x32xf32>
    %18 = arith.select %15, %17, %16 : vector<48x32xi1>, vector<48x32xf32>
    %19 = tpu.concatenate %13, %1, %18 in 1 : vector<48x32xf32>, vector<48x32xf32>, vector<48x32xf32> -> vector<48x96xf32>
    %cst_9 = arith.constant dense<0.000000e+00> : vector<48x32xf32>
    %20 = tpu.matmul %19, %3, %cst_9 {dimension_numbers = #tpu.dot_dimension_numbers<[1], [0], [0], [1], [0, 0, 1, 1], [], []>} : vector<48x96xf32>, vector<96x32xf32>, vector<48x32xf32> -> vector<48x32xf32>
    %c192 = arith.constant 192 : index
    %c0_10 = arith.constant 0 : index
    %21 = vector.load %arg1[%c192, %c0_10] : memref<456x128xf32, #tpu.memory_space<vmem>>, vector<1x32xf32>
    %22 = vector.broadcast %21 : vector<1x32xf32> to vector<48x32xf32>
    %23 = arith.addf %20, %22 : vector<48x32xf32>
    %cst_11 = arith.constant 0.000000e+00 : f32
    %24 = vector.broadcast %cst_11 : f32 to vector<48x32xf32>
    %25 = arith.maximumf %23, %24 : vector<48x32xf32>
    %cst_12 = arith.constant dense<0.000000e+00> : vector<48x32xf32>
    %26 = tpu.matmul %25, %4, %cst_12 {dimension_numbers = #tpu.dot_dimension_numbers<[1], [0], [0], [1], [0, 0, 1, 1], [], []>} : vector<48x32xf32>, vector<32x32xf32>, vector<48x32xf32> -> vector<48x32xf32>
    %c193 = arith.constant 193 : index
    %c0_13 = arith.constant 0 : index
    %27 = vector.load %arg1[%c193, %c0_13] : memref<456x128xf32, #tpu.memory_space<vmem>>, vector<1x32xf32>
    %28 = vector.broadcast %27 : vector<1x32xf32> to vector<48x32xf32>
    %29 = arith.addf %26, %28 : vector<48x32xf32>
    %30 = math.tanh %29 : vector<48x32xf32>
    %c194 = arith.constant 194 : index
    %c0_14 = arith.constant 0 : index
    %31 = vector.load %arg1[%c194, %c0_14] : memref<456x128xf32, #tpu.memory_space<vmem>>, vector<1x32xf32>
    %32 = vector.broadcast %31 : vector<1x32xf32> to vector<48x32xf32>
    %33 = arith.mulf %30, %32 : vector<48x32xf32>
    %cst_15 = arith.constant dense<0.000000e+00> : vector<48xf32>
    %34 = vector.multi_reduction <add>, %33, %cst_15 [1] : vector<48x32xf32> to vector<48xf32>
    %35 = vector.shape_cast %34 : vector<48xf32> to vector<48x1xf32>
    %cst_16 = arith.constant dense<0xFF800000> : vector<1xf32>
    %36 = vector.multi_reduction <maximumf>, %35, %cst_16 [0] : vector<48x1xf32> to vector<1xf32>
    %37 = vector.shape_cast %36 : vector<1xf32> to vector<1x1xf32>
    %38 = vector.broadcast %37 : vector<1x1xf32> to vector<48x1xf32>
    %39 = arith.subf %35, %38 : vector<48x1xf32>
    %40 = math.exp %39 : vector<48x1xf32>
    %41 = tpu.iota {dimensions = array<i32: 0>} : vector<6x48xi32>
    %42 = tpu.iota {dimensions = array<i32: 1>} : vector<6x48xi32>
    %c8_i32 = arith.constant 8 : i32
    %43 = vector.broadcast %c8_i32 : i32 to vector<6x48xi32>
    %44 = arith.muli %41, %43 : vector<6x48xi32>
    %45 = arith.subi %42, %44 : vector<6x48xi32>
    %c0_i32_17 = arith.constant 0 : i32
    %46 = vector.broadcast %c0_i32_17 : i32 to vector<6x48xi32>
    %47 = arith.cmpi sge, %45, %46 : vector<6x48xi32>
    %c8_i32_18 = arith.constant 8 : i32
    %48 = vector.broadcast %c8_i32_18 : i32 to vector<6x48xi32>
    %49 = arith.cmpi slt, %45, %48 : vector<6x48xi32>
    %50 = arith.andi %47, %49 : vector<6x48xi1>
    %51 = arith.extui %50 : vector<6x48xi1> to vector<6x48xi32>
    %52 = arith.sitofp %51 : vector<6x48xi32> to vector<6x48xf32>
    %53 = vector.broadcast %40 : vector<48x1xf32> to vector<48x32xf32>
    %54 = arith.mulf %53, %25 : vector<48x32xf32>
    %55 = tpu.concatenate %54, %40 in 1 : vector<48x32xf32>, vector<48x1xf32> -> vector<48x33xf32>
    %cst_19 = arith.constant dense<0.000000e+00> : vector<6x33xf32>
    %56 = tpu.matmul %52, %55, %cst_19 {dimension_numbers = #tpu.dot_dimension_numbers<[1], [0], [0], [1], [0, 0, 1, 1], [], []>} : vector<6x48xf32>, vector<48x33xf32>, vector<6x33xf32> -> vector<6x33xf32>
    %57 = vector.extract_strided_slice %56 {offsets = [0, 0], sizes = [6, 32], strides = [1, 1]} : vector<6x33xf32> to vector<6x32xf32>
    %58 = vector.extract_strided_slice %56 {offsets = [0, 32], sizes = [6, 1], strides = [1, 1]} : vector<6x33xf32> to vector<6x1xf32>
    %59 = vector.broadcast %58 : vector<6x1xf32> to vector<6x32xf32>
    %60 = arith.divf %57, %59 : vector<6x32xf32>
    %c202 = arith.constant 202 : index
    %c0_20 = arith.constant 0 : index
    %61 = vector.load %arg1[%c202, %c0_20] : memref<456x128xf32, #tpu.memory_space<vmem>>, vector<1x32xf32>
    %c203 = arith.constant 203 : index
    %c0_21 = arith.constant 0 : index
    %62 = vector.load %arg1[%c203, %c0_21] : memref<456x128xf32, #tpu.memory_space<vmem>>, vector<1x32xf32>
    %cst_22 = arith.constant dense<0.000000e+00> : vector<6xf32>
    %63 = vector.multi_reduction <add>, %60, %cst_22 [1] : vector<6x32xf32> to vector<6xf32>
    %64 = vector.shape_cast %63 : vector<6xf32> to vector<6x1xf32>
    %cst_23 = arith.constant 3.200000e+01 : f32
    %65 = vector.broadcast %cst_23 : f32 to vector<6x1xf32>
    %66 = arith.divf %64, %65 : vector<6x1xf32>
    %67 = vector.broadcast %66 : vector<6x1xf32> to vector<6x32xf32>
    %68 = arith.subf %60, %67 : vector<6x32xf32>
    %69 = arith.mulf %68, %68 : vector<6x32xf32>
    %cst_24 = arith.constant dense<0.000000e+00> : vector<6xf32>
    %70 = vector.multi_reduction <add>, %69, %cst_24 [1] : vector<6x32xf32> to vector<6xf32>
    %71 = vector.shape_cast %70 : vector<6xf32> to vector<6x1xf32>
    %cst_25 = arith.constant 3.200000e+01 : f32
    %72 = vector.broadcast %cst_25 : f32 to vector<6x1xf32>
    %73 = arith.divf %71, %72 : vector<6x1xf32>
    %74 = vector.broadcast %66 : vector<6x1xf32> to vector<6x32xf32>
    %75 = arith.subf %60, %74 : vector<6x32xf32>
    %cst_26 = arith.constant 9.99999974E-6 : f32
    %76 = vector.broadcast %cst_26 : f32 to vector<6x1xf32>
    %77 = arith.addf %73, %76 : vector<6x1xf32>
    %78 = math.rsqrt %77 : vector<6x1xf32>
    %79 = vector.broadcast %78 : vector<6x1xf32> to vector<6x32xf32>
    %80 = arith.mulf %75, %79 : vector<6x32xf32>
    %81 = vector.broadcast %61 : vector<1x32xf32> to vector<6x32xf32>
    %82 = arith.mulf %80, %81 : vector<6x32xf32>
    %83 = vector.broadcast %62 : vector<1x32xf32> to vector<6x32xf32>
    %84 = arith.addf %82, %83 : vector<6x32xf32>
    %85 = tpu.iota {dimensions = array<i32: 1>} : vector<6x32xi32>
    %86 = vector.extract_strided_slice %2 {offsets = [0, 0], sizes = [6, 1], strides = [1, 1]} : vector<6x2xi32> to vector<6x1xi32>
    %87 = vector.broadcast %86 : vector<6x1xi32> to vector<6x32xi32>
    %88 = arith.cmpi eq, %85, %87 : vector<6x32xi32>
    %89 = vector.extract_strided_slice %2 {offsets = [0, 1], sizes = [6, 1], strides = [1, 1]} : vector<6x2xi32> to vector<6x1xi32>
    %90 = vector.broadcast %89 : vector<6x1xi32> to vector<6x32xi32>
    %91 = arith.cmpi eq, %85, %90 : vector<6x32xi32>
    %92 = arith.ori %88, %91 : vector<6x32xi1>
    %93 = arith.extui %92 : vector<6x32xi1> to vector<6x32xi32>
    %94 = arith.sitofp %93 : vector<6x32xi32> to vector<6x32xf32>
    %cst_27 = arith.constant dense<0.000000e+00> : vector<6x64xf32>
    %95 = tpu.matmul %94, %6, %cst_27 {dimension_numbers = #tpu.dot_dimension_numbers<[1], [0], [0], [1], [0, 0, 1, 1], [], []>} : vector<6x32xf32>, vector<32x64xf32>, vector<6x64xf32> -> vector<6x64xf32>
    %c197 = arith.constant 197 : index
    %c0_28 = arith.constant 0 : index
    %96 = vector.load %arg1[%c197, %c0_28] : memref<456x128xf32, #tpu.memory_space<vmem>>, vector<1x64xf32>
    %97 = vector.broadcast %96 : vector<1x64xf32> to vector<6x64xf32>
    %98 = arith.addf %95, %97 : vector<6x64xf32>
    %99 = vector.extract_strided_slice %98 {offsets = [0, 0], sizes = [6, 32], strides = [1, 1]} : vector<6x64xf32> to vector<6x32xf32>
    %c198 = arith.constant 198 : index
    %c0_29 = arith.constant 0 : index
    %100 = vector.load %arg1[%c198, %c0_29] : memref<456x128xf32, #tpu.memory_space<vmem>>, vector<1x32xf32>
    %c199 = arith.constant 199 : index
    %c0_30 = arith.constant 0 : index
    %101 = vector.load %arg1[%c199, %c0_30] : memref<456x128xf32, #tpu.memory_space<vmem>>, vector<1x32xf32>
    %cst_31 = arith.constant dense<0.000000e+00> : vector<6xf32>
    %102 = vector.multi_reduction <add>, %99, %cst_31 [1] : vector<6x32xf32> to vector<6xf32>
    %103 = vector.shape_cast %102 : vector<6xf32> to vector<6x1xf32>
    %cst_32 = arith.constant 3.200000e+01 : f32
    %104 = vector.broadcast %cst_32 : f32 to vector<6x1xf32>
    %105 = arith.divf %103, %104 : vector<6x1xf32>
    %106 = vector.broadcast %105 : vector<6x1xf32> to vector<6x32xf32>
    %107 = arith.subf %99, %106 : vector<6x32xf32>
    %108 = arith.mulf %107, %107 : vector<6x32xf32>
    %cst_33 = arith.constant dense<0.000000e+00> : vector<6xf32>
    %109 = vector.multi_reduction <add>, %108, %cst_33 [1] : vector<6x32xf32> to vector<6xf32>
    %110 = vector.shape_cast %109 : vector<6xf32> to vector<6x1xf32>
    %cst_34 = arith.constant 3.200000e+01 : f32
    %111 = vector.broadcast %cst_34 : f32 to vector<6x1xf32>
    %112 = arith.divf %110, %111 : vector<6x1xf32>
    %113 = vector.broadcast %105 : vector<6x1xf32> to vector<6x32xf32>
    %114 = arith.subf %99, %113 : vector<6x32xf32>
    %cst_35 = arith.constant 9.99999974E-6 : f32
    %115 = vector.broadcast %cst_35 : f32 to vector<6x1xf32>
    %116 = arith.addf %112, %115 : vector<6x1xf32>
    %117 = math.rsqrt %116 : vector<6x1xf32>
    %118 = vector.broadcast %117 : vector<6x1xf32> to vector<6x32xf32>
    %119 = arith.mulf %114, %118 : vector<6x32xf32>
    %120 = vector.broadcast %100 : vector<1x32xf32> to vector<6x32xf32>
    %121 = arith.mulf %119, %120 : vector<6x32xf32>
    %122 = vector.broadcast %101 : vector<1x32xf32> to vector<6x32xf32>
    %123 = arith.addf %121, %122 : vector<6x32xf32>
    %124 = vector.extract_strided_slice %98 {offsets = [0, 32], sizes = [6, 32], strides = [1, 1]} : vector<6x64xf32> to vector<6x32xf32>
    %c200 = arith.constant 200 : index
    %c0_36 = arith.constant 0 : index
    %125 = vector.load %arg1[%c200, %c0_36] : memref<456x128xf32, #tpu.memory_space<vmem>>, vector<1x32xf32>
    %c201 = arith.constant 201 : index
    %c0_37 = arith.constant 0 : index
    %126 = vector.load %arg1[%c201, %c0_37] : memref<456x128xf32, #tpu.memory_space<vmem>>, vector<1x32xf32>
    %cst_38 = arith.constant dense<0.000000e+00> : vector<6xf32>
    %127 = vector.multi_reduction <add>, %124, %cst_38 [1] : vector<6x32xf32> to vector<6xf32>
    %128 = vector.shape_cast %127 : vector<6xf32> to vector<6x1xf32>
    %cst_39 = arith.constant 3.200000e+01 : f32
    %129 = vector.broadcast %cst_39 : f32 to vector<6x1xf32>
    %130 = arith.divf %128, %129 : vector<6x1xf32>
    %131 = vector.broadcast %130 : vector<6x1xf32> to vector<6x32xf32>
    %132 = arith.subf %124, %131 : vector<6x32xf32>
    %133 = arith.mulf %132, %132 : vector<6x32xf32>
    %cst_40 = arith.constant dense<0.000000e+00> : vector<6xf32>
    %134 = vector.multi_reduction <add>, %133, %cst_40 [1] : vector<6x32xf32> to vector<6xf32>
    %135 = vector.shape_cast %134 : vector<6xf32> to vector<6x1xf32>
    %cst_41 = arith.constant 3.200000e+01 : f32
    %136 = vector.broadcast %cst_41 : f32 to vector<6x1xf32>
    %137 = arith.divf %135, %136 : vector<6x1xf32>
    %138 = vector.broadcast %130 : vector<6x1xf32> to vector<6x32xf32>
    %139 = arith.subf %124, %138 : vector<6x32xf32>
    %cst_42 = arith.constant 9.99999974E-6 : f32
    %140 = vector.broadcast %cst_42 : f32 to vector<6x1xf32>
    %141 = arith.addf %137, %140 : vector<6x1xf32>
    %142 = math.rsqrt %141 : vector<6x1xf32>
    %143 = vector.broadcast %142 : vector<6x1xf32> to vector<6x32xf32>
    %144 = arith.mulf %139, %143 : vector<6x32xf32>
    %145 = vector.broadcast %125 : vector<1x32xf32> to vector<6x32xf32>
    %146 = arith.mulf %144, %145 : vector<6x32xf32>
    %147 = vector.broadcast %126 : vector<1x32xf32> to vector<6x32xf32>
    %148 = arith.addf %146, %147 : vector<6x32xf32>
    %149 = tpu.concatenate %84, %123, %148 in 0 : vector<6x32xf32>, vector<6x32xf32>, vector<6x32xf32> -> vector<18x32xf32>
    %cst_43 = arith.constant dense<0.000000e+00> : vector<18x32xf32>
    %150 = tpu.matmul %149, %5, %cst_43 {dimension_numbers = #tpu.dot_dimension_numbers<[1], [0], [0], [1], [0, 0, 1, 1], [], []>} : vector<18x32xf32>, vector<32x32xf32>, vector<18x32xf32> -> vector<18x32xf32>
    %c195 = arith.constant 195 : index
    %c0_44 = arith.constant 0 : index
    %151 = vector.load %arg1[%c195, %c0_44] : memref<456x128xf32, #tpu.memory_space<vmem>>, vector<1x32xf32>
    %152 = vector.broadcast %151 : vector<1x32xf32> to vector<18x32xf32>
    %153 = arith.addf %150, %152 : vector<18x32xf32>
    %154 = math.tanh %153 : vector<18x32xf32>
    %c196 = arith.constant 196 : index
    %c0_45 = arith.constant 0 : index
    %155 = vector.load %arg1[%c196, %c0_45] : memref<456x128xf32, #tpu.memory_space<vmem>>, vector<1x32xf32>
    %156 = vector.broadcast %155 : vector<1x32xf32> to vector<18x32xf32>
    %157 = arith.mulf %154, %156 : vector<18x32xf32>
    %cst_46 = arith.constant dense<0.000000e+00> : vector<18xf32>
    %158 = vector.multi_reduction <add>, %157, %cst_46 [1] : vector<18x32xf32> to vector<18xf32>
    %159 = vector.shape_cast %158 : vector<18xf32> to vector<18x1xf32>
    %160 = vector.extract_strided_slice %159 {offsets = [0, 0], sizes = [6, 1], strides = [1, 1]} : vector<18x1xf32> to vector<6x1xf32>
    %161 = vector.extract_strided_slice %159 {offsets = [6, 0], sizes = [6, 1], strides = [1, 1]} : vector<18x1xf32> to vector<6x1xf32>
    %162 = vector.extract_strided_slice %159 {offsets = [12, 0], sizes = [6, 1], strides = [1, 1]} : vector<18x1xf32> to vector<6x1xf32>
    %163 = arith.maximumf %160, %161 : vector<6x1xf32>
    %164 = arith.maximumf %163, %162 : vector<6x1xf32>
    %165 = arith.subf %160, %164 : vector<6x1xf32>
    %166 = math.exp %165 : vector<6x1xf32>
    %167 = arith.subf %161, %164 : vector<6x1xf32>
    %168 = math.exp %167 : vector<6x1xf32>
    %169 = arith.subf %162, %164 : vector<6x1xf32>
    %170 = math.exp %169 : vector<6x1xf32>
    %171 = vector.broadcast %166 : vector<6x1xf32> to vector<6x32xf32>
    %172 = arith.mulf %171, %84 : vector<6x32xf32>
    %173 = vector.broadcast %168 : vector<6x1xf32> to vector<6x32xf32>
    %174 = arith.mulf %173, %123 : vector<6x32xf32>
    %175 = arith.addf %172, %174 : vector<6x32xf32>
    %176 = vector.broadcast %170 : vector<6x1xf32> to vector<6x32xf32>
    %177 = arith.mulf %176, %148 : vector<6x32xf32>
    %178 = arith.addf %175, %177 : vector<6x32xf32>
    %179 = arith.addf %166, %168 : vector<6x1xf32>
    %180 = arith.addf %179, %170 : vector<6x1xf32>
    %181 = vector.broadcast %180 : vector<6x1xf32> to vector<6x32xf32>
    %182 = arith.divf %178, %181 : vector<6x32xf32>
    %c204 = arith.constant 204 : index
    %c0_47 = arith.constant 0 : index
    %183 = vector.load %arg1[%c204, %c0_47] : memref<456x128xf32, #tpu.memory_space<vmem>>, vector<1x32xf32>
    %c205 = arith.constant 205 : index
    %c0_48 = arith.constant 0 : index
    %184 = vector.load %arg1[%c205, %c0_48] : memref<456x128xf32, #tpu.memory_space<vmem>>, vector<1x32xf32>
    %cst_49 = arith.constant dense<0.000000e+00> : vector<6xf32>
    %185 = vector.multi_reduction <add>, %182, %cst_49 [1] : vector<6x32xf32> to vector<6xf32>
    %186 = vector.shape_cast %185 : vector<6xf32> to vector<6x1xf32>
    %cst_50 = arith.constant 3.200000e+01 : f32
    %187 = vector.broadcast %cst_50 : f32 to vector<6x1xf32>
    %188 = arith.divf %186, %187 : vector<6x1xf32>
    %189 = vector.broadcast %188 : vector<6x1xf32> to vector<6x32xf32>
    %190 = arith.subf %182, %189 : vector<6x32xf32>
    %191 = arith.mulf %190, %190 : vector<6x32xf32>
    %cst_51 = arith.constant dense<0.000000e+00> : vector<6xf32>
    %192 = vector.multi_reduction <add>, %191, %cst_51 [1] : vector<6x32xf32> to vector<6xf32>
    %193 = vector.shape_cast %192 : vector<6xf32> to vector<6x1xf32>
    %cst_52 = arith.constant 3.200000e+01 : f32
    %194 = vector.broadcast %cst_52 : f32 to vector<6x1xf32>
    %195 = arith.divf %193, %194 : vector<6x1xf32>
    %196 = vector.broadcast %188 : vector<6x1xf32> to vector<6x32xf32>
    %197 = arith.subf %182, %196 : vector<6x32xf32>
    %cst_53 = arith.constant 9.99999974E-6 : f32
    %198 = vector.broadcast %cst_53 : f32 to vector<6x1xf32>
    %199 = arith.addf %195, %198 : vector<6x1xf32>
    %200 = math.rsqrt %199 : vector<6x1xf32>
    %201 = vector.broadcast %200 : vector<6x1xf32> to vector<6x32xf32>
    %202 = arith.mulf %197, %201 : vector<6x32xf32>
    %203 = vector.broadcast %183 : vector<1x32xf32> to vector<6x32xf32>
    %204 = arith.mulf %202, %203 : vector<6x32xf32>
    %205 = vector.broadcast %184 : vector<1x32xf32> to vector<6x32xf32>
    %206 = arith.addf %204, %205 : vector<6x32xf32>
    %c48 = arith.constant 48 : index
    %c0_54 = arith.constant 0 : index
    %207 = vector.load %arg2[%c48, %c0_54] : memref<112x32xf32, #tpu.memory_space<vmem>>, vector<64x32xf32>
    %208 = vector.extract_strided_slice %0 {offsets = [6, 0], sizes = [8, 2], strides = [1, 1]} : vector<14x2xi32> to vector<8x2xi32>
    %c208 = arith.constant 208 : index
    %c0_55 = arith.constant 0 : index
    %209 = vector.load %arg1[%c208, %c0_55] : memref<456x128xf32, #tpu.memory_space<vmem>>, vector<96x32xf32>
    %c304 = arith.constant 304 : index
    %c0_56 = arith.constant 0 : index
    %210 = vector.load %arg1[%c304, %c0_56] : memref<456x128xf32, #tpu.memory_space<vmem>>, vector<32x32xf32>
    %c336 = arith.constant 336 : index
    %c0_57 = arith.constant 0 : index
    %211 = vector.load %arg1[%c336, %c0_57] : memref<456x128xf32, #tpu.memory_space<vmem>>, vector<32x32xf32>
    %c368 = arith.constant 368 : index
    %c0_58 = arith.constant 0 : index
    %212 = vector.load %arg1[%c368, %c0_58] : memref<456x128xf32, #tpu.memory_space<vmem>>, vector<32x64xf32>
    %213 = tpu.iota {dimensions = array<i32: 1>} : vector<8x8x32xi32>
    %214 = vector.shape_cast %213 : vector<8x8x32xi32> to vector<64x32xi32>
    %c0_i32_59 = arith.constant 0 : i32
    %215 = vector.broadcast %c0_i32_59 : i32 to vector<64x32xi32>
    %216 = arith.cmpi eq, %214, %215 : vector<64x32xi32>
    %c1_i32_60 = arith.constant 1 : i32
    %217 = tpu.dynamic_rotate %207 by %c1_i32_60 dim 0 : vector<64x32xf32>, i32 -> vector<64x32xf32>
    %cst_61 = arith.constant 0.000000e+00 : f32
    %218 = vector.broadcast %cst_61 : f32 to vector<64x32xf32>
    %219 = arith.select %216, %218, %217 : vector<64x32xi1>, vector<64x32xf32>
    %c7_i32_62 = arith.constant 7 : i32
    %220 = vector.broadcast %c7_i32_62 : i32 to vector<64x32xi32>
    %221 = arith.cmpi eq, %214, %220 : vector<64x32xi32>
    %c63_i32 = arith.constant 63 : i32
    %222 = tpu.dynamic_rotate %207 by %c63_i32 dim 0 : vector<64x32xf32>, i32 -> vector<64x32xf32>
    %cst_63 = arith.constant 0.000000e+00 : f32
    %223 = vector.broadcast %cst_63 : f32 to vector<64x32xf32>
    %224 = arith.select %221, %223, %222 : vector<64x32xi1>, vector<64x32xf32>
    %225 = tpu.concatenate %219, %207, %224 in 1 : vector<64x32xf32>, vector<64x32xf32>, vector<64x32xf32> -> vector<64x96xf32>
    %cst_64 = arith.constant dense<0.000000e+00> : vector<64x32xf32>
    %226 = tpu.matmul %225, %209, %cst_64 {dimension_numbers = #tpu.dot_dimension_numbers<[1], [0], [0], [1], [0, 0, 1, 1], [], []>} : vector<64x96xf32>, vector<96x32xf32>, vector<64x32xf32> -> vector<64x32xf32>
    %c400 = arith.constant 400 : index
    %c0_65 = arith.constant 0 : index
    %227 = vector.load %arg1[%c400, %c0_65] : memref<456x128xf32, #tpu.memory_space<vmem>>, vector<1x32xf32>
    %228 = vector.broadcast %227 : vector<1x32xf32> to vector<64x32xf32>
    %229 = arith.addf %226, %228 : vector<64x32xf32>
    %cst_66 = arith.constant 0.000000e+00 : f32
    %230 = vector.broadcast %cst_66 : f32 to vector<64x32xf32>
    %231 = arith.maximumf %229, %230 : vector<64x32xf32>
    %cst_67 = arith.constant dense<0.000000e+00> : vector<64x32xf32>
    %232 = tpu.matmul %231, %210, %cst_67 {dimension_numbers = #tpu.dot_dimension_numbers<[1], [0], [0], [1], [0, 0, 1, 1], [], []>} : vector<64x32xf32>, vector<32x32xf32>, vector<64x32xf32> -> vector<64x32xf32>
    %c401 = arith.constant 401 : index
    %c0_68 = arith.constant 0 : index
    %233 = vector.load %arg1[%c401, %c0_68] : memref<456x128xf32, #tpu.memory_space<vmem>>, vector<1x32xf32>
    %234 = vector.broadcast %233 : vector<1x32xf32> to vector<64x32xf32>
    %235 = arith.addf %232, %234 : vector<64x32xf32>
    %236 = math.tanh %235 : vector<64x32xf32>
    %c402 = arith.constant 402 : index
    %c0_69 = arith.constant 0 : index
    %237 = vector.load %arg1[%c402, %c0_69] : memref<456x128xf32, #tpu.memory_space<vmem>>, vector<1x32xf32>
    %238 = vector.broadcast %237 : vector<1x32xf32> to vector<64x32xf32>
    %239 = arith.mulf %236, %238 : vector<64x32xf32>
    %cst_70 = arith.constant dense<0.000000e+00> : vector<64xf32>
    %240 = vector.multi_reduction <add>, %239, %cst_70 [1] : vector<64x32xf32> to vector<64xf32>
    %241 = vector.shape_cast %240 : vector<64xf32> to vector<64x1xf32>
    %cst_71 = arith.constant dense<0xFF800000> : vector<1xf32>
    %242 = vector.multi_reduction <maximumf>, %241, %cst_71 [0] : vector<64x1xf32> to vector<1xf32>
    %243 = vector.shape_cast %242 : vector<1xf32> to vector<1x1xf32>
    %244 = vector.broadcast %243 : vector<1x1xf32> to vector<64x1xf32>
    %245 = arith.subf %241, %244 : vector<64x1xf32>
    %246 = math.exp %245 : vector<64x1xf32>
    %247 = tpu.iota {dimensions = array<i32: 0>} : vector<8x64xi32>
    %248 = tpu.iota {dimensions = array<i32: 1>} : vector<8x64xi32>
    %c8_i32_72 = arith.constant 8 : i32
    %249 = vector.broadcast %c8_i32_72 : i32 to vector<8x64xi32>
    %250 = arith.muli %247, %249 : vector<8x64xi32>
    %251 = arith.subi %248, %250 : vector<8x64xi32>
    %c0_i32_73 = arith.constant 0 : i32
    %252 = vector.broadcast %c0_i32_73 : i32 to vector<8x64xi32>
    %253 = arith.cmpi sge, %251, %252 : vector<8x64xi32>
    %c8_i32_74 = arith.constant 8 : i32
    %254 = vector.broadcast %c8_i32_74 : i32 to vector<8x64xi32>
    %255 = arith.cmpi slt, %251, %254 : vector<8x64xi32>
    %256 = arith.andi %253, %255 : vector<8x64xi1>
    %257 = arith.extui %256 : vector<8x64xi1> to vector<8x64xi32>
    %258 = arith.sitofp %257 : vector<8x64xi32> to vector<8x64xf32>
    %259 = vector.broadcast %246 : vector<64x1xf32> to vector<64x32xf32>
    %260 = arith.mulf %259, %231 : vector<64x32xf32>
    %261 = tpu.concatenate %260, %246 in 1 : vector<64x32xf32>, vector<64x1xf32> -> vector<64x33xf32>
    %cst_75 = arith.constant dense<0.000000e+00> : vector<8x33xf32>
    %262 = tpu.matmul %258, %261, %cst_75 {dimension_numbers = #tpu.dot_dimension_numbers<[1], [0], [0], [1], [0, 0, 1, 1], [], []>} : vector<8x64xf32>, vector<64x33xf32>, vector<8x33xf32> -> vector<8x33xf32>
    %263 = vector.extract_strided_slice %262 {offsets = [0, 0], sizes = [8, 32], strides = [1, 1]} : vector<8x33xf32> to vector<8x32xf32>
    %264 = vector.extract_strided_slice %262 {offsets = [0, 32], sizes = [8, 1], strides = [1, 1]} : vector<8x33xf32> to vector<8x1xf32>
    %265 = vector.broadcast %264 : vector<8x1xf32> to vector<8x32xf32>
    %266 = arith.divf %263, %265 : vector<8x32xf32>
    %c410 = arith.constant 410 : index
    %c0_76 = arith.constant 0 : index
    %267 = vector.load %arg1[%c410, %c0_76] : memref<456x128xf32, #tpu.memory_space<vmem>>, vector<1x32xf32>
    %c411 = arith.constant 411 : index
    %c0_77 = arith.constant 0 : index
    %268 = vector.load %arg1[%c411, %c0_77] : memref<456x128xf32, #tpu.memory_space<vmem>>, vector<1x32xf32>
    %cst_78 = arith.constant dense<0.000000e+00> : vector<8xf32>
    %269 = vector.multi_reduction <add>, %266, %cst_78 [1] : vector<8x32xf32> to vector<8xf32>
    %270 = vector.shape_cast %269 : vector<8xf32> to vector<8x1xf32>
    %cst_79 = arith.constant 3.200000e+01 : f32
    %271 = vector.broadcast %cst_79 : f32 to vector<8x1xf32>
    %272 = arith.divf %270, %271 : vector<8x1xf32>
    %273 = vector.broadcast %272 : vector<8x1xf32> to vector<8x32xf32>
    %274 = arith.subf %266, %273 : vector<8x32xf32>
    %275 = arith.mulf %274, %274 : vector<8x32xf32>
    %cst_80 = arith.constant dense<0.000000e+00> : vector<8xf32>
    %276 = vector.multi_reduction <add>, %275, %cst_80 [1] : vector<8x32xf32> to vector<8xf32>
    %277 = vector.shape_cast %276 : vector<8xf32> to vector<8x1xf32>
    %cst_81 = arith.constant 3.200000e+01 : f32
    %278 = vector.broadcast %cst_81 : f32 to vector<8x1xf32>
    %279 = arith.divf %277, %278 : vector<8x1xf32>
    %280 = vector.broadcast %272 : vector<8x1xf32> to vector<8x32xf32>
    %281 = arith.subf %266, %280 : vector<8x32xf32>
    %cst_82 = arith.constant 9.99999974E-6 : f32
    %282 = vector.broadcast %cst_82 : f32 to vector<8x1xf32>
    %283 = arith.addf %279, %282 : vector<8x1xf32>
    %284 = math.rsqrt %283 : vector<8x1xf32>
    %285 = vector.broadcast %284 : vector<8x1xf32> to vector<8x32xf32>
    %286 = arith.mulf %281, %285 : vector<8x32xf32>
    %287 = vector.broadcast %267 : vector<1x32xf32> to vector<8x32xf32>
    %288 = arith.mulf %286, %287 : vector<8x32xf32>
    %289 = vector.broadcast %268 : vector<1x32xf32> to vector<8x32xf32>
    %290 = arith.addf %288, %289 : vector<8x32xf32>
    %291 = tpu.iota {dimensions = array<i32: 1>} : vector<8x32xi32>
    %292 = vector.extract_strided_slice %208 {offsets = [0, 0], sizes = [8, 1], strides = [1, 1]} : vector<8x2xi32> to vector<8x1xi32>
    %293 = vector.broadcast %292 : vector<8x1xi32> to vector<8x32xi32>
    %294 = arith.cmpi eq, %291, %293 : vector<8x32xi32>
    %295 = vector.extract_strided_slice %208 {offsets = [0, 1], sizes = [8, 1], strides = [1, 1]} : vector<8x2xi32> to vector<8x1xi32>
    %296 = vector.broadcast %295 : vector<8x1xi32> to vector<8x32xi32>
    %297 = arith.cmpi eq, %291, %296 : vector<8x32xi32>
    %298 = arith.ori %294, %297 : vector<8x32xi1>
    %299 = arith.extui %298 : vector<8x32xi1> to vector<8x32xi32>
    %300 = arith.sitofp %299 : vector<8x32xi32> to vector<8x32xf32>
    %cst_83 = arith.constant dense<0.000000e+00> : vector<8x64xf32>
    %301 = tpu.matmul %300, %212, %cst_83 {dimension_numbers = #tpu.dot_dimension_numbers<[1], [0], [0], [1], [0, 0, 1, 1], [], []>} : vector<8x32xf32>, vector<32x64xf32>, vector<8x64xf32> -> vector<8x64xf32>
    %c405 = arith.constant 405 : index
    %c0_84 = arith.constant 0 : index
    %302 = vector.load %arg1[%c405, %c0_84] : memref<456x128xf32, #tpu.memory_space<vmem>>, vector<1x64xf32>
    %303 = vector.broadcast %302 : vector<1x64xf32> to vector<8x64xf32>
    %304 = arith.addf %301, %303 : vector<8x64xf32>
    %305 = vector.extract_strided_slice %304 {offsets = [0, 0], sizes = [8, 32], strides = [1, 1]} : vector<8x64xf32> to vector<8x32xf32>
    %c406 = arith.constant 406 : index
    %c0_85 = arith.constant 0 : index
    %306 = vector.load %arg1[%c406, %c0_85] : memref<456x128xf32, #tpu.memory_space<vmem>>, vector<1x32xf32>
    %c407 = arith.constant 407 : index
    %c0_86 = arith.constant 0 : index
    %307 = vector.load %arg1[%c407, %c0_86] : memref<456x128xf32, #tpu.memory_space<vmem>>, vector<1x32xf32>
    %cst_87 = arith.constant dense<0.000000e+00> : vector<8xf32>
    %308 = vector.multi_reduction <add>, %305, %cst_87 [1] : vector<8x32xf32> to vector<8xf32>
    %309 = vector.shape_cast %308 : vector<8xf32> to vector<8x1xf32>
    %cst_88 = arith.constant 3.200000e+01 : f32
    %310 = vector.broadcast %cst_88 : f32 to vector<8x1xf32>
    %311 = arith.divf %309, %310 : vector<8x1xf32>
    %312 = vector.broadcast %311 : vector<8x1xf32> to vector<8x32xf32>
    %313 = arith.subf %305, %312 : vector<8x32xf32>
    %314 = arith.mulf %313, %313 : vector<8x32xf32>
    %cst_89 = arith.constant dense<0.000000e+00> : vector<8xf32>
    %315 = vector.multi_reduction <add>, %314, %cst_89 [1] : vector<8x32xf32> to vector<8xf32>
    %316 = vector.shape_cast %315 : vector<8xf32> to vector<8x1xf32>
    %cst_90 = arith.constant 3.200000e+01 : f32
    %317 = vector.broadcast %cst_90 : f32 to vector<8x1xf32>
    %318 = arith.divf %316, %317 : vector<8x1xf32>
    %319 = vector.broadcast %311 : vector<8x1xf32> to vector<8x32xf32>
    %320 = arith.subf %305, %319 : vector<8x32xf32>
    %cst_91 = arith.constant 9.99999974E-6 : f32
    %321 = vector.broadcast %cst_91 : f32 to vector<8x1xf32>
    %322 = arith.addf %318, %321 : vector<8x1xf32>
    %323 = math.rsqrt %322 : vector<8x1xf32>
    %324 = vector.broadcast %323 : vector<8x1xf32> to vector<8x32xf32>
    %325 = arith.mulf %320, %324 : vector<8x32xf32>
    %326 = vector.broadcast %306 : vector<1x32xf32> to vector<8x32xf32>
    %327 = arith.mulf %325, %326 : vector<8x32xf32>
    %328 = vector.broadcast %307 : vector<1x32xf32> to vector<8x32xf32>
    %329 = arith.addf %327, %328 : vector<8x32xf32>
    %330 = vector.extract_strided_slice %304 {offsets = [0, 32], sizes = [8, 32], strides = [1, 1]} : vector<8x64xf32> to vector<8x32xf32>
    %c408 = arith.constant 408 : index
    %c0_92 = arith.constant 0 : index
    %331 = vector.load %arg1[%c408, %c0_92] : memref<456x128xf32, #tpu.memory_space<vmem>>, vector<1x32xf32>
    %c409 = arith.constant 409 : index
    %c0_93 = arith.constant 0 : index
    %332 = vector.load %arg1[%c409, %c0_93] : memref<456x128xf32, #tpu.memory_space<vmem>>, vector<1x32xf32>
    %cst_94 = arith.constant dense<0.000000e+00> : vector<8xf32>
    %333 = vector.multi_reduction <add>, %330, %cst_94 [1] : vector<8x32xf32> to vector<8xf32>
    %334 = vector.shape_cast %333 : vector<8xf32> to vector<8x1xf32>
    %cst_95 = arith.constant 3.200000e+01 : f32
    %335 = vector.broadcast %cst_95 : f32 to vector<8x1xf32>
    %336 = arith.divf %334, %335 : vector<8x1xf32>
    %337 = vector.broadcast %336 : vector<8x1xf32> to vector<8x32xf32>
    %338 = arith.subf %330, %337 : vector<8x32xf32>
    %339 = arith.mulf %338, %338 : vector<8x32xf32>
    %cst_96 = arith.constant dense<0.000000e+00> : vector<8xf32>
    %340 = vector.multi_reduction <add>, %339, %cst_96 [1] : vector<8x32xf32> to vector<8xf32>
    %341 = vector.shape_cast %340 : vector<8xf32> to vector<8x1xf32>
    %cst_97 = arith.constant 3.200000e+01 : f32
    %342 = vector.broadcast %cst_97 : f32 to vector<8x1xf32>
    %343 = arith.divf %341, %342 : vector<8x1xf32>
    %344 = vector.broadcast %336 : vector<8x1xf32> to vector<8x32xf32>
    %345 = arith.subf %330, %344 : vector<8x32xf32>
    %cst_98 = arith.constant 9.99999974E-6 : f32
    %346 = vector.broadcast %cst_98 : f32 to vector<8x1xf32>
    %347 = arith.addf %343, %346 : vector<8x1xf32>
    %348 = math.rsqrt %347 : vector<8x1xf32>
    %349 = vector.broadcast %348 : vector<8x1xf32> to vector<8x32xf32>
    %350 = arith.mulf %345, %349 : vector<8x32xf32>
    %351 = vector.broadcast %331 : vector<1x32xf32> to vector<8x32xf32>
    %352 = arith.mulf %350, %351 : vector<8x32xf32>
    %353 = vector.broadcast %332 : vector<1x32xf32> to vector<8x32xf32>
    %354 = arith.addf %352, %353 : vector<8x32xf32>
    %355 = tpu.concatenate %290, %329, %354 in 0 : vector<8x32xf32>, vector<8x32xf32>, vector<8x32xf32> -> vector<24x32xf32>
    %cst_99 = arith.constant dense<0.000000e+00> : vector<24x32xf32>
    %356 = tpu.matmul %355, %211, %cst_99 {dimension_numbers = #tpu.dot_dimension_numbers<[1], [0], [0], [1], [0, 0, 1, 1], [], []>} : vector<24x32xf32>, vector<32x32xf32>, vector<24x32xf32> -> vector<24x32xf32>
    %c403 = arith.constant 403 : index
    %c0_100 = arith.constant 0 : index
    %357 = vector.load %arg1[%c403, %c0_100] : memref<456x128xf32, #tpu.memory_space<vmem>>, vector<1x32xf32>
    %358 = vector.broadcast %357 : vector<1x32xf32> to vector<24x32xf32>
    %359 = arith.addf %356, %358 : vector<24x32xf32>
    %360 = math.tanh %359 : vector<24x32xf32>
    %c404 = arith.constant 404 : index
    %c0_101 = arith.constant 0 : index
    %361 = vector.load %arg1[%c404, %c0_101] : memref<456x128xf32, #tpu.memory_space<vmem>>, vector<1x32xf32>
    %362 = vector.broadcast %361 : vector<1x32xf32> to vector<24x32xf32>
    %363 = arith.mulf %360, %362 : vector<24x32xf32>
    %cst_102 = arith.constant dense<0.000000e+00> : vector<24xf32>
    %364 = vector.multi_reduction <add>, %363, %cst_102 [1] : vector<24x32xf32> to vector<24xf32>
    %365 = vector.shape_cast %364 : vector<24xf32> to vector<24x1xf32>
    %366 = vector.extract_strided_slice %365 {offsets = [0, 0], sizes = [8, 1], strides = [1, 1]} : vector<24x1xf32> to vector<8x1xf32>
    %367 = vector.extract_strided_slice %365 {offsets = [8, 0], sizes = [8, 1], strides = [1, 1]} : vector<24x1xf32> to vector<8x1xf32>
    %368 = vector.extract_strided_slice %365 {offsets = [16, 0], sizes = [8, 1], strides = [1, 1]} : vector<24x1xf32> to vector<8x1xf32>
    %369 = arith.maximumf %366, %367 : vector<8x1xf32>
    %370 = arith.maximumf %369, %368 : vector<8x1xf32>
    %371 = arith.subf %366, %370 : vector<8x1xf32>
    %372 = math.exp %371 : vector<8x1xf32>
    %373 = arith.subf %367, %370 : vector<8x1xf32>
    %374 = math.exp %373 : vector<8x1xf32>
    %375 = arith.subf %368, %370 : vector<8x1xf32>
    %376 = math.exp %375 : vector<8x1xf32>
    %377 = vector.broadcast %372 : vector<8x1xf32> to vector<8x32xf32>
    %378 = arith.mulf %377, %290 : vector<8x32xf32>
    %379 = vector.broadcast %374 : vector<8x1xf32> to vector<8x32xf32>
    %380 = arith.mulf %379, %329 : vector<8x32xf32>
    %381 = arith.addf %378, %380 : vector<8x32xf32>
    %382 = vector.broadcast %376 : vector<8x1xf32> to vector<8x32xf32>
    %383 = arith.mulf %382, %354 : vector<8x32xf32>
    %384 = arith.addf %381, %383 : vector<8x32xf32>
    %385 = arith.addf %372, %374 : vector<8x1xf32>
    %386 = arith.addf %385, %376 : vector<8x1xf32>
    %387 = vector.broadcast %386 : vector<8x1xf32> to vector<8x32xf32>
    %388 = arith.divf %384, %387 : vector<8x32xf32>
    %c412 = arith.constant 412 : index
    %c0_103 = arith.constant 0 : index
    %389 = vector.load %arg1[%c412, %c0_103] : memref<456x128xf32, #tpu.memory_space<vmem>>, vector<1x32xf32>
    %c413 = arith.constant 413 : index
    %c0_104 = arith.constant 0 : index
    %390 = vector.load %arg1[%c413, %c0_104] : memref<456x128xf32, #tpu.memory_space<vmem>>, vector<1x32xf32>
    %cst_105 = arith.constant dense<0.000000e+00> : vector<8xf32>
    %391 = vector.multi_reduction <add>, %388, %cst_105 [1] : vector<8x32xf32> to vector<8xf32>
    %392 = vector.shape_cast %391 : vector<8xf32> to vector<8x1xf32>
    %cst_106 = arith.constant 3.200000e+01 : f32
    %393 = vector.broadcast %cst_106 : f32 to vector<8x1xf32>
    %394 = arith.divf %392, %393 : vector<8x1xf32>
    %395 = vector.broadcast %394 : vector<8x1xf32> to vector<8x32xf32>
    %396 = arith.subf %388, %395 : vector<8x32xf32>
    %397 = arith.mulf %396, %396 : vector<8x32xf32>
    %cst_107 = arith.constant dense<0.000000e+00> : vector<8xf32>
    %398 = vector.multi_reduction <add>, %397, %cst_107 [1] : vector<8x32xf32> to vector<8xf32>
    %399 = vector.shape_cast %398 : vector<8xf32> to vector<8x1xf32>
    %cst_108 = arith.constant 3.200000e+01 : f32
    %400 = vector.broadcast %cst_108 : f32 to vector<8x1xf32>
    %401 = arith.divf %399, %400 : vector<8x1xf32>
    %402 = vector.broadcast %394 : vector<8x1xf32> to vector<8x32xf32>
    %403 = arith.subf %388, %402 : vector<8x32xf32>
    %cst_109 = arith.constant 9.99999974E-6 : f32
    %404 = vector.broadcast %cst_109 : f32 to vector<8x1xf32>
    %405 = arith.addf %401, %404 : vector<8x1xf32>
    %406 = math.rsqrt %405 : vector<8x1xf32>
    %407 = vector.broadcast %406 : vector<8x1xf32> to vector<8x32xf32>
    %408 = arith.mulf %403, %407 : vector<8x32xf32>
    %409 = vector.broadcast %389 : vector<1x32xf32> to vector<8x32xf32>
    %410 = arith.mulf %408, %409 : vector<8x32xf32>
    %411 = vector.broadcast %390 : vector<1x32xf32> to vector<8x32xf32>
    %412 = arith.addf %410, %411 : vector<8x32xf32>
    %c416 = arith.constant 416 : index
    %c0_110 = arith.constant 0 : index
    %413 = vector.load %arg1[%c416, %c0_110] : memref<456x128xf32, #tpu.memory_space<vmem>>, vector<32x32xf32>
    %cst_111 = arith.constant dense<0.000000e+00> : vector<8x32xf32>
    %414 = tpu.matmul %412, %413, %cst_111 {dimension_numbers = #tpu.dot_dimension_numbers<[1], [0], [0], [1], [0, 0, 1, 1], [], []>} : vector<8x32xf32>, vector<32x32xf32>, vector<8x32xf32> -> vector<8x32xf32>
    %c448 = arith.constant 448 : index
    %c0_112 = arith.constant 0 : index
    %415 = vector.load %arg1[%c448, %c0_112] : memref<456x128xf32, #tpu.memory_space<vmem>>, vector<1x32xf32>
    %416 = vector.broadcast %415 : vector<1x32xf32> to vector<8x32xf32>
    %417 = arith.addf %414, %416 : vector<8x32xf32>
    %418 = math.tanh %417 : vector<8x32xf32>
    %c449 = arith.constant 449 : index
    %c0_113 = arith.constant 0 : index
    %419 = vector.load %arg1[%c449, %c0_113] : memref<456x128xf32, #tpu.memory_space<vmem>>, vector<1x32xf32>
    %420 = vector.broadcast %419 : vector<1x32xf32> to vector<8x32xf32>
    %421 = arith.mulf %418, %420 : vector<8x32xf32>
    %cst_114 = arith.constant dense<0.000000e+00> : vector<8xf32>
    %422 = vector.multi_reduction <add>, %421, %cst_114 [1] : vector<8x32xf32> to vector<8xf32>
    %423 = vector.shape_cast %422 : vector<8xf32> to vector<8x1xf32>
    %cst_115 = arith.constant dense<0xFF800000> : vector<1xf32>
    %424 = vector.multi_reduction <maximumf>, %423, %cst_115 [0] : vector<8x1xf32> to vector<1xf32>
    %425 = vector.shape_cast %424 : vector<1xf32> to vector<1x1xf32>
    %426 = vector.broadcast %425 : vector<1x1xf32> to vector<8x1xf32>
    %427 = arith.subf %423, %426 : vector<8x1xf32>
    %428 = math.exp %427 : vector<8x1xf32>
    %429 = tpu.iota {dimensions = array<i32: 0>} : vector<2x8xi32>
    %430 = tpu.iota {dimensions = array<i32: 1>} : vector<2x8xi32>
    %c4_i32 = arith.constant 4 : i32
    %431 = vector.broadcast %c4_i32 : i32 to vector<2x8xi32>
    %432 = arith.muli %429, %431 : vector<2x8xi32>
    %433 = arith.subi %430, %432 : vector<2x8xi32>
    %c0_i32_116 = arith.constant 0 : i32
    %434 = vector.broadcast %c0_i32_116 : i32 to vector<2x8xi32>
    %435 = arith.cmpi sge, %433, %434 : vector<2x8xi32>
    %c4_i32_117 = arith.constant 4 : i32
    %436 = vector.broadcast %c4_i32_117 : i32 to vector<2x8xi32>
    %437 = arith.cmpi slt, %433, %436 : vector<2x8xi32>
    %438 = arith.andi %435, %437 : vector<2x8xi1>
    %439 = arith.extui %438 : vector<2x8xi1> to vector<2x8xi32>
    %440 = arith.sitofp %439 : vector<2x8xi32> to vector<2x8xf32>
    %441 = vector.broadcast %428 : vector<8x1xf32> to vector<8x32xf32>
    %442 = arith.mulf %441, %412 : vector<8x32xf32>
    %443 = tpu.concatenate %442, %428 in 1 : vector<8x32xf32>, vector<8x1xf32> -> vector<8x33xf32>
    %cst_118 = arith.constant dense<0.000000e+00> : vector<2x33xf32>
    %444 = tpu.matmul %440, %443, %cst_118 {dimension_numbers = #tpu.dot_dimension_numbers<[1], [0], [0], [1], [0, 0, 1, 1], [], []>} : vector<2x8xf32>, vector<8x33xf32>, vector<2x33xf32> -> vector<2x33xf32>
    %445 = vector.extract_strided_slice %444 {offsets = [0, 0], sizes = [2, 32], strides = [1, 1]} : vector<2x33xf32> to vector<2x32xf32>
    %446 = vector.extract_strided_slice %444 {offsets = [0, 32], sizes = [2, 1], strides = [1, 1]} : vector<2x33xf32> to vector<2x1xf32>
    %447 = vector.broadcast %446 : vector<2x1xf32> to vector<2x32xf32>
    %448 = arith.divf %445, %447 : vector<2x32xf32>
    %c450 = arith.constant 450 : index
    %c0_119 = arith.constant 0 : index
    %449 = vector.load %arg1[%c450, %c0_119] : memref<456x128xf32, #tpu.memory_space<vmem>>, vector<1x32xf32>
    %c451 = arith.constant 451 : index
    %c0_120 = arith.constant 0 : index
    %450 = vector.load %arg1[%c451, %c0_120] : memref<456x128xf32, #tpu.memory_space<vmem>>, vector<1x32xf32>
    %cst_121 = arith.constant dense<0.000000e+00> : vector<2xf32>
    %451 = vector.multi_reduction <add>, %448, %cst_121 [1] : vector<2x32xf32> to vector<2xf32>
    %452 = vector.shape_cast %451 : vector<2xf32> to vector<2x1xf32>
    %cst_122 = arith.constant 3.200000e+01 : f32
    %453 = vector.broadcast %cst_122 : f32 to vector<2x1xf32>
    %454 = arith.divf %452, %453 : vector<2x1xf32>
    %455 = vector.broadcast %454 : vector<2x1xf32> to vector<2x32xf32>
    %456 = arith.subf %448, %455 : vector<2x32xf32>
    %457 = arith.mulf %456, %456 : vector<2x32xf32>
    %cst_123 = arith.constant dense<0.000000e+00> : vector<2xf32>
    %458 = vector.multi_reduction <add>, %457, %cst_123 [1] : vector<2x32xf32> to vector<2xf32>
    %459 = vector.shape_cast %458 : vector<2xf32> to vector<2x1xf32>
    %cst_124 = arith.constant 3.200000e+01 : f32
    %460 = vector.broadcast %cst_124 : f32 to vector<2x1xf32>
    %461 = arith.divf %459, %460 : vector<2x1xf32>
    %462 = vector.broadcast %454 : vector<2x1xf32> to vector<2x32xf32>
    %463 = arith.subf %448, %462 : vector<2x32xf32>
    %cst_125 = arith.constant 9.99999974E-6 : f32
    %464 = vector.broadcast %cst_125 : f32 to vector<2x1xf32>
    %465 = arith.addf %461, %464 : vector<2x1xf32>
    %466 = math.rsqrt %465 : vector<2x1xf32>
    %467 = vector.broadcast %466 : vector<2x1xf32> to vector<2x32xf32>
    %468 = arith.mulf %463, %467 : vector<2x32xf32>
    %469 = vector.broadcast %449 : vector<1x32xf32> to vector<2x32xf32>
    %470 = arith.mulf %468, %469 : vector<2x32xf32>
    %471 = vector.broadcast %450 : vector<1x32xf32> to vector<2x32xf32>
    %472 = arith.addf %470, %471 : vector<2x32xf32>
    %473 = tpu.iota {dimensions = array<i32: 0>} : vector<6x2xi32>
    %474 = tpu.iota {dimensions = array<i32: 1>} : vector<6x2xi32>
    %c3_i32 = arith.constant 3 : i32
    %475 = vector.broadcast %c3_i32 : i32 to vector<6x2xi32>
    %476 = arith.muli %474, %475 : vector<6x2xi32>
    %477 = arith.subi %473, %476 : vector<6x2xi32>
    %c0_i32_126 = arith.constant 0 : i32
    %478 = vector.broadcast %c0_i32_126 : i32 to vector<6x2xi32>
    %479 = arith.cmpi sge, %477, %478 : vector<6x2xi32>
    %c3_i32_127 = arith.constant 3 : i32
    %480 = vector.broadcast %c3_i32_127 : i32 to vector<6x2xi32>
    %481 = arith.cmpi slt, %477, %480 : vector<6x2xi32>
    %482 = arith.andi %479, %481 : vector<6x2xi1>
    %483 = arith.extui %482 : vector<6x2xi1> to vector<6x2xi32>
    %484 = arith.sitofp %483 : vector<6x2xi32> to vector<6x2xf32>
    %cst_128 = arith.constant dense<0.000000e+00> : vector<6x32xf32>
    %485 = tpu.matmul %484, %472, %cst_128 {dimension_numbers = #tpu.dot_dimension_numbers<[1], [0], [0], [1], [0, 0, 1, 1], [], []>} : vector<6x2xf32>, vector<2x32xf32>, vector<6x32xf32> -> vector<6x32xf32>
    %486 = arith.mulf %206, %485 : vector<6x32xf32>
    %cst_129 = arith.constant dense<0.000000e+00> : vector<6xf32>
    %487 = vector.multi_reduction <add>, %486, %cst_129 [1] : vector<6x32xf32> to vector<6xf32>
    %488 = vector.shape_cast %487 : vector<6xf32> to vector<6x1xf32>
    %489 = vector.shape_cast %488 : vector<6x1xf32> to vector<6x1xf32>
    %490 = vector.broadcast %489 : vector<6x1xf32> to vector<6x32xf32>
    %cst_130 = arith.constant 0.000000e+00 : f32
    %491 = vector.broadcast %cst_130 : f32 to vector<6x64xf32>
    %492 = tpu.concatenate %206, %490, %491 in 1 : vector<6x32xf32>, vector<6x32xf32>, vector<6x64xf32> -> vector<6x128xf32>
    %cst_131 = arith.constant 0.000000e+00 : f32
    %493 = vector.broadcast %cst_131 : f32 to vector<8x96xf32>
    %494 = tpu.concatenate %412, %493 in 1 : vector<8x32xf32>, vector<8x96xf32> -> vector<8x128xf32>
    %cst_132 = arith.constant 0.000000e+00 : f32
    %495 = vector.broadcast %cst_132 : f32 to vector<2x128xf32>
    %496 = tpu.concatenate %492, %494, %495 in 0 : vector<6x128xf32>, vector<8x128xf32>, vector<2x128xf32> -> vector<16x128xf32>
    %c0_133 = arith.constant 0 : index
    %c0_134 = arith.constant 0 : index
    %497 = vector.load %arg4[%c0_133, %c0_134] : memref<16x128xf32, #tpu.memory_space<vmem>>, vector<16x128xf32>
    tpu.vector_store %arg4[%c0_133, %c0_134], %496 {strides = array<i32>} : memref<16x128xf32, #tpu.memory_space<vmem>>, vector<16x128xf32>,
    return
  }
  func.func @transform_0(%arg0: i32) -> (i32, i32) {
    %c0_i32 = arith.constant 0 : i32
    %c0_i32_0 = arith.constant 0 : i32
    %c0_i32_1 = arith.constant 0 : i32
    return %c0_i32, %c0_i32_0 : i32, i32
  }
  func.func @transform_1(%arg0: i32) -> (i32, i32) {
    %c0_i32 = arith.constant 0 : i32
    %c0_i32_0 = arith.constant 0 : i32
    %c0_i32_1 = arith.constant 0 : i32
    return %c0_i32, %c0_i32_0 : i32, i32
  }
  func.func @transform_2(%arg0: i32) -> (i32, i32) {
    %c0_i32 = arith.constant 0 : i32
    %c0_i32_0 = arith.constant 0 : i32
    %c0_i32_1 = arith.constant 0 : i32
    return %c0_i32, %c0_i32_0 : i32, i32
  }
  func.func @transform_3(%arg0: i32) -> (i32, i32) {
    %c0_i32 = arith.constant 0 : i32
    %c0_i32_0 = arith.constant 0 : i32
    %c0_i32_1 = arith.constant 0 : i32
    return %c0_i32, %c0_i32_0 : i32, i32
  }
}

</mosaic_0001>

<llo_original>
// kernel: squeeze.1
$region0: #{squeeze.1}
  %s0 = inlined_call_operand.vmem [shape: f32[6], index: 0, kind: input, shape index: {}]
  %s1 = inlined_call_operand.hbm [shape: f32[2,3], index: 1, kind: output, shape index: {}]
  $region1: #{squeeze.1} parent=0
    #allocation0 [shape = 'u8[1024]{0}', space=vmem, size = 0x400, scoped, tag = 'operand span for operand 1']
    #allocation1 [shape = 's32[1]{0}', space=sflag, size = 0x4, scoped, tag = 'scoped memory for squeeze.1']
    #allocation2 [shape = 'u8[4096]{0}', space=vmem, size = 0x1000, scoped, tag = 'scoped mem for output reshape']
    #allocation3 [shape = 'u8[4096]{0}', space=vmem, size = 0x1000, scoped, tag = 'scoped mem for input reshape']
    %2 = vsyncpa [#allocation1], 0
    %s4 = sshll.u32 1, 1
    %s5 = ssub.s32 %s4, 1
    %v6 = vld [vmem:[%s0] sm:%s5]
    %7 = vst [vmem:[#allocation3] sm:%s5] %v6
    %v8 = vld [vmem:[#allocation3] sm:$0x1]
    %vm9 = vcmask 23552
    %10 = vst.msk [vmem:[#allocation2] sm:$0x1] %vm9, %v8
    %v11 = vld [vmem:[#allocation3] sm:$0x1]
    %12 = vrot.lane.b32.xlu0 %v11, 125
    %v13 = vpop.permute.xlu0 %12
    %vm14 = vcmask 23552
    %s15 = scalar_lea.vmem [#allocation2], 1
    %16 = vst.msk [vmem:[%s15] sm:$0x1] %vm14, %v13
    %s18 = sshll.u32 1, 2
    %s19 = ssub.s32 %s18, 1
    %v21 = vld [vmem:[#allocation2] sm:%s19]
    %s22 = sshll.u32 1, 2
    %s23 = ssub.s32 %s22, 1
    %24 = vst [vmem:[#allocation0] sm:%s23] %v21
    %s26 = ssub.s32 32, 32
    %27 = vsyncadd [#allocation1], %s26
    %s29 = sshll.u32 [#allocation0], 4
    %s30 = int_to_ptr.vmem [resolvable:$true] %s29
    %32 = dma.vmem_to_hbm [thread:$0]  %s30, 32, %s1, [#allocation1]
    %33 = dma.done [#allocation1], 32
    %34 = vsyncpa [#allocation1], 1

// kernel: naml_forward.1
$region0: #{naml_forward.1}
  #allocation0 [shape = 'u32[]', space=smem, size = 0x4, offset = 0x4, fixed_abs, tag = 'smem constant byte address 0x4 - core index']
  #allocation1 [shape = 'u32[144,128]{1,0:T(1,128)}', space=vmem, size = 0x12000, scoped, tag = 'internal scratch']
  %s0 = inlined_call_operand.hbm [shape: f32[456,128], index: 0, kind: input, shape index: {}]
  %s1 = inlined_call_operand.vmem [shape: f32[112,32], index: 1, kind: input, shape index: {}]
  %s2 = inlined_call_operand.vmem [shape: s32[14,2], index: 2, kind: input, shape index: {}]
  %s3 = inlined_call_operand.vmem [shape: f32[16,128], index: 3, kind: output, shape index: {}]
  %s4 = sld [smem:[#allocation0]]
  $region26: #{naml_forward.1} parent=0
    _
  %s6 = ssub.s32 1, %s4
  %s7 = scalar_select 0, %s6, %s4
  $region1: #{naml_forward.1} parent=0
    #allocation2 [shape = 'u8[233472]{0}', space=vmem, size = 0x39000, scoped, tag = 'input window, operand 0, single buffered']
    #allocation3 [shape = 's32[1]{0}', space=sflag, size = 0x4, scoped, tag = 'scoped memory for naml_forward.1']
    %8 = vsyncpa [#allocation3], 0
    // Predicated region
    $region2: #{naml_forward.1} parent=1 // pred_check
      _
    $region3: #{naml_forward.1} parent=1 // pred_check_branch
      %10 = sbr.rel (0) target = $region5
    $region4: #{naml_forward.1} parent=1 // pred_region
      %s12 = ssub.s32 7296, 7296
      %13 = vsyncadd [#allocation3], %s12
      %s14 = sshll.u32 [#allocation2], 4
      %s15 = int_to_ptr.vmem [resolvable:$true] %s14
      %20 = dma.hbm_to_vmem [thread:$0]  %s0, 7296, %s15, [#allocation3], 128, 128, 8
    $region5: #{naml_forward.1} parent=1 // pred_fallthru
      _
    // Predicated region
    $region6: #{naml_forward.1} parent=1 // pred_check
      _
    $region7: #{naml_forward.1} parent=1 // pred_check_branch
      %22 = sbr.rel (0) target = $region9
    $region8: #{naml_forward.1} parent=1 // pred_region
      _
    $region9: #{naml_forward.1} parent=1 // pred_fallthru
      _
    // Predicated region
    $region10: #{naml_forward.1} parent=1 // pred_check
      _
    $region11: #{naml_forward.1} parent=1 // pred_check_branch
      %24 = sbr.rel (0) target = $region13
    $region12: #{naml_forward.1} parent=1 // pred_region
      _
    $region13: #{naml_forward.1} parent=1 // pred_fallthru
      _
    // Predicated region
    $region14: #{naml_forward.1} parent=1 // pred_check
      _
    $region15: #{naml_forward.1} parent=1 // pred_check_branch
      %26 = sbr.rel (0) target = $region17
    $region16: #{naml_forward.1} parent=1 // pred_region
      %27 = dma.done [#allocation3], 7296
    $region17: #{naml_forward.1} parent=1 // pred_fallthru
      _
    %v28 = vld [vmem:[%s2] sm:$0xff]
    %v29 = vld [vmem:[%s2 + $0x8] sm:$0x3f]
    %v30 = vld [vmem:[%s1] sm:$0xff]
    %v31 = vld [vmem:[%s1 + $0x8] sm:$0xff]
    %v32 = vld [vmem:[%s1 + $0x10] sm:$0xff]
    %v33 = vld [vmem:[%s1 + $0x18] sm:$0xff]
    %v34 = vld [vmem:[%s1 + $0x20] sm:$0xff]
    %v35 = vld [vmem:[%s1 + $0x28] sm:$0xff]
    %v36 = vld [vmem:[#allocation2] sm:$0xff]
    %v37 = vld [vmem:[#allocation2 + $0x8] sm:$0xff]
    %v38 = vld [vmem:[#allocation2 + $0x10] sm:$0xff]
    %v39 = vld [vmem:[#allocation2 + $0x18] sm:$0xff]
    %v40 = vld [vmem:[#allocation2 + $0x20] sm:$0xff]
    %v41 = vld [vmem:[#allocation2 + $0x28] sm:$0xff]
    %v42 = vld [vmem:[#allocation2 + $0x30] sm:$0xff]
    %v43 = vld [vmem:[#allocation2 + $0x38] sm:$0xff]
    %v44 = vld [vmem:[#allocation2 + $0x40] sm:$0xff]
    %v45 = vld [vmem:[#allocation2 + $0x48] sm:$0xff]
    %v46 = vld [vmem:[#allocation2 + $0x50] sm:$0xff]
    %v47 = vld [vmem:[#allocation2 + $0x58] sm:$0xff]
    %v48 = vld [vmem:[#allocation2 + $0x60] sm:$0xff]
    %v49 = vld [vmem:[#allocation2 + $0x68] sm:$0xff]
    %v50 = vld [vmem:[#allocation2 + $0x70] sm:$0xff]
    %v51 = vld [vmem:[#allocation2 + $0x78] sm:$0xff]
    %v52 = vld [vmem:[#allocation2 + $0x80] sm:$0xff]
    %v53 = vld [vmem:[#allocation2 + $0x88] sm:$0xff]
    %v54 = vld [vmem:[#allocation2 + $0x90] sm:$0xff]
    %v55 = vld [vmem:[#allocation2 + $0x98] sm:$0xff]
    %v56 = vld [vmem:[#allocation2 + $0xa0] sm:$0xff]
    %v57 = vld [vmem:[#allocation2 + $0xa8] sm:$0xff]
    %v58 = vld [vmem:[#allocation2 + $0xb0] sm:$0xff]
    %v59 = vld [vmem:[#allocation2 + $0xb8] sm:$0xff]
    %v60 = vlaneseq
    %v61 = vshrl.u32 %v60, 7
    %vm62 = vcmp.eq.s32.totalorder %v61, 0
    %v63 = vrot.slane %v30, 7
    %v64 = vrot.slane %v31, 7
    %v65 = vrot.slane %v32, 7
    %v66 = vrot.slane %v33, 7
    %v67 = vrot.slane %v34, 7
    %v68 = vrot.slane %v35, 7
    %vm69 = vcmp.lt.s32.totalorder %v61, 1
    %v70 = vsel %vm69, %v67, %v68
    %v71 = vsel %vm69, %v66, %v67
    %v72 = vsel %vm69, %v65, %v66
    %v73 = vsel %vm69, %v64, %v65
    %v74 = vsel %vm69, %v63, %v64
    %v75 = vsel %vm69, %v68, %v63
    %v76 = vsel %vm62, 0.0, %v75
    %v77 = vsel %vm62, 0.0, %v74
    %v78 = vsel %vm62, 0.0, %v73
    %v79 = vsel %vm62, 0.0, %v72
    %v80 = vsel %vm62, 0.0, %v71
    %v81 = vsel %vm62, 0.0, %v70
    %vm82 = vcmp.eq.s32.totalorder %v61, 7
    %v83 = vrot.slane %v30, 1
    %v84 = vrot.slane %v31, 1
    %v85 = vrot.slane %v32, 1
    %v86 = vrot.slane %v33, 1
    %v87 = vrot.slane %v34, 1
    %v88 = vrot.slane %v35, 1
    %vm89 = vcmp.lt.s32.totalorder %v61, 7
    %v90 = vsel %vm89, %v87, %v88
    %v91 = vsel %vm89, %v86, %v87
    %v92 = vsel %vm89, %v85, %v86
    %v93 = vsel %vm89, %v84, %v85
    %v94 = vsel %vm89, %v83, %v84
    %v95 = vsel %vm89, %v88, %v83
    %v96 = vsel %vm82, 0.0, %v94
    %v97 = vsel %vm82, 0.0, %v93
    %v98 = vsel %vm82, 0.0, %v92
    %v99 = vsel %vm82, 0.0, %v91
    %v100 = vsel %vm82, 0.0, %v90
    %v101 = vsel %vm82, 0.0, %v95
    %108 = vrot.lane.b32.xlu0 %v30, 32
    %v109 = vpop.permute.xlu0 %108
    %110 = vrot.lane.b32.xlu0 %v31, 32
    %v111 = vpop.permute.xlu0 %110
    %112 = vrot.lane.b32.xlu0 %v32, 32
    %v113 = vpop.permute.xlu0 %112
    %114 = vrot.lane.b32.xlu0 %v33, 32
    %v115 = vpop.permute.xlu0 %114
    %116 = vrot.lane.b32.xlu0 %v34, 32
    %v117 = vpop.permute.xlu0 %116
    %118 = vrot.lane.b32.xlu0 %v35, 32
    %v119 = vpop.permute.xlu0 %118
    %132 = vrot.lane.b32.xlu0 %v96, 64
    %v133 = vpop.permute.xlu0 %132
    %134 = vrot.lane.b32.xlu0 %v97, 64
    %v135 = vpop.permute.xlu0 %134
    %136 = vrot.lane.b32.xlu0 %v98, 64
    %v137 = vpop.permute.xlu0 %136
    %138 = vrot.lane.b32.xlu0 %v99, 64
    %v139 = vpop.permute.xlu0 %138
    %140 = vrot.lane.b32.xlu0 %v100, 64
    %v141 = vpop.permute.xlu0 %140
    %142 = vrot.lane.b32.xlu0 %v101, 64
    %v143 = vpop.permute.xlu0 %142
    %vm150 = vcmask 261120
    %v151 = vsel %vm150, %v76, %v109
    %v152 = vsel %vm150, %v77, %v111
    %v153 = vsel %vm150, %v78, %v113
    %v154 = vsel %vm150, %v79, %v115
    %v155 = vsel %vm150, %v80, %v117
    %v156 = vsel %vm150, %v81, %v119
    %vm157 = vcmask 523264
    %v158 = vsel %vm157, %v151, %v133
    %v159 = vsel %vm157, %v152, %v135
    %v160 = vsel %vm157, %v153, %v137
    %v161 = vsel %vm157, %v154, %v139
    %v162 = vsel %vm157, %v155, %v141
    %v163 = vsel %vm157, %v156, %v143
    %v164 = vld [vmem:[#allocation2 + $0xc0] sm:$0x1]
    %v165 = vlaneseq
    %v166 = vshrl.u32 %v165, 7
    %v167 = vsub.s32 0, %v166
    %v168 = vrot.slane %v164, %v167
    %vm169 = vcmask 785408
    %v171 = vsel %vm169, %v158, 0
    %v174 = vsel %vm169, %v159, 0
    %v177 = vsel %vm169, %v160, 0
    %v180 = vsel %vm169, %v161, 0
    %v183 = vsel %vm169, %v162, 0
    %v186 = vsel %vm169, %v163, 0
    %188 = vmatprep.subr.mxu0 0.0
    %189 = vmatpush1.msra.mxu0 0.0
    %190 = vmatprep.subr.mxu0 0.0
    %191 = vmatpush1.msra.mxu0 0.0
    %192 = vmatprep.subr.mxu0 0.0
    %193 = vmatpush1.msra.mxu0 0.0
    %194 = vmatprep.subr.mxu0 0.0
    %195 = vmatpush1.msra.mxu0 0.0
    %196 = vmatprep.subr.mxu0 0.0
    %197 = vmatpush1.msra.mxu0 %v47
    %198 = vmatprep.subr.mxu0 0.0
    %199 = vmatpush1.msra.mxu0 %v46
    %200 = vmatprep.subr.mxu0 0.0
    %201 = vmatpush1.msra.mxu0 %v45
    %202 = vmatprep.subr.mxu0 0.0
    %203 = vmatpush1.msra.mxu0 %v44
    %204 = vmatprep.subr.mxu0 0.0
    %205 = vmatpush1.msra.mxu0 %v43
    %206 = vmatprep.subr.mxu0 0.0
    %207 = vmatpush1.msra.mxu0 %v42
    %208 = vmatprep.subr.mxu0 0.0
    %209 = vmatpush1.msra.mxu0 %v41
    %210 = vmatprep.subr.mxu0 0.0
    %211 = vmatpush1.msra.mxu0 %v40
    %212 = vmatprep.subr.mxu0 0.0
    %213 = vmatpush1.msra.mxu0 %v39
    %214 = vmatprep.subr.mxu0 0.0
    %215 = vmatpush1.msra.mxu0 %v38
    %216 = vmatprep.subr.mxu0 0.0
    %217 = vmatpush1.msra.mxu0 %v37
    %218 = vmatprep.subr.mxu0 0.0
    %219 = vmatpush1.msra.mxu0 %v36
    %220 = vmatprep.subr.mxu0 0.0
    %221 = vmatpush2.msra.mxu0 0.0
    %222 = vmatprep.subr.mxu0 0.0
    %223 = vmatpush2.msra.mxu0 0.0
    %224 = vmatprep.subr.mxu0 0.0
    %225 = vmatpush2.msra.mxu0 0.0
    %226 = vmatprep.subr.mxu0 0.0
    %227 = vmatpush2.msra.mxu0 0.0
    %228 = vmatprep.subr.mxu0 0.0
    %229 = vmatpush2.msra.mxu0 0.0
    %230 = vmatprep.subr.mxu0 0.0
    %231 = vmatpush2.msra.mxu0 0.0
    %232 = vmatprep.subr.mxu0 0.0
    %233 = vmatpush2.msra.mxu0 0.0
    %234 = vmatprep.subr.mxu0 0.0
    %235 = vmatpush2.msra.mxu0 0.0
    %236 = vmatprep.subr.mxu0 0.0
    %237 = vmatpush2.msra.mxu0 0.0
    %238 = vmatprep.subr.mxu0 0.0
    %239 = vmatpush2.msra.mxu0 0.0
    %240 = vmatprep.subr.mxu0 0.0
    %241 = vmatpush2.msra.mxu0 0.0
    %242 = vmatprep.subr.mxu0 0.0
    %243 = vmatpush2.msra.mxu0 0.0
    %244 = vmatprep.subr.mxu0 0.0
    %245 = vmatpush2.msra.mxu0 0.0
    %246 = vmatprep.subr.mxu0 0.0
    %247 = vmatpush2.msra.mxu0 0.0
    %248 = vmatprep.subr.mxu0 0.0
    %249 = vmatpush2.msra.mxu0 0.0
    %250 = vmatprep.subr.mxu0 0.0
    %251 = vmatpush2.msra.mxu0 0.0
    %252 = vmatprep.mubr.f32.mxu0 0.0
    %253 = vmatmul.mubr.f32.gmra.mxu0 %v171
    %v254 = vpop.f32.mrf.mxu0
    %v255 = vadd.f32 %v168, %v254
    %v256 = vpop.f32.mrf.mxu0
    %257 = vmatprep.mubr.f32.mxu0 0.0
    %258 = vmatmul.mubr.f32.gmra.mxu0 %v174
    %v259 = vpop.f32.mrf.mxu0
    %v260 = vadd.f32 %v168, %v259
    %v261 = vpop.f32.mrf.mxu0
    %262 = vmatprep.mubr.f32.mxu0 0.0
    %263 = vmatmul.mubr.f32.gmra.mxu0 %v177
    %v264 = vpop.f32.mrf.mxu0
    %v265 = vadd.f32 %v168, %v264
    %v266 = vpop.f32.mrf.mxu0
    %267 = vmatprep.mubr.f32.mxu0 0.0
    %268 = vmatmul.mubr.f32.gmra.mxu0 %v180
    %v269 = vpop.f32.mrf.mxu0
    %v270 = vadd.f32 %v168, %v269
    %v271 = vpop.f32.mrf.mxu0
    %272 = vmatprep.mubr.f32.mxu0 0.0
    %273 = vmatmul.mubr.f32.gmra.mxu0 %v183
    %v274 = vpop.f32.mrf.mxu0
    %v275 = vadd.f32 %v168, %v274
    %v276 = vpop.f32.mrf.mxu0
    %277 = vmatprep.mubr.f32.mxu0 0.0
    %278 = vmatmul.mubr.f32.gmra.mxu0 %v186
    %v279 = vpop.f32.mrf.mxu0
    %v280 = vadd.f32 %v168, %v279
    %v281 = vpop.f32.mrf.mxu0
    %282 = vdwg.mxu0
    %v283 = vmax.f32 %v255, 0.0
    %v284 = vmax.f32 %v260, 0.0
    %v285 = vmax.f32 %v265, 0.0
    %v286 = vmax.f32 %v270, 0.0
    %v287 = vmax.f32 %v275, 0.0
    %v288 = vmax.f32 %v280, 0.0
    %v289 = vld [vmem:[#allocation2 + $0xc1] sm:$0x1]
    %v290 = vlaneseq
    %v291 = vshrl.u32 %v290, 7
    %v292 = vsub.s32 0, %v291
    %v293 = vrot.slane %v289, %v292
    %v295 = vsel %vm150, %v283, 0
    %v298 = vsel %vm150, %v284, 0
    %v301 = vsel %vm150, %v285, 0
    %v304 = vsel %vm150, %v286, 0
    %v307 = vsel %vm150, %v287, 0
    %v310 = vsel %vm150, %v288, 0
    %312 = vmatprep.subr.mxu0 0.0
    %313 = vmatpush1.msra.mxu0 0.0
    %314 = vmatprep.subr.mxu0 0.0
    %315 = vmatpush1.msra.mxu0 0.0
    %316 = vmatprep.subr.mxu0 0.0
    %317 = vmatpush1.msra.mxu0 0.0
    %318 = vmatprep.subr.mxu0 0.0
    %319 = vmatpush1.msra.mxu0 0.0
    %320 = vmatprep.subr.mxu0 0.0
    %321 = vmatpush1.msra.mxu0 0.0
    %322 = vmatprep.subr.mxu0 0.0
    %323 = vmatpush1.msra.mxu0 0.0
    %324 = vmatprep.subr.mxu0 0.0
    %325 = vmatpush1.msra.mxu0 0.0
    %326 = vmatprep.subr.mxu0 0.0
    %327 = vmatpush1.msra.mxu0 0.0
    %328 = vmatprep.subr.mxu0 0.0
    %329 = vmatpush1.msra.mxu0 0.0
    %330 = vmatprep.subr.mxu0 0.0
    %331 = vmatpush1.msra.mxu0 0.0
    %332 = vmatprep.subr.mxu0 0.0
    %333 = vmatpush1.msra.mxu0 0.0
    %334 = vmatprep.subr.mxu0 0.0
    %335 = vmatpush1.msra.mxu0 0.0
    %336 = vmatprep.subr.mxu0 0.0
    %337 = vmatpush1.msra.mxu0 %v51
    %338 = vmatprep.subr.mxu0 0.0
    %339 = vmatpush1.msra.mxu0 %v50
    %340 = vmatprep.subr.mxu0 0.0
    %341 = vmatpush1.msra.mxu0 %v49
    %342 = vmatprep.subr.mxu0 0.0
    %343 = vmatpush1.msra.mxu0 %v48
    %344 = vmatprep.subr.mxu0 0.0
    %345 = vmatpush2.msra.mxu0 0.0
    %346 = vmatprep.subr.mxu0 0.0
    %347 = vmatpush2.msra.mxu0 0.0
    %348 = vmatprep.subr.mxu0 0.0
    %349 = vmatpush2.msra.mxu0 0.0
    %350 = vmatprep.subr.mxu0 0.0
    %351 = vmatpush2.msra.mxu0 0.0
    %352 = vmatprep.subr.mxu0 0.0
    %353 = vmatpush2.msra.mxu0 0.0
    %354 = vmatprep.subr.mxu0 0.0
    %355 = vmatpush2.msra.mxu0 0.0
    %356 = vmatprep.subr.mxu0 0.0
    %357 = vmatpush2.msra.mxu0 0.0
    %358 = vmatprep.subr.mxu0 0.0
    %359 = vmatpush2.msra.mxu0 0.0
    %360 = vmatprep.subr.mxu0 0.0
    %361 = vmatpush2.msra.mxu0 0.0
    %362 = vmatprep.subr.mxu0 0.0
    %363 = vmatpush2.msra.mxu0 0.0
    %364 = vmatprep.subr.mxu0 0.0
    %365 = vmatpush2.msra.mxu0 0.0
    %366 = vmatprep.subr.mxu0 0.0
    %367 = vmatpush2.msra.mxu0 0.0
    %368 = vmatprep.subr.mxu0 0.0
    %369 = vmatpush2.msra.mxu0 0.0
    %370 = vmatprep.subr.mxu0 0.0
    %371 = vmatpush2.msra.mxu0 0.0
    %372 = vmatprep.subr.mxu0 0.0
    %373 = vmatpush2.msra.mxu0 0.0
    %374 = vmatprep.subr.mxu0 0.0
    %375 = vmatpush2.msra.mxu0 0.0
    %376 = vmatprep.mubr.f32.mxu0 0.0
    %377 = vmatmul.mubr.f32.gmra.mxu0 %v295
    %v378 = vpop.f32.mrf.mxu0
    %v379 = vadd.f32 %v293, %v378
    %v380 = vpop.f32.mrf.mxu0
    %381 = vmatprep.mubr.f32.mxu0 0.0
    %382 = vmatmul.mubr.f32.gmra.mxu0 %v298
    %v383 = vpop.f32.mrf.mxu0
    %v384 = vadd.f32 %v293, %v383
    %v385 = vpop.f32.mrf.mxu0
    %386 = vmatprep.mubr.f32.mxu0 0.0
    %387 = vmatmul.mubr.f32.gmra.mxu0 %v301
    %v388 = vpop.f32.mrf.mxu0
    %v389 = vadd.f32 %v293, %v388
    %v390 = vpop.f32.mrf.mxu0
    %391 = vmatprep.mubr.f32.mxu0 0.0
    %392 = vmatmul.mubr.f32.gmra.mxu0 %v304
    %v393 = vpop.f32.mrf.mxu0
    %v394 = vadd.f32 %v293, %v393
    %v395 = vpop.f32.mrf.mxu0
    %396 = vmatprep.mubr.f32.mxu0 0.0
    %397 = vmatmul.mubr.f32.gmra.mxu0 %v307
    %v398 = vpop.f32.mrf.mxu0
    %v399 = vadd.f32 %v293, %v398
    %v400 = vpop.f32.mrf.mxu0
    %401 = vmatprep.mubr.f32.mxu0 0.0
    %402 = vmatmul.mubr.f32.gmra.mxu0 %v310
    %v403 = vpop.f32.mrf.mxu0
    %v404 = vadd.f32 %v293, %v403
    %v405 = vpop.f32.mrf.mxu0
    %406 = vdwg.mxu0
    %v407 = vtanh.pop %v379
    %v408 = vtanh.pop %v384
    %v409 = vtanh.pop %v389
    %v410 = vtanh.pop %v394
    %v411 = vtanh.pop %v399
    %v412 = vtanh.pop %v404
    %v413 = vld [vmem:[#allocation2 + $0xc2] sm:$0x1]
    %v414 = vlaneseq
    %v415 = vshrl.u32 %v414, 7
    %v416 = vsub.s32 0, %v415
    %v417 = vrot.slane %v413, %v416
    %v418 = vmul.f32 %v407, %v417
    %v419 = vmul.f32 %v408, %v417
    %v420 = vmul.f32 %v409, %v417
    %v421 = vmul.f32 %v410, %v417
    %v422 = vmul.f32 %v411, %v417
    %v423 = vmul.f32 %v412, %v417
    %v424 = vsel %vm150, %v418, 0.0
    %425 = vadd.xlane.f32.xlu0 %v424
    %v426 = vpop.xlane.xlu0 %425
    %v427 = vsel %vm150, %v419, 0.0
    %428 = vadd.xlane.f32.xlu0 %v427
    %v429 = vpop.xlane.xlu0 %428
    %v430 = vsel %vm150, %v420, 0.0
    %431 = vadd.xlane.f32.xlu0 %v430
    %v432 = vpop.xlane.xlu0 %431
    %v433 = vsel %vm150, %v421, 0.0
    %434 = vadd.xlane.f32.xlu0 %v433
    %v435 = vpop.xlane.xlu0 %434
    %v436 = vsel %vm150, %v422, 0.0
    %437 = vadd.xlane.f32.xlu0 %v436
    %v438 = vpop.xlane.xlu0 %437
    %v439 = vsel %vm150, %v423, 0.0
    %440 = vadd.xlane.f32.xlu0 %v439
    %v441 = vpop.xlane.xlu0 %440
    %v442 = vmax.f32 %v426, %v438
    %v443 = vmax.f32 %v429, %v441
    %v444 = vmax.f32 %v442, %v443
    %v445 = vmax.f32 %v432, %v435
    %v446 = vmax.f32 %v444, %v445
    %v447 = vrot.slane %v446, 4
    %v448 = vmax.f32 %v446, %v447
    %v449 = vrot.slane %v448, 2
    %v450 = vmax.f32 %v448, %v449
    %v451 = vrot.slane %v450, 1
    %v452 = vmax.f32 %v450, %v451
    %v453 = vsub.f32 %v426, %v452
    %v454 = vsub.f32 %v429, %v452
    %v455 = vsub.f32 %v432, %v452
    %v456 = vsub.f32 %v435, %v452
    %v457 = vsub.f32 %v438, %v452
    %v458 = vsub.f32 %v441, %v452
    %v459 = vmul.f32 %v453, 1.442695
    %v460 = vpow.pop %v459
    %v461 = vmul.f32 %v454, 1.442695
    %v462 = vpow.pop %v461
    %v463 = vmul.f32 %v455, 1.442695
    %v464 = vpow.pop %v463
    %v465 = vmul.f32 %v456, 1.442695
    %v466 = vpow.pop %v465
    %v467 = vmul.f32 %v457, 1.442695
    %v468 = vpow.pop %v467
    %v469 = vmul.f32 %v458, 1.442695
    %v470 = vpow.pop %v469
    %v471 = vlaneseq
    %v472 = vand.u32 %v471, 127
    %v473 = vmul.u32 %v61, 8
    %v474 = vsub.s32 %v472, %v473
    %vm475 = vcmp.ge.s32.totalorder %v474, 0
    %vm476 = vcmp.lt.s32.totalorder %v474, 8
    %vm477 = vmand %vm475, %vm476
    %v478 = vsel %vm477, 1, 0
    %v479 = vcvt.s32.f32 %v478
    %v480 = vmul.f32 %v460, %v283
    %v481 = vmul.f32 %v462, %v284
    %v482 = vmul.f32 %v464, %v285
    %v483 = vmul.f32 %v466, %v286
    %v484 = vmul.f32 %v468, %v287
    %v485 = vmul.f32 %v470, %v288
    %v486 = vsel %vm150, %v480, %v460
    %v487 = vsel %vm150, %v481, %v462
    %v488 = vsel %vm150, %v482, %v464
    %v489 = vsel %vm150, %v483, %v466
    %v490 = vsel %vm150, %v484, %v468
    %v491 = vsel %vm150, %v485, %v470
    %vm492 = vcmask 392192
    %v494 = vsel %vm492, %v479, 0
    %496 = vmatprep.subr.mxu0 0.0
    %497 = vmatpush1.msra.mxu0 0.0
    %498 = vmatprep.subr.mxu0 0.0
    %499 = vmatpush1.msra.mxu0 0.0
    %500 = vmatprep.subr.mxu0 0.0
    %501 = vmatpush1.msra.mxu0 0.0
    %502 = vmatprep.subr.mxu0 0.0
    %503 = vmatpush1.msra.mxu0 0.0
    %504 = vmatprep.subr.mxu0 0.0
    %505 = vmatpush1.msra.mxu0 0.0
    %506 = vmatprep.subr.mxu0 0.0
    %507 = vmatpush1.msra.mxu0 0.0
    %508 = vmatprep.subr.mxu0 0.0
    %509 = vmatpush1.msra.mxu0 0.0
    %510 = vmatprep.subr.mxu0 0.0
    %511 = vmatpush1.msra.mxu0 0.0
    %512 = vmatprep.subr.mxu0 0.0
    %513 = vmatpush1.msra.mxu0 0.0
    %514 = vmatprep.subr.mxu0 0.0
    %515 = vmatpush1.msra.mxu0 0.0
    %516 = vmatprep.subr.mxu0 0.0
    %517 = vmatpush1.msra.mxu0 %v491
    %518 = vmatprep.subr.mxu0 0.0
    %519 = vmatpush1.msra.mxu0 %v490
    %520 = vmatprep.subr.mxu0 0.0
    %521 = vmatpush1.msra.mxu0 %v489
    %522 = vmatprep.subr.mxu0 0.0
    %523 = vmatpush1.msra.mxu0 %v488
    %524 = vmatprep.subr.mxu0 0.0
    %525 = vmatpush1.msra.mxu0 %v487
    %526 = vmatprep.subr.mxu0 0.0
    %527 = vmatpush1.msra.mxu0 %v486
    %528 = vmatprep.subr.mxu0 0.0
    %529 = vmatpush2.msra.mxu0 0.0
    %530 = vmatprep.subr.mxu0 0.0
    %531 = vmatpush2.msra.mxu0 0.0
    %532 = vmatprep.subr.mxu0 0.0
    %533 = vmatpush2.msra.mxu0 0.0
    %534 = vmatprep.subr.mxu0 0.0
    %535 = vmatpush2.msra.mxu0 0.0
    %536 = vmatprep.subr.mxu0 0.0
    %537 = vmatpush2.msra.mxu0 0.0
    %538 = vmatprep.subr.mxu0 0.0
    %539 = vmatpush2.msra.mxu0 0.0
    %540 = vmatprep.subr.mxu0 0.0
    %541 = vmatpush2.msra.mxu0 0.0
    %542 = vmatprep.subr.mxu0 0.0
    %543 = vmatpush2.msra.mxu0 0.0
    %544 = vmatprep.subr.mxu0 0.0
    %545 = vmatpush2.msra.mxu0 0.0
    %546 = vmatprep.subr.mxu0 0.0
    %547 = vmatpush2.msra.mxu0 0.0
    %548 = vmatprep.subr.mxu0 0.0
    %549 = vmatpush2.msra.mxu0 0.0
    %550 = vmatprep.subr.mxu0 0.0
    %551 = vmatpush2.msra.mxu0 0.0
    %552 = vmatprep.subr.mxu0 0.0
    %553 = vmatpush2.msra.mxu0 0.0
    %554 = vmatprep.subr.mxu0 0.0
    %555 = vmatpush2.msra.mxu0 0.0
    %556 = vmatprep.subr.mxu0 0.0
    %557 = vmatpush2.msra.mxu0 0.0
    %558 = vmatprep.subr.mxu0 0.0
    %559 = vmatpush2.msra.mxu0 0.0
    %560 = vmatprep.mubr.f32.mxu0 0.0
    %561 = vmatmul.mubr.f32.gmra.mxu0 %v494
    %v562 = vpop.f32.mrf.mxu0
    %v563 = vadd.f32 0.0, %v562
    %v564 = vpop.f32.mrf.mxu0
    %565 = vdwg.mxu0
    %567 = vset.pattern.permute.xlu0 32
    %568 = vperm.xlu0 %567, %v563
    %v569 = vpop.permute.xlu0 %568
    %v571 = vrcp.pop %v569
    %v572 = vmul.f32 %v563, %v571
    %v573 = vld [vmem:[#allocation2 + $0xca] sm:$0x1]
    %v574 = vld [vmem:[#allocation2 + $0xcb] sm:$0x1]
    %vm575 = vcmask 259072
    %v576 = vsel %vm575, %v572, 0.0
    %577 = vadd.xlane.f32.xlu0 %v576
    %v578 = vpop.xlane.xlu0 %577
    %v579 = vrcp.pop 32.0
    %v580 = vmul.f32 %v578, %v579
    %v581 = vsub.f32 %v572, %v580
    %v582 = vmul.f32 %v581, %v581
    %v583 = vsel %vm575, %v582, 0.0
    %584 = vadd.xlane.f32.xlu0 %v583
    %v585 = vpop.xlane.xlu0 %584
    %v586 = vmul.f32 %v585, %v579
    %v587 = vadd.f32 %v586, 1e-05
    %v588 = vrsqrt.pop %v587
    %v589 = vmul.f32 %v581, %v588
    %v590 = vlaneseq
    %v591 = vshrl.u32 %v590, 7
    %v592 = vsub.s32 0, %v591
    %v593 = vrot.slane %v573, %v592
    %v594 = vmul.f32 %v589, %v593
    %v595 = vlaneseq
    %v596 = vshrl.u32 %v595, 7
    %v597 = vsub.s32 0, %v596
    %v598 = vrot.slane %v574, %v597
    %v599 = vadd.f32 %v594, %v598
    %600 = vset.pattern.permute.xlu0 0
    %601 = vperm.xlu0 %600, %v28
    %v602 = vpop.permute.xlu0 %601
    %vm603 = vcmp.eq.s32.totalorder %v472, %v602
    %604 = vset.pattern.permute.xlu0 1
    %605 = vperm.xlu0 %604, %v28
    %v606 = vpop.permute.xlu0 %605
    %vm607 = vcmp.eq.s32.totalorder %v472, %v606
    %vm608 = vmor %vm603, %vm607
    %v609 = vsel %vm608, 1, 0
    %v610 = vcvt.s32.f32 %v609
    %v611 = vld [vmem:[#allocation2 + $0xc5] sm:$0x1]
    %v612 = vlaneseq
    %v613 = vshrl.u32 %v612, 7
    %v614 = vsub.s32 0, %v613
    %v615 = vrot.slane %v611, %v614
    %v617 = vsel %vm150, %v610, 0
    %619 = vmatprep.subr.mxu0 0.0
    %620 = vmatpush1.msra.mxu0 0.0
    %621 = vmatprep.subr.mxu0 0.0
    %622 = vmatpush1.msra.mxu0 0.0
    %623 = vmatprep.subr.mxu0 0.0
    %624 = vmatpush1.msra.mxu0 0.0
    %625 = vmatprep.subr.mxu0 0.0
    %626 = vmatpush1.msra.mxu0 0.0
    %627 = vmatprep.subr.mxu0 0.0
    %628 = vmatpush1.msra.mxu0 0.0
    %629 = vmatprep.subr.mxu0 0.0
    %630 = vmatpush1.msra.mxu0 0.0
    %631 = vmatprep.subr.mxu0 0.0
    %632 = vmatpush1.msra.mxu0 0.0
    %633 = vmatprep.subr.mxu0 0.0
    %634 = vmatpush1.msra.mxu0 0.0
    %635 = vmatprep.subr.mxu0 0.0
    %636 = vmatpush1.msra.mxu0 0.0
    %637 = vmatprep.subr.mxu0 0.0
    %638 = vmatpush1.msra.mxu0 0.0
    %639 = vmatprep.subr.mxu0 0.0
    %640 = vmatpush1.msra.mxu0 0.0
    %641 = vmatprep.subr.mxu0 0.0
    %642 = vmatpush1.msra.mxu0 0.0
    %643 = vmatprep.subr.mxu0 0.0
    %644 = vmatpush1.msra.mxu0 %v59
    %645 = vmatprep.subr.mxu0 0.0
    %646 = vmatpush1.msra.mxu0 %v58
    %647 = vmatprep.subr.mxu0 0.0
    %648 = vmatpush1.msra.mxu0 %v57
    %649 = vmatprep.subr.mxu0 0.0
    %650 = vmatpush1.msra.mxu0 %v56
    %651 = vmatprep.subr.mxu0 0.0
    %652 = vmatpush2.msra.mxu0 0.0
    %653 = vmatprep.subr.mxu0 0.0
    %654 = vmatpush2.msra.mxu0 0.0
    %655 = vmatprep.subr.mxu0 0.0
    %656 = vmatpush2.msra.mxu0 0.0
    %657 = vmatprep.subr.mxu0 0.0
    %658 = vmatpush2.msra.mxu0 0.0
    %659 = vmatprep.subr.mxu0 0.0
    %660 = vmatpush2.msra.mxu0 0.0
    %661 = vmatprep.subr.mxu0 0.0
    %662 = vmatpush2.msra.mxu0 0.0
    %663 = vmatprep.subr.mxu0 0.0
    %664 = vmatpush2.msra.mxu0 0.0
    %665 = vmatprep.subr.mxu0 0.0
    %666 = vmatpush2.msra.mxu0 0.0
    %667 = vmatprep.subr.mxu0 0.0
    %668 = vmatpush2.msra.mxu0 0.0
    %669 = vmatprep.subr.mxu0 0.0
    %670 = vmatpush2.msra.mxu0 0.0
    %671 = vmatprep.subr.mxu0 0.0
    %672 = vmatpush2.msra.mxu0 0.0
    %673 = vmatprep.subr.mxu0 0.0
    %674 = vmatpush2.msra.mxu0 0.0
    %675 = vmatprep.subr.mxu0 0.0
    %676 = vmatpush2.msra.mxu0 0.0
    %677 = vmatprep.subr.mxu0 0.0
    %678 = vmatpush2.msra.mxu0 0.0
    %679 = vmatprep.subr.mxu0 0.0
    %680 = vmatpush2.msra.mxu0 0.0
    %681 = vmatprep.subr.mxu0 0.0
    %682 = vmatpush2.msra.mxu0 0.0
    %683 = vmatprep.mubr.f32.mxu0 0.0
    %684 = vmatmul.mubr.f32.gmra.mxu0 %v617
    %v685 = vpop.f32.mrf.mxu0
    %v686 = vadd.f32 %v615, %v685
    %v687 = vpop.f32.mrf.mxu0
    %688 = vdwg.mxu0
    %v689 = vld [vmem:[#allocation2 + $0xc6] sm:$0x1]
    %v690 = vld [vmem:[#allocation2 + $0xc7] sm:$0x1]
    %v691 = vsel %vm575, %v686, 0.0
    %692 = vadd.xlane.f32.xlu0 %v691
    %v693 = vpop.xlane.xlu0 %692
    %v694 = vmul.f32 %v693, %v579
    %v695 = vsub.f32 %v686, %v694
    %v696 = vmul.f32 %v695, %v695
    %v697 = vsel %vm575, %v696, 0.0
    %698 = vadd.xlane.f32.xlu0 %v697
    %v699 = vpop.xlane.xlu0 %698
    %v700 = vmul.f32 %v699, %v579
    %v701 = vadd.f32 %v700, 1e-05
    %v702 = vrsqrt.pop %v701
    %v703 = vmul.f32 %v695, %v702
    %v704 = vlaneseq
    %v705 = vshrl.u32 %v704, 7
    %v706 = vsub.s32 0, %v705
    %v707 = vrot.slane %v689, %v706
    %v708 = vmul.f32 %v703, %v707
    %v709 = vlaneseq
    %v710 = vshrl.u32 %v709, 7
    %v711 = vsub.s32 0, %v710
    %v712 = vrot.slane %v690, %v711
    %v713 = vadd.f32 %v708, %v712
    %v714 = vld [vmem:[#allocation2 + $0xc8] sm:$0x1]
    %v715 = vld [vmem:[#allocation2 + $0xc9] sm:$0x1]
    %717 = vrot.lane.b32.xlu0 %v686, 96
    %v718 = vpop.permute.xlu0 %717
    %v720 = vsel %vm575, %v718, 0.0
    %721 = vadd.xlane.f32.xlu0 %v720
    %v722 = vpop.xlane.xlu0 %721
    %v723 = vmul.f32 %v722, %v579
    %v724 = vsub.f32 %v686, %v723
    %v725 = vmul.f32 %v724, %v724
    %727 = vrot.lane.b32.xlu0 %v725, 96
    %v728 = vpop.permute.xlu0 %727
    %v730 = vsel %vm575, %v728, 0.0
    %731 = vadd.xlane.f32.xlu0 %v730
    %v732 = vpop.xlane.xlu0 %731
    %v733 = vmul.f32 %v732, %v579
    %v734 = vadd.f32 %v733, 1e-05
    %v735 = vrsqrt.pop %v734
    %v736 = vmul.f32 %v724, %v735
    %v737 = vlaneseq
    %v738 = vshrl.u32 %v737, 7
    %v739 = vsub.s32 0, %v738
    %v740 = vrot.slane %v714, %v739
    %742 = vrot.lane.b32.xlu0 %v740, 32
    %v743 = vpop.permute.xlu0 %742
    %v745 = vmul.f32 %v736, %v743
    %v746 = vlaneseq
    %v747 = vshrl.u32 %v746, 7
    %v748 = vsub.s32 0, %v747
    %v749 = vrot.slane %v715, %v748
    %751 = vrot.lane.b32.xlu0 %v749, 32
    %v752 = vpop.permute.xlu0 %751
    %v754 = vadd.f32 %v745, %v752
    %v756 = vrot.slane %v713, 2
    %v759 = vrot.slane %v754, 4
    %760 = vrot.lane.b32.xlu0 %v759, 96
    %v761 = vpop.permute.xlu0 %760
    %vm763 = vcmask 1045504
    %v764 = vsel %vm763, %v599, %v756
    %vm765 = vcmask 1043456
    %v766 = vsel %vm765, %v756, %v761
    %v767 = vld [vmem:[#allocation2 + $0xc3] sm:$0x1]
    %v768 = vlaneseq
    %v769 = vshrl.u32 %v768, 7
    %v770 = vsub.s32 0, %v769
    %v771 = vrot.slane %v767, %v770
    %v773 = vsel %vm150, %v764, 0
    %v776 = vsel %vm150, %v766, 0
    %v778 = vsel %vm150, %v761, 0
    %780 = vmatprep.subr.mxu0 0.0
    %781 = vmatpush1.msra.mxu0 0.0
    %782 = vmatprep.subr.mxu0 0.0
    %783 = vmatpush1.msra.mxu0 0.0
    %784 = vmatprep.subr.mxu0 0.0
    %785 = vmatpush1.msra.mxu0 0.0
    %786 = vmatprep.subr.mxu0 0.0
    %787 = vmatpush1.msra.mxu0 0.0
    %788 = vmatprep.subr.mxu0 0.0
    %789 = vmatpush1.msra.mxu0 0.0
    %790 = vmatprep.subr.mxu0 0.0
    %791 = vmatpush1.msra.mxu0 0.0
    %792 = vmatprep.subr.mxu0 0.0
    %793 = vmatpush1.msra.mxu0 0.0
    %794 = vmatprep.subr.mxu0 0.0
    %795 = vmatpush1.msra.mxu0 0.0
    %796 = vmatprep.subr.mxu0 0.0
    %797 = vmatpush1.msra.mxu0 0.0
    %798 = vmatprep.subr.mxu0 0.0
    %799 = vmatpush1.msra.mxu0 0.0
    %800 = vmatprep.subr.mxu0 0.0
    %801 = vmatpush1.msra.mxu0 0.0
    %802 = vmatprep.subr.mxu0 0.0
    %803 = vmatpush1.msra.mxu0 0.0
    %804 = vmatprep.subr.mxu0 0.0
    %805 = vmatpush1.msra.mxu0 %v55
    %806 = vmatprep.subr.mxu0 0.0
    %807 = vmatpush1.msra.mxu0 %v54
    %808 = vmatprep.subr.mxu0 0.0
    %809 = vmatpush1.msra.mxu0 %v53
    %810 = vmatprep.subr.mxu0 0.0
    %811 = vmatpush1.msra.mxu0 %v52
    %812 = vmatprep.subr.mxu0 0.0
    %813 = vmatpush2.msra.mxu0 0.0
    %814 = vmatprep.subr.mxu0 0.0
    %815 = vmatpush2.msra.mxu0 0.0
    %816 = vmatprep.subr.mxu0 0.0
    %817 = vmatpush2.msra.mxu0 0.0
    %818 = vmatprep.subr.mxu0 0.0
    %819 = vmatpush2.msra.mxu0 0.0
    %820 = vmatprep.subr.mxu0 0.0
    %821 = vmatpush2.msra.mxu0 0.0
    %822 = vmatprep.subr.mxu0 0.0
    %823 = vmatpush2.msra.mxu0 0.0
    %824 = vmatprep.subr.mxu0 0.0
    %825 = vmatpush2.msra.mxu0 0.0
    %826 = vmatprep.subr.mxu0 0.0
    %827 = vmatpush2.msra.mxu0 0.0
    %828 = vmatprep.subr.mxu0 0.0
    %829 = vmatpush2.msra.mxu0 0.0
    %830 = vmatprep.subr.mxu0 0.0
    %831 = vmatpush2.msra.mxu0 0.0
    %832 = vmatprep.subr.mxu0 0.0
    %833 = vmatpush2.msra.mxu0 0.0
    %834 = vmatprep.subr.mxu0 0.0
    %835 = vmatpush2.msra.mxu0 0.0
    %836 = vmatprep.subr.mxu0 0.0
    %837 = vmatpush2.msra.mxu0 0.0
    %838 = vmatprep.subr.mxu0 0.0
    %839 = vmatpush2.msra.mxu0 0.0
    %840 = vmatprep.subr.mxu0 0.0
    %841 = vmatpush2.msra.mxu0 0.0
    %842 = vmatprep.subr.mxu0 0.0
    %843 = vmatpush2.msra.mxu0 0.0
    %844 = vmatprep.mubr.f32.mxu0 0.0
    %845 = vmatmul.mubr.f32.gmra.mxu0 %v773
    %v846 = vpop.f32.mrf.mxu0
    %v847 = vadd.f32 %v771, %v846
    %v848 = vpop.f32.mrf.mxu0
    %849 = vmatprep.mubr.f32.mxu0 0.0
    %850 = vmatmul.mubr.f32.gmra.mxu0 %v776
    %v851 = vpop.f32.mrf.mxu0
    %v852 = vadd.f32 %v771, %v851
    %v853 = vpop.f32.mrf.mxu0
    %854 = vmatprep.mubr.f32.mxu0 0.0
    %855 = vmatmul.mubr.f32.gmra.mxu0 %v778
    %v856 = vpop.f32.mrf.mxu0
    %v857 = vadd.f32 %v771, %v856
    %v858 = vpop.f32.mrf.mxu0
    %859 = vdwg.mxu0
    %v860 = vtanh.pop %v847
    %v861 = vtanh.pop %v852
    %v862 = vtanh.pop %v857
    %v863 = vld [vmem:[#allocation2 + $0xc4] sm:$0x1]
    %v864 = vlaneseq
    %v865 = vshrl.u32 %v864, 7
    %v866 = vsub.s32 0, %v865
    %v867 = vrot.slane %v863, %v866
    %v868 = vmul.f32 %v860, %v867
    %v869 = vmul.f32 %v861, %v867
    %v870 = vmul.f32 %v862, %v867
    %v871 = vsel %vm150, %v868, 0.0
    %872 = vadd.xlane.f32.xlu0 %v871
    %v873 = vpop.xlane.xlu0 %872
    %v874 = vsel %vm150, %v869, 0.0
    %875 = vadd.xlane.f32.xlu0 %v874
    %v876 = vpop.xlane.xlu0 %875
    %vm877 = vcmask 254976
    %v878 = vsel %vm877, %v870, 0.0
    %879 = vadd.xlane.f32.xlu0 %v878
    %v880 = vpop.xlane.xlu0 %879
    %vm883 = vcmask 1041408
    %v884 = vrot.slane %v873, 6
    %v885 = vrot.slane %v876, 6
    %v886 = vsel %vm883, %v884, %v885
    %v888 = vmax.f32 %v873, %v886
    %v890 = vrot.slane %v876, 4
    %v891 = vrot.slane %v880, 4
    %v892 = vsel %vm765, %v890, %v891
    %v894 = vmax.f32 %v888, %v892
    %v895 = vsub.f32 %v873, %v894
    %v896 = vmul.f32 %v895, 1.442695
    %v897 = vpow.pop %v896
    %v899 = vrot.slane %v894, 2
    %v901 = vsub.f32 %v873, %v899
    %v902 = vsub.f32 %v876, %v899
    %v903 = vmul.f32 %v901, 1.442695
    %v904 = vpow.pop %v903
    %v905 = vmul.f32 %v902, 1.442695
    %v906 = vpow.pop %v905
    %v907 = vrot.slane %v894, 4
    %v909 = vsub.f32 %v876, %v907
    %v910 = vsub.f32 %v880, %v907
    %v911 = vmul.f32 %v909, 1.442695
    %v912 = vpow.pop %v911
    %v913 = vmul.f32 %v910, 1.442695
    %v914 = vpow.pop %v913
    %916 = vset.pattern.permute.xlu0 0
    %917 = vperm.xlu0 %916, %v897
    %v918 = vpop.permute.xlu0 %917
    %v920 = vmul.f32 %v918, %v599
    %922 = vset.pattern.permute.xlu0 0
    %923 = vperm.xlu0 %922, %v904
    %v924 = vpop.permute.xlu0 %923
    %927 = vset.pattern.permute.xlu0 0
    %928 = vperm.xlu0 %927, %v906
    %v929 = vpop.permute.xlu0 %928
    %v931 = vmul.f32 %v924, %v756
    %v932 = vmul.f32 %v929, %v756
    %v935 = vrot.slane %v931, 6
    %v936 = vrot.slane %v932, 6
    %v937 = vsel %vm883, %v935, %v936
    %v939 = vadd.f32 %v920, %v937
    %941 = vset.pattern.permute.xlu0 0
    %942 = vperm.xlu0 %941, %v912
    %v943 = vpop.permute.xlu0 %942
    %946 = vset.pattern.permute.xlu0 0
    %947 = vperm.xlu0 %946, %v914
    %v948 = vpop.permute.xlu0 %947
    %v950 = vmul.f32 %v943, %v761
    %v951 = vmul.f32 %v948, %v761
    %v954 = vrot.slane %v950, 4
    %v955 = vrot.slane %v951, 4
    %v956 = vsel %vm765, %v954, %v955
    %v958 = vadd.f32 %v939, %v956
    %v959 = vrot.slane %v904, 6
    %v960 = vrot.slane %v906, 6
    %v961 = vsel %vm883, %v959, %v960
    %v963 = vadd.f32 %v897, %v961
    %v964 = vrot.slane %v912, 4
    %v965 = vrot.slane %v914, 4
    %v966 = vsel %vm765, %v964, %v965
    %v968 = vadd.f32 %v963, %v966
    %970 = vset.pattern.permute.xlu0 0
    %971 = vperm.xlu0 %970, %v968
    %v972 = vpop.permute.xlu0 %971
    %v974 = vrcp.pop %v972
    %v975 = vmul.f32 %v958, %v974
    %v976 = vld [vmem:[#allocation2 + $0xcc] sm:$0x1]
    %v977 = vld [vmem:[#allocation2 + $0xcd] sm:$0x1]
    %v978 = vsel %vm575, %v975, 0.0
    %979 = vadd.xlane.f32.xlu0 %v978
    %v980 = vpop.xlane.xlu0 %979
    %v981 = vmul.f32 %v980, %v579
    %v982 = vsub.f32 %v975, %v981
    %v983 = vmul.f32 %v982, %v982
    %v984 = vsel %vm575, %v983, 0.0
    %985 = vadd.xlane.f32.xlu0 %v984
    %v986 = vpop.xlane.xlu0 %985
    %v987 = vmul.f32 %v986, %v579
    %v988 = vadd.f32 %v987, 1e-05
    %v989 = vrsqrt.pop %v988
    %v990 = vmul.f32 %v982, %v989
    %v991 = vlaneseq
    %v992 = vshrl.u32 %v991, 7
    %v993 = vsub.s32 0, %v992
    %v994 = vrot.slane %v976, %v993
    %v995 = vmul.f32 %v990, %v994
    %v996 = vlaneseq
    %v997 = vshrl.u32 %v996, 7
    %v998 = vsub.s32 0, %v997
    %v999 = vrot.slane %v977, %v998
    %v1000 = vadd.f32 %v995, %v999
    %v1001 = vld [vmem:[%s1 + $0x30] sm:$0xff]
    %v1002 = vld [vmem:[%s1 + $0x38] sm:$0xff]
    %v1003 = vld [vmem:[%s1 + $0x40] sm:$0xff]
    %v1004 = vld [vmem:[%s1 + $0x48] sm:$0xff]
    %v1005 = vld [vmem:[%s1 + $0x50] sm:$0xff]
    %v1006 = vld [vmem:[%s1 + $0x58] sm:$0xff]
    %v1007 = vld [vmem:[%s1 + $0x60] sm:$0xff]
    %v1008 = vld [vmem:[%s1 + $0x68] sm:$0xff]
    %v1009 = vld [vmem:[#allocation2 + $0xd0] sm:$0xff]
    %v1010 = vld [vmem:[#allocation2 + $0xd8] sm:$0xff]
    %v1011 = vld [vmem:[#allocation2 + $0xe0] sm:$0xff]
    %v1012 = vld [vmem:[#allocation2 + $0xe8] sm:$0xff]
    %v1013 = vld [vmem:[#allocation2 + $0xf0] sm:$0xff]
    %v1014 = vld [vmem:[#allocation2 + $0xf8] sm:$0xff]
    %v1015 = vld [vmem:[#allocation2 + $0x100] sm:$0xff]
    %v1016 = vld [vmem:[#allocation2 + $0x108] sm:$0xff]
    %v1017 = vld [vmem:[#allocation2 + $0x110] sm:$0xff]
    %v1018 = vld [vmem:[#allocation2 + $0x118] sm:$0xff]
    %v1019 = vld [vmem:[#allocation2 + $0x120] sm:$0xff]
    %v1020 = vld [vmem:[#allocation2 + $0x128] sm:$0xff]
    %v1021 = vld [vmem:[#allocation2 + $0x130] sm:$0xff]
    %v1022 = vld [vmem:[#allocation2 + $0x138] sm:$0xff]
    %v1023 = vld [vmem:[#allocation2 + $0x140] sm:$0xff]
    %v1024 = vld [vmem:[#allocation2 + $0x148] sm:$0xff]
    %v1025 = vld [vmem:[#allocation2 + $0x150] sm:$0xff]
    %v1026 = vld [vmem:[#allocation2 + $0x158] sm:$0xff]
    %v1027 = vld [vmem:[#allocation2 + $0x160] sm:$0xff]
    %v1028 = vld [vmem:[#allocation2 + $0x168] sm:$0xff]
    %v1029 = vld [vmem:[#allocation2 + $0x170] sm:$0xff]
    %v1030 = vld [vmem:[#allocation2 + $0x178] sm:$0xff]
    %v1031 = vld [vmem:[#allocation2 + $0x180] sm:$0xff]
    %v1032 = vld [vmem:[#allocation2 + $0x188] sm:$0xff]
    %v1033 = vrot.slane %v1001, 7
    %v1034 = vrot.slane %v1002, 7
    %v1035 = vrot.slane %v1003, 7
    %v1036 = vrot.slane %v1004, 7
    %v1037 = vrot.slane %v1005, 7
    %v1038 = vrot.slane %v1006, 7
    %v1039 = vrot.slane %v1007, 7
    %v1040 = vrot.slane %v1008, 7
    %v1041 = vsel %vm69, %v1039, %v1040
    %v1042 = vsel %vm69, %v1038, %v1039
    %v1043 = vsel %vm69, %v1037, %v1038
    %v1044 = vsel %vm69, %v1036, %v1037
    %v1045 = vsel %vm69, %v1035, %v1036
    %v1046 = vsel %vm69, %v1034, %v1035
    %v1047 = vsel %vm69, %v1033, %v1034
    %v1048 = vsel %vm69, %v1040, %v1033
    %v1049 = vsel %vm62, 0.0, %v1048
    %v1050 = vsel %vm62, 0.0, %v1047
    %v1051 = vsel %vm62, 0.0, %v1046
    %v1052 = vsel %vm62, 0.0, %v1045
    %v1053 = vsel %vm62, 0.0, %v1044
    %v1054 = vsel %vm62, 0.0, %v1043
    %v1055 = vsel %vm62, 0.0, %v1042
    %v1056 = vsel %vm62, 0.0, %v1041
    %v1057 = vrot.slane %v1001, 1
    %v1058 = vrot.slane %v1002, 1
    %v1059 = vrot.slane %v1003, 1
    %v1060 = vrot.slane %v1004, 1
    %v1061 = vrot.slane %v1005, 1
    %v1062 = vrot.slane %v1006, 1
    %v1063 = vrot.slane %v1007, 1
    %v1064 = vrot.slane %v1008, 1
    %v1065 = vsel %vm89, %v1063, %v1064
    %v1066 = vsel %vm89, %v1062, %v1063
    %v1067 = vsel %vm89, %v1061, %v1062
    %v1068 = vsel %vm89, %v1060, %v1061
    %v1069 = vsel %vm89, %v1059, %v1060
    %v1070 = vsel %vm89, %v1058, %v1059
    %v1071 = vsel %vm89, %v1057, %v1058
    %v1072 = vsel %vm89, %v1064, %v1057
    %v1073 = vsel %vm82, 0.0, %v1071
    %v1074 = vsel %vm82, 0.0, %v1070
    %v1075 = vsel %vm82, 0.0, %v1069
    %v1076 = vsel %vm82, 0.0, %v1068
    %v1077 = vsel %vm82, 0.0, %v1067
    %v1078 = vsel %vm82, 0.0, %v1066
    %v1079 = vsel %vm82, 0.0, %v1065
    %v1080 = vsel %vm82, 0.0, %v1072
    %1089 = vrot.lane.b32.xlu0 %v1001, 32
    %v1090 = vpop.permute.xlu0 %1089
    %1091 = vrot.lane.b32.xlu0 %v1002, 32
    %v1092 = vpop.permute.xlu0 %1091
    %1093 = vrot.lane.b32.xlu0 %v1003, 32
    %v1094 = vpop.permute.xlu0 %1093
    %1095 = vrot.lane.b32.xlu0 %v1004, 32
    %v1096 = vpop.permute.xlu0 %1095
    %1097 = vrot.lane.b32.xlu0 %v1005, 32
    %v1098 = vpop.permute.xlu0 %1097
    %1099 = vrot.lane.b32.xlu0 %v1006, 32
    %v1100 = vpop.permute.xlu0 %1099
    %1101 = vrot.lane.b32.xlu0 %v1007, 32
    %v1102 = vpop.permute.xlu0 %1101
    %1103 = vrot.lane.b32.xlu0 %v1008, 32
    %v1104 = vpop.permute.xlu0 %1103
    %1121 = vrot.lane.b32.xlu0 %v1073, 64
    %v1122 = vpop.permute.xlu0 %1121
    %1123 = vrot.lane.b32.xlu0 %v1074, 64
    %v1124 = vpop.permute.xlu0 %1123
    %1125 = vrot.lane.b32.xlu0 %v1075, 64
    %v1126 = vpop.permute.xlu0 %1125
    %1127 = vrot.lane.b32.xlu0 %v1076, 64
    %v1128 = vpop.permute.xlu0 %1127
    %1129 = vrot.lane.b32.xlu0 %v1077, 64
    %v1130 = vpop.permute.xlu0 %1129
    %1131 = vrot.lane.b32.xlu0 %v1078, 64
    %v1132 = vpop.permute.xlu0 %1131
    %1133 = vrot.lane.b32.xlu0 %v1079, 64
    %v1134 = vpop.permute.xlu0 %1133
    %1135 = vrot.lane.b32.xlu0 %v1080, 64
    %v1136 = vpop.permute.xlu0 %1135
    %v1145 = vsel %vm150, %v1049, %v1090
    %v1146 = vsel %vm150, %v1050, %v1092
    %v1147 = vsel %vm150, %v1051, %v1094
    %v1148 = vsel %vm150, %v1052, %v1096
    %v1149 = vsel %vm150, %v1053, %v1098
    %v1150 = vsel %vm150, %v1054, %v1100
    %v1151 = vsel %vm150, %v1055, %v1102
    %v1152 = vsel %vm150, %v1056, %v1104
    %v1153 = vsel %vm157, %v1145, %v1122
    %v1154 = vsel %vm157, %v1146, %v1124
    %v1155 = vsel %vm157, %v1147, %v1126
    %v1156 = vsel %vm157, %v1148, %v1128
    %v1157 = vsel %vm157, %v1149, %v1130
    %v1158 = vsel %vm157, %v1150, %v1132
    %v1159 = vsel %vm157, %v1151, %v1134
    %v1160 = vsel %vm157, %v1152, %v1136
    %v1161 = vld [vmem:[#allocation2 + $0x190] sm:$0x1]
    %v1162 = vlaneseq
    %v1163 = vshrl.u32 %v1162, 7
    %v1164 = vsub.s32 0, %v1163
    %v1165 = vrot.slane %v1161, %v1164
    %v1167 = vsel %vm169, %v1153, 0
    %v1170 = vsel %vm169, %v1154, 0
    %v1173 = vsel %vm169, %v1155, 0
    %v1176 = vsel %vm169, %v1156, 0
    %v1179 = vsel %vm169, %v1157, 0
    %v1182 = vsel %vm169, %v1158, 0
    %v1185 = vsel %vm169, %v1159, 0
    %v1188 = vsel %vm169, %v1160, 0
    %1190 = vmatprep.subr.mxu0 0.0
    %1191 = vmatpush1.msra.mxu0 0.0
    %1192 = vmatprep.subr.mxu0 0.0
    %1193 = vmatpush1.msra.mxu0 0.0
    %1194 = vmatprep.subr.mxu0 0.0
    %1195 = vmatpush1.msra.mxu0 0.0
    %1196 = vmatprep.subr.mxu0 0.0
    %1197 = vmatpush1.msra.mxu0 0.0
    %1198 = vmatprep.subr.mxu0 0.0
    %1199 = vmatpush1.msra.mxu0 %v1020
    %1200 = vmatprep.subr.mxu0 0.0
    %1201 = vmatpush1.msra.mxu0 %v1019
    %1202 = vmatprep.subr.mxu0 0.0
    %1203 = vmatpush1.msra.mxu0 %v1018
    %1204 = vmatprep.subr.mxu0 0.0
    %1205 = vmatpush1.msra.mxu0 %v1017
    %1206 = vmatprep.subr.mxu0 0.0
    %1207 = vmatpush1.msra.mxu0 %v1016
    %1208 = vmatprep.subr.mxu0 0.0
    %1209 = vmatpush1.msra.mxu0 %v1015
    %1210 = vmatprep.subr.mxu0 0.0
    %1211 = vmatpush1.msra.mxu0 %v1014
    %1212 = vmatprep.subr.mxu0 0.0
    %1213 = vmatpush1.msra.mxu0 %v1013
    %1214 = vmatprep.subr.mxu0 0.0
    %1215 = vmatpush1.msra.mxu0 %v1012
    %1216 = vmatprep.subr.mxu0 0.0
    %1217 = vmatpush1.msra.mxu0 %v1011
    %1218 = vmatprep.subr.mxu0 0.0
    %1219 = vmatpush1.msra.mxu0 %v1010
    %1220 = vmatprep.subr.mxu0 0.0
    %1221 = vmatpush1.msra.mxu0 %v1009
    %1222 = vmatprep.subr.mxu0 0.0
    %1223 = vmatpush2.msra.mxu0 0.0
    %1224 = vmatprep.subr.mxu0 0.0
    %1225 = vmatpush2.msra.mxu0 0.0
    %1226 = vmatprep.subr.mxu0 0.0
    %1227 = vmatpush2.msra.mxu0 0.0
    %1228 = vmatprep.subr.mxu0 0.0
    %1229 = vmatpush2.msra.mxu0 0.0
    %1230 = vmatprep.subr.mxu0 0.0
    %1231 = vmatpush2.msra.mxu0 0.0
    %1232 = vmatprep.subr.mxu0 0.0
    %1233 = vmatpush2.msra.mxu0 0.0
    %1234 = vmatprep.subr.mxu0 0.0
    %1235 = vmatpush2.msra.mxu0 0.0
    %1236 = vmatprep.subr.mxu0 0.0
    %1237 = vmatpush2.msra.mxu0 0.0
    %1238 = vmatprep.subr.mxu0 0.0
    %1239 = vmatpush2.msra.mxu0 0.0
    %1240 = vmatprep.subr.mxu0 0.0
    %1241 = vmatpush2.msra.mxu0 0.0
    %1242 = vmatprep.subr.mxu0 0.0
    %1243 = vmatpush2.msra.mxu0 0.0
    %1244 = vmatprep.subr.mxu0 0.0
    %1245 = vmatpush2.msra.mxu0 0.0
    %1246 = vmatprep.subr.mxu0 0.0
    %1247 = vmatpush2.msra.mxu0 0.0
    %1248 = vmatprep.subr.mxu0 0.0
    %1249 = vmatpush2.msra.mxu0 0.0
    %1250 = vmatprep.subr.mxu0 0.0
    %1251 = vmatpush2.msra.mxu0 0.0
    %1252 = vmatprep.subr.mxu0 0.0
    %1253 = vmatpush2.msra.mxu0 0.0
    %1254 = vmatprep.mubr.f32.mxu0 0.0
    %1255 = vmatmul.mubr.f32.gmra.mxu0 %v1167
    %v1256 = vpop.f32.mrf.mxu0
    %v1257 = vadd.f32 %v1165, %v1256
    %v1258 = vpop.f32.mrf.mxu0
    %1259 = vmatprep.mubr.f32.mxu0 0.0
    %1260 = vmatmul.mubr.f32.gmra.mxu0 %v1170
    %v1261 = vpop.f32.mrf.mxu0
    %v1262 = vadd.f32 %v1165, %v1261
    %v1263 = vpop.f32.mrf.mxu0
    %1264 = vmatprep.mubr.f32.mxu0 0.0
    %1265 = vmatmul.mubr.f32.gmra.mxu0 %v1173
    %v1266 = vpop.f32.mrf.mxu0
    %v1267 = vadd.f32 %v1165, %v1266
    %v1268 = vpop.f32.mrf.mxu0
    %1269 = vmatprep.mubr.f32.mxu0 0.0
    %1270 = vmatmul.mubr.f32.gmra.mxu0 %v1176
    %v1271 = vpop.f32.mrf.mxu0
    %v1272 = vadd.f32 %v1165, %v1271
    %v1273 = vpop.f32.mrf.mxu0
    %1274 = vmatprep.mubr.f32.mxu0 0.0
    %1275 = vmatmul.mubr.f32.gmra.mxu0 %v1179
    %v1276 = vpop.f32.mrf.mxu0
    %v1277 = vadd.f32 %v1165, %v1276
    %v1278 = vpop.f32.mrf.mxu0
    %1279 = vmatprep.mubr.f32.mxu0 0.0
    %1280 = vmatmul.mubr.f32.gmra.mxu0 %v1182
    %v1281 = vpop.f32.mrf.mxu0
    %v1282 = vadd.f32 %v1165, %v1281
    %v1283 = vpop.f32.mrf.mxu0
    %1284 = vmatprep.mubr.f32.mxu0 0.0
    %1285 = vmatmul.mubr.f32.gmra.mxu0 %v1185
    %v1286 = vpop.f32.mrf.mxu0
    %v1287 = vadd.f32 %v1165, %v1286
    %v1288 = vpop.f32.mrf.mxu0
    %1289 = vmatprep.mubr.f32.mxu0 0.0
    %1290 = vmatmul.mubr.f32.gmra.mxu0 %v1188
    %v1291 = vpop.f32.mrf.mxu0
    %v1292 = vadd.f32 %v1165, %v1291
    %v1293 = vpop.f32.mrf.mxu0
    %1294 = vdwg.mxu0
    %v1295 = vmax.f32 %v1257, 0.0
    %v1296 = vmax.f32 %v1262, 0.0
    %v1297 = vmax.f32 %v1267, 0.0
    %v1298 = vmax.f32 %v1272, 0.0
    %v1299 = vmax.f32 %v1277, 0.0
    %v1300 = vmax.f32 %v1282, 0.0
    %v1301 = vmax.f32 %v1287, 0.0
    %v1302 = vmax.f32 %v1292, 0.0
    %v1303 = vld [vmem:[#allocation2 + $0x191] sm:$0x1]
    %v1304 = vlaneseq
    %v1305 = vshrl.u32 %v1304, 7
    %v1306 = vsub.s32 0, %v1305
    %v1307 = vrot.slane %v1303, %v1306
    %v1309 = vsel %vm150, %v1295, 0
    %v1312 = vsel %vm150, %v1296, 0
    %v1315 = vsel %vm150, %v1297, 0
    %v1318 = vsel %vm150, %v1298, 0
    %v1321 = vsel %vm150, %v1299, 0
    %v1324 = vsel %vm150, %v1300, 0
    %v1327 = vsel %vm150, %v1301, 0
    %v1330 = vsel %vm150, %v1302, 0
    %1332 = vmatprep.subr.mxu0 0.0
    %1333 = vmatpush1.msra.mxu0 0.0
    %1334 = vmatprep.subr.mxu0 0.0
    %1335 = vmatpush1.msra.mxu0 0.0
    %1336 = vmatprep.subr.mxu0 0.0
    %1337 = vmatpush1.msra.mxu0 0.0
    %1338 = vmatprep.subr.mxu0 0.0
    %1339 = vmatpush1.msra.mxu0 0.0
    %1340 = vmatprep.subr.mxu0 0.0
    %1341 = vmatpush1.msra.mxu0 0.0
    %1342 = vmatprep.subr.mxu0 0.0
    %1343 = vmatpush1.msra.mxu0 0.0
    %1344 = vmatprep.subr.mxu0 0.0
    %1345 = vmatpush1.msra.mxu0 0.0
    %1346 = vmatprep.subr.mxu0 0.0
    %1347 = vmatpush1.msra.mxu0 0.0
    %1348 = vmatprep.subr.mxu0 0.0
    %1349 = vmatpush1.msra.mxu0 0.0
    %1350 = vmatprep.subr.mxu0 0.0
    %1351 = vmatpush1.msra.mxu0 0.0
    %1352 = vmatprep.subr.mxu0 0.0
    %1353 = vmatpush1.msra.mxu0 0.0
    %1354 = vmatprep.subr.mxu0 0.0
    %1355 = vmatpush1.msra.mxu0 0.0
    %1356 = vmatprep.subr.mxu0 0.0
    %1357 = vmatpush1.msra.mxu0 %v1024
    %1358 = vmatprep.subr.mxu0 0.0
    %1359 = vmatpush1.msra.mxu0 %v1023
    %1360 = vmatprep.subr.mxu0 0.0
    %1361 = vmatpush1.msra.mxu0 %v1022
    %1362 = vmatprep.subr.mxu0 0.0
    %1363 = vmatpush1.msra.mxu0 %v1021
    %1364 = vmatprep.subr.mxu0 0.0
    %1365 = vmatpush2.msra.mxu0 0.0
    %1366 = vmatprep.subr.mxu0 0.0
    %1367 = vmatpush2.msra.mxu0 0.0
    %1368 = vmatprep.subr.mxu0 0.0
    %1369 = vmatpush2.msra.mxu0 0.0
    %1370 = vmatprep.subr.mxu0 0.0
    %1371 = vmatpush2.msra.mxu0 0.0
    %1372 = vmatprep.subr.mxu0 0.0
    %1373 = vmatpush2.msra.mxu0 0.0
    %1374 = vmatprep.subr.mxu0 0.0
    %1375 = vmatpush2.msra.mxu0 0.0
    %1376 = vmatprep.subr.mxu0 0.0
    %1377 = vmatpush2.msra.mxu0 0.0
    %1378 = vmatprep.subr.mxu0 0.0
    %1379 = vmatpush2.msra.mxu0 0.0
    %1380 = vmatprep.subr.mxu0 0.0
    %1381 = vmatpush2.msra.mxu0 0.0
    %1382 = vmatprep.subr.mxu0 0.0
    %1383 = vmatpush2.msra.mxu0 0.0
    %1384 = vmatprep.subr.mxu0 0.0
    %1385 = vmatpush2.msra.mxu0 0.0
    %1386 = vmatprep.subr.mxu0 0.0
    %1387 = vmatpush2.msra.mxu0 0.0
    %1388 = vmatprep.subr.mxu0 0.0
    %1389 = vmatpush2.msra.mxu0 0.0
    %1390 = vmatprep.subr.mxu0 0.0
    %1391 = vmatpush2.msra.mxu0 0.0
    %1392 = vmatprep.subr.mxu0 0.0
    %1393 = vmatpush2.msra.mxu0 0.0
    %1394 = vmatprep.subr.mxu0 0.0
    %1395 = vmatpush2.msra.mxu0 0.0
    %1396 = vmatprep.mubr.f32.mxu0 0.0
    %1397 = vmatmul.mubr.f32.gmra.mxu0 %v1309
    %v1398 = vpop.f32.mrf.mxu0
    %v1399 = vadd.f32 %v1307, %v1398
    %v1400 = vpop.f32.mrf.mxu0
    %1401 = vmatprep.mubr.f32.mxu0 0.0
    %1402 = vmatmul.mubr.f32.gmra.mxu0 %v1312
    %v1403 = vpop.f32.mrf.mxu0
    %v1404 = vadd.f32 %v1307, %v1403
    %v1405 = vpop.f32.mrf.mxu0
    %1406 = vmatprep.mubr.f32.mxu0 0.0
    %1407 = vmatmul.mubr.f32.gmra.mxu0 %v1315
    %v1408 = vpop.f32.mrf.mxu0
    %v1409 = vadd.f32 %v1307, %v1408
    %v1410 = vpop.f32.mrf.mxu0
    %1411 = vmatprep.mubr.f32.mxu0 0.0
    %1412 = vmatmul.mubr.f32.gmra.mxu0 %v1318
    %v1413 = vpop.f32.mrf.mxu0
    %v1414 = vadd.f32 %v1307, %v1413
    %v1415 = vpop.f32.mrf.mxu0
    %1416 = vmatprep.mubr.f32.mxu0 0.0
    %1417 = vmatmul.mubr.f32.gmra.mxu0 %v1321
    %v1418 = vpop.f32.mrf.mxu0
    %v1419 = vadd.f32 %v1307, %v1418
    %v1420 = vpop.f32.mrf.mxu0
    %1421 = vmatprep.mubr.f32.mxu0 0.0
    %1422 = vmatmul.mubr.f32.gmra.mxu0 %v1324
    %v1423 = vpop.f32.mrf.mxu0
    %v1424 = vadd.f32 %v1307, %v1423
    %v1425 = vpop.f32.mrf.mxu0
    %1426 = vmatprep.mubr.f32.mxu0 0.0
    %1427 = vmatmul.mubr.f32.gmra.mxu0 %v1327
    %v1428 = vpop.f32.mrf.mxu0
    %v1429 = vadd.f32 %v1307, %v1428
    %v1430 = vpop.f32.mrf.mxu0
    %1431 = vmatprep.mubr.f32.mxu0 0.0
    %1432 = vmatmul.mubr.f32.gmra.mxu0 %v1330
    %v1433 = vpop.f32.mrf.mxu0
    %v1434 = vadd.f32 %v1307, %v1433
    %v1435 = vpop.f32.mrf.mxu0
    %1436 = vdwg.mxu0
    %v1437 = vtanh.pop %v1399
    %v1438 = vtanh.pop %v1404
    %v1439 = vtanh.pop %v1409
    %v1440 = vtanh.pop %v1414
    %v1441 = vtanh.pop %v1419
    %v1442 = vtanh.pop %v1424
    %v1443 = vtanh.pop %v1429
    %v1444 = vtanh.pop %v1434
    %v1445 = vld [vmem:[#allocation2 + $0x192] sm:$0x1]
    %v1446 = vlaneseq
    %v1447 = vshrl.u32 %v1446, 7
    %v1448 = vsub.s32 0, %v1447
    %v1449 = vrot.slane %v1445, %v1448
    %v1450 = vmul.f32 %v1437, %v1449
    %v1451 = vmul.f32 %v1438, %v1449
    %v1452 = vmul.f32 %v1439, %v1449
    %v1453 = vmul.f32 %v1440, %v1449
    %v1454 = vmul.f32 %v1441, %v1449
    %v1455 = vmul.f32 %v1442, %v1449
    %v1456 = vmul.f32 %v1443, %v1449
    %v1457 = vmul.f32 %v1444, %v1449
    %v1458 = vsel %vm150, %v1450, 0.0
    %1459 = vadd.xlane.f32.xlu0 %v1458
    %v1460 = vpop.xlane.xlu0 %1459
    %v1461 = vsel %vm150, %v1451, 0.0
    %1462 = vadd.xlane.f32.xlu0 %v1461
    %v1463 = vpop.xlane.xlu0 %1462
    %v1464 = vsel %vm150, %v1452, 0.0
    %1465 = vadd.xlane.f32.xlu0 %v1464
    %v1466 = vpop.xlane.xlu0 %1465
    %v1467 = vsel %vm150, %v1453, 0.0
    %1468 = vadd.xlane.f32.xlu0 %v1467
    %v1469 = vpop.xlane.xlu0 %1468
    %v1470 = vsel %vm150, %v1454, 0.0
    %1471 = vadd.xlane.f32.xlu0 %v1470
    %v1472 = vpop.xlane.xlu0 %1471
    %v1473 = vsel %vm150, %v1455, 0.0
    %1474 = vadd.xlane.f32.xlu0 %v1473
    %v1475 = vpop.xlane.xlu0 %1474
    %v1476 = vsel %vm150, %v1456, 0.0
    %1477 = vadd.xlane.f32.xlu0 %v1476
    %v1478 = vpop.xlane.xlu0 %1477
    %v1479 = vsel %vm150, %v1457, 0.0
    %1480 = vadd.xlane.f32.xlu0 %v1479
    %v1481 = vpop.xlane.xlu0 %1480
    %v1482 = vmax.f32 %v1460, %v1472
    %v1483 = vmax.f32 %v1463, %v1475
    %v1484 = vmax.f32 %v1466, %v1478
    %v1485 = vmax.f32 %v1469, %v1481
    %v1486 = vmax.f32 %v1482, %v1483
    %v1487 = vmax.f32 %v1484, %v1485
    %v1488 = vmax.f32 %v1486, %v1487
    %v1489 = vrot.slane %v1488, 4
    %v1490 = vmax.f32 %v1488, %v1489
    %v1491 = vrot.slane %v1490, 2
    %v1492 = vmax.f32 %v1490, %v1491
    %v1493 = vrot.slane %v1492, 1
    %v1494 = vmax.f32 %v1492, %v1493
    %v1495 = vsub.f32 %v1460, %v1494
    %v1496 = vsub.f32 %v1463, %v1494
    %v1497 = vsub.f32 %v1466, %v1494
    %v1498 = vsub.f32 %v1469, %v1494
    %v1499 = vsub.f32 %v1472, %v1494
    %v1500 = vsub.f32 %v1475, %v1494
    %v1501 = vsub.f32 %v1478, %v1494
    %v1502 = vsub.f32 %v1481, %v1494
    %v1503 = vmul.f32 %v1495, 1.442695
    %v1504 = vpow.pop %v1503
    %v1505 = vmul.f32 %v1496, 1.442695
    %v1506 = vpow.pop %v1505
    %v1507 = vmul.f32 %v1497, 1.442695
    %v1508 = vpow.pop %v1507
    %v1509 = vmul.f32 %v1498, 1.442695
    %v1510 = vpow.pop %v1509
    %v1511 = vmul.f32 %v1499, 1.442695
    %v1512 = vpow.pop %v1511
    %v1513 = vmul.f32 %v1500, 1.442695
    %v1514 = vpow.pop %v1513
    %v1515 = vmul.f32 %v1501, 1.442695
    %v1516 = vpow.pop %v1515
    %v1517 = vmul.f32 %v1502, 1.442695
    %v1518 = vpow.pop %v1517
    %v1519 = vmul.f32 %v1504, %v1295
    %v1520 = vmul.f32 %v1506, %v1296
    %v1521 = vmul.f32 %v1508, %v1297
    %v1522 = vmul.f32 %v1510, %v1298
    %v1523 = vmul.f32 %v1512, %v1299
    %v1524 = vmul.f32 %v1514, %v1300
    %v1525 = vmul.f32 %v1516, %v1301
    %v1526 = vmul.f32 %v1518, %v1302
    %v1527 = vsel %vm150, %v1519, %v1504
    %v1528 = vsel %vm150, %v1520, %v1506
    %v1529 = vsel %vm150, %v1521, %v1508
    %v1530 = vsel %vm150, %v1522, %v1510
    %v1531 = vsel %vm150, %v1523, %v1512
    %v1532 = vsel %vm150, %v1524, %v1514
    %v1533 = vsel %vm150, %v1525, %v1516
    %v1534 = vsel %vm150, %v1526, %v1518
    %v1535 = vsel %vm157, %v479, 0
    %1537 = vmatprep.subr.mxu0 0.0
    %1538 = vmatpush1.msra.mxu0 0.0
    %1539 = vmatprep.subr.mxu0 0.0
    %1540 = vmatpush1.msra.mxu0 0.0
    %1541 = vmatprep.subr.mxu0 0.0
    %1542 = vmatpush1.msra.mxu0 0.0
    %1543 = vmatprep.subr.mxu0 0.0
    %1544 = vmatpush1.msra.mxu0 0.0
    %1545 = vmatprep.subr.mxu0 0.0
    %1546 = vmatpush1.msra.mxu0 0.0
    %1547 = vmatprep.subr.mxu0 0.0
    %1548 = vmatpush1.msra.mxu0 0.0
    %1549 = vmatprep.subr.mxu0 0.0
    %1550 = vmatpush1.msra.mxu0 0.0
    %1551 = vmatprep.subr.mxu0 0.0
    %1552 = vmatpush1.msra.mxu0 0.0
    %1553 = vmatprep.subr.mxu0 0.0
    %1554 = vmatpush1.msra.mxu0 %v1534
    %1555 = vmatprep.subr.mxu0 0.0
    %1556 = vmatpush1.msra.mxu0 %v1533
    %1557 = vmatprep.subr.mxu0 0.0
    %1558 = vmatpush1.msra.mxu0 %v1532
    %1559 = vmatprep.subr.mxu0 0.0
    %1560 = vmatpush1.msra.mxu0 %v1531
    %1561 = vmatprep.subr.mxu0 0.0
    %1562 = vmatpush1.msra.mxu0 %v1530
    %1563 = vmatprep.subr.mxu0 0.0
    %1564 = vmatpush1.msra.mxu0 %v1529
    %1565 = vmatprep.subr.mxu0 0.0
    %1566 = vmatpush1.msra.mxu0 %v1528
    %1567 = vmatprep.subr.mxu0 0.0
    %1568 = vmatpush1.msra.mxu0 %v1527
    %1569 = vmatprep.subr.mxu0 0.0
    %1570 = vmatpush2.msra.mxu0 0.0
    %1571 = vmatprep.subr.mxu0 0.0
    %1572 = vmatpush2.msra.mxu0 0.0
    %1573 = vmatprep.subr.mxu0 0.0
    %1574 = vmatpush2.msra.mxu0 0.0
    %1575 = vmatprep.subr.mxu0 0.0
    %1576 = vmatpush2.msra.mxu0 0.0
    %1577 = vmatprep.subr.mxu0 0.0
    %1578 = vmatpush2.msra.mxu0 0.0
    %1579 = vmatprep.subr.mxu0 0.0
    %1580 = vmatpush2.msra.mxu0 0.0
    %1581 = vmatprep.subr.mxu0 0.0
    %1582 = vmatpush2.msra.mxu0 0.0
    %1583 = vmatprep.subr.mxu0 0.0
    %1584 = vmatpush2.msra.mxu0 0.0
    %1585 = vmatprep.subr.mxu0 0.0
    %1586 = vmatpush2.msra.mxu0 0.0
    %1587 = vmatprep.subr.mxu0 0.0
    %1588 = vmatpush2.msra.mxu0 0.0
    %1589 = vmatprep.subr.mxu0 0.0
    %1590 = vmatpush2.msra.mxu0 0.0
    %1591 = vmatprep.subr.mxu0 0.0
    %1592 = vmatpush2.msra.mxu0 0.0
    %1593 = vmatprep.subr.mxu0 0.0
    %1594 = vmatpush2.msra.mxu0 0.0
    %1595 = vmatprep.subr.mxu0 0.0
    %1596 = vmatpush2.msra.mxu0 0.0
    %1597 = vmatprep.subr.mxu0 0.0
    %1598 = vmatpush2.msra.mxu0 0.0
    %1599 = vmatprep.subr.mxu0 0.0
    %1600 = vmatpush2.msra.mxu0 0.0
    %1601 = vmatprep.mubr.f32.mxu0 0.0
    %1602 = vmatmul.mubr.f32.gmra.mxu0 %v1535
    %v1603 = vpop.f32.mrf.mxu0
    %v1604 = vadd.f32 0.0, %v1603
    %v1605 = vpop.f32.mrf.mxu0
    %1606 = vdwg.mxu0
    %1608 = vset.pattern.permute.xlu0 32
    %1609 = vperm.xlu0 %1608, %v1604
    %v1610 = vpop.permute.xlu0 %1609
    %v1612 = vrcp.pop %v1610
    %v1613 = vmul.f32 %v1604, %v1612
    %v1614 = vld [vmem:[#allocation2 + $0x19a] sm:$0x1]
    %v1615 = vld [vmem:[#allocation2 + $0x19b] sm:$0x1]
    %v1616 = vsel %vm150, %v1613, 0.0
    %1617 = vadd.xlane.f32.xlu0 %v1616
    %v1618 = vpop.xlane.xlu0 %1617
    %v1619 = vmul.f32 %v1618, %v579
    %v1620 = vsub.f32 %v1613, %v1619
    %v1621 = vmul.f32 %v1620, %v1620
    %v1622 = vsel %vm150, %v1621, 0.0
    %1623 = vadd.xlane.f32.xlu0 %v1622
    %v1624 = vpop.xlane.xlu0 %1623
    %v1625 = vmul.f32 %v1624, %v579
    %v1626 = vadd.f32 %v1625, 1e-05
    %v1627 = vrsqrt.pop %v1626
    %v1628 = vmul.f32 %v1620, %v1627
    %v1629 = vlaneseq
    %v1630 = vshrl.u32 %v1629, 7
    %v1631 = vsub.s32 0, %v1630
    %v1632 = vrot.slane %v1614, %v1631
    %v1633 = vmul.f32 %v1628, %v1632
    %v1634 = vlaneseq
    %v1635 = vshrl.u32 %v1634, 7
    %v1636 = vsub.s32 0, %v1635
    %v1637 = vrot.slane %v1615, %v1636
    %v1638 = vadd.f32 %v1633, %v1637
    %1639 = vset.pattern.permute.xlu0 0
    %1640 = vperm.xlu0 %1639, %v29
    %v1641 = vpop.permute.xlu0 %1640
    %vm1642 = vcmp.eq.s32.totalorder %v472, %v1641
    %1643 = vset.pattern.permute.xlu0 1
    %1644 = vperm.xlu0 %1643, %v29
    %v1645 = vpop.permute.xlu0 %1644
    %vm1646 = vcmp.eq.s32.totalorder %v472, %v1645
    %vm1647 = vmor %vm1642, %vm1646
    %v1648 = vsel %vm1647, 1, 0
    %v1649 = vcvt.s32.f32 %v1648
    %v1650 = vld [vmem:[#allocation2 + $0x195] sm:$0x1]
    %v1651 = vlaneseq
    %v1652 = vshrl.u32 %v1651, 7
    %v1653 = vsub.s32 0, %v1652
    %v1654 = vrot.slane %v1650, %v1653
    %v1656 = vrot.slane %v610, 6
    %v1657 = vrot.slane %v1649, 6
    %v1658 = vsel %vm883, %v1656, %v1657
    %v1659 = vsel %vm150, %v1658, 0
    %1661 = vmatprep.subr.mxu0 0.0
    %1662 = vmatpush1.msra.mxu0 0.0
    %1663 = vmatprep.subr.mxu0 0.0
    %1664 = vmatpush1.msra.mxu0 0.0
    %1665 = vmatprep.subr.mxu0 0.0
    %1666 = vmatpush1.msra.mxu0 0.0
    %1667 = vmatprep.subr.mxu0 0.0
    %1668 = vmatpush1.msra.mxu0 0.0
    %1669 = vmatprep.subr.mxu0 0.0
    %1670 = vmatpush1.msra.mxu0 0.0
    %1671 = vmatprep.subr.mxu0 0.0
    %1672 = vmatpush1.msra.mxu0 0.0
    %1673 = vmatprep.subr.mxu0 0.0
    %1674 = vmatpush1.msra.mxu0 0.0
    %1675 = vmatprep.subr.mxu0 0.0
    %1676 = vmatpush1.msra.mxu0 0.0
    %1677 = vmatprep.subr.mxu0 0.0
    %1678 = vmatpush1.msra.mxu0 0.0
    %1679 = vmatprep.subr.mxu0 0.0
    %1680 = vmatpush1.msra.mxu0 0.0
    %1681 = vmatprep.subr.mxu0 0.0
    %1682 = vmatpush1.msra.mxu0 0.0
    %1683 = vmatprep.subr.mxu0 0.0
    %1684 = vmatpush1.msra.mxu0 0.0
    %1685 = vmatprep.subr.mxu0 0.0
    %1686 = vmatpush1.msra.mxu0 %v1032
    %1687 = vmatprep.subr.mxu0 0.0
    %1688 = vmatpush1.msra.mxu0 %v1031
    %1689 = vmatprep.subr.mxu0 0.0
    %1690 = vmatpush1.msra.mxu0 %v1030
    %1691 = vmatprep.subr.mxu0 0.0
    %1692 = vmatpush1.msra.mxu0 %v1029
    %1693 = vmatprep.subr.mxu0 0.0
    %1694 = vmatpush2.msra.mxu0 0.0
    %1695 = vmatprep.subr.mxu0 0.0
    %1696 = vmatpush2.msra.mxu0 0.0
    %1697 = vmatprep.subr.mxu0 0.0
    %1698 = vmatpush2.msra.mxu0 0.0
    %1699 = vmatprep.subr.mxu0 0.0
    %1700 = vmatpush2.msra.mxu0 0.0
    %1701 = vmatprep.subr.mxu0 0.0
    %1702 = vmatpush2.msra.mxu0 0.0
    %1703 = vmatprep.subr.mxu0 0.0
    %1704 = vmatpush2.msra.mxu0 0.0
    %1705 = vmatprep.subr.mxu0 0.0
    %1706 = vmatpush2.msra.mxu0 0.0
    %1707 = vmatprep.subr.mxu0 0.0
    %1708 = vmatpush2.msra.mxu0 0.0
    %1709 = vmatprep.subr.mxu0 0.0
    %1710 = vmatpush2.msra.mxu0 0.0
    %1711 = vmatprep.subr.mxu0 0.0
    %1712 = vmatpush2.msra.mxu0 0.0
    %1713 = vmatprep.subr.mxu0 0.0
    %1714 = vmatpush2.msra.mxu0 0.0
    %1715 = vmatprep.subr.mxu0 0.0
    %1716 = vmatpush2.msra.mxu0 0.0
    %1717 = vmatprep.subr.mxu0 0.0
    %1718 = vmatpush2.msra.mxu0 0.0
    %1719 = vmatprep.subr.mxu0 0.0
    %1720 = vmatpush2.msra.mxu0 0.0
    %1721 = vmatprep.subr.mxu0 0.0
    %1722 = vmatpush2.msra.mxu0 0.0
    %1723 = vmatprep.subr.mxu0 0.0
    %1724 = vmatpush2.msra.mxu0 0.0
    %1725 = vmatprep.mubr.f32.mxu0 0.0
    %1726 = vmatmul.mubr.f32.gmra.mxu0 %v1659
    %v1727 = vpop.f32.mrf.mxu0
    %v1728 = vadd.f32 %v1654, %v1727
    %v1729 = vpop.f32.mrf.mxu0
    %1730 = vdwg.mxu0
    %v1731 = vld [vmem:[#allocation2 + $0x196] sm:$0x1]
    %v1732 = vld [vmem:[#allocation2 + $0x197] sm:$0x1]
    %v1733 = vsel %vm150, %v1728, 0.0
    %1734 = vadd.xlane.f32.xlu0 %v1733
    %v1735 = vpop.xlane.xlu0 %1734
    %v1736 = vmul.f32 %v1735, %v579
    %v1737 = vsub.f32 %v1728, %v1736
    %v1738 = vmul.f32 %v1737, %v1737
    %v1739 = vsel %vm150, %v1738, 0.0
    %1740 = vadd.xlane.f32.xlu0 %v1739
    %v1741 = vpop.xlane.xlu0 %1740
    %v1742 = vmul.f32 %v1741, %v579
    %v1743 = vadd.f32 %v1742, 1e-05
    %v1744 = vrsqrt.pop %v1743
    %v1745 = vmul.f32 %v1737, %v1744
    %v1746 = vlaneseq
    %v1747 = vshrl.u32 %v1746, 7
    %v1748 = vsub.s32 0, %v1747
    %v1749 = vrot.slane %v1731, %v1748
    %v1750 = vmul.f32 %v1745, %v1749
    %v1751 = vlaneseq
    %v1752 = vshrl.u32 %v1751, 7
    %v1753 = vsub.s32 0, %v1752
    %v1754 = vrot.slane %v1732, %v1753
    %v1755 = vadd.f32 %v1750, %v1754
    %v1756 = vld [vmem:[#allocation2 + $0x198] sm:$0x1]
    %v1757 = vld [vmem:[#allocation2 + $0x199] sm:$0x1]
    %1759 = vrot.lane.b32.xlu0 %v1728, 96
    %v1760 = vpop.permute.xlu0 %1759
    %v1762 = vsel %vm150, %v1760, 0.0
    %1763 = vadd.xlane.f32.xlu0 %v1762
    %v1764 = vpop.xlane.xlu0 %1763
    %v1765 = vmul.f32 %v1764, %v579
    %v1766 = vsub.f32 %v1728, %v1765
    %v1767 = vmul.f32 %v1766, %v1766
    %1769 = vrot.lane.b32.xlu0 %v1767, 96
    %v1770 = vpop.permute.xlu0 %1769
    %v1772 = vsel %vm150, %v1770, 0.0
    %1773 = vadd.xlane.f32.xlu0 %v1772
    %v1774 = vpop.xlane.xlu0 %1773
    %v1775 = vmul.f32 %v1774, %v579
    %v1776 = vadd.f32 %v1775, 1e-05
    %v1777 = vrsqrt.pop %v1776
    %v1778 = vmul.f32 %v1766, %v1777
    %v1779 = vlaneseq
    %v1780 = vshrl.u32 %v1779, 7
    %v1781 = vsub.s32 0, %v1780
    %v1782 = vrot.slane %v1756, %v1781
    %1784 = vrot.lane.b32.xlu0 %v1782, 32
    %v1785 = vpop.permute.xlu0 %1784
    %v1787 = vmul.f32 %v1778, %v1785
    %v1788 = vlaneseq
    %v1789 = vshrl.u32 %v1788, 7
    %v1790 = vsub.s32 0, %v1789
    %v1791 = vrot.slane %v1757, %v1790
    %1793 = vrot.lane.b32.xlu0 %v1791, 32
    %v1794 = vpop.permute.xlu0 %1793
    %v1796 = vadd.f32 %v1787, %v1794
    %1798 = vrot.lane.b32.xlu0 %v1796, 96
    %v1799 = vpop.permute.xlu0 %1798
    %v1800 = vld [vmem:[#allocation2 + $0x193] sm:$0x1]
    %v1801 = vlaneseq
    %v1802 = vshrl.u32 %v1801, 7
    %v1803 = vsub.s32 0, %v1802
    %v1804 = vrot.slane %v1800, %v1803
    %v1806 = vsel %vm150, %v1638, 0
    %v1809 = vsel %vm150, %v1755, 0
    %v1811 = vsel %vm150, %v1799, 0
    %1813 = vmatprep.subr.mxu0 0.0
    %1814 = vmatpush1.msra.mxu0 0.0
    %1815 = vmatprep.subr.mxu0 0.0
    %1816 = vmatpush1.msra.mxu0 0.0
    %1817 = vmatprep.subr.mxu0 0.0
    %1818 = vmatpush1.msra.mxu0 0.0
    %1819 = vmatprep.subr.mxu0 0.0
    %1820 = vmatpush1.msra.mxu0 0.0
    %1821 = vmatprep.subr.mxu0 0.0
    %1822 = vmatpush1.msra.mxu0 0.0
    %1823 = vmatprep.subr.mxu0 0.0
    %1824 = vmatpush1.msra.mxu0 0.0
    %1825 = vmatprep.subr.mxu0 0.0
    %1826 = vmatpush1.msra.mxu0 0.0
    %1827 = vmatprep.subr.mxu0 0.0
    %1828 = vmatpush1.msra.mxu0 0.0
    %1829 = vmatprep.subr.mxu0 0.0
    %1830 = vmatpush1.msra.mxu0 0.0
    %1831 = vmatprep.subr.mxu0 0.0
    %1832 = vmatpush1.msra.mxu0 0.0
    %1833 = vmatprep.subr.mxu0 0.0
    %1834 = vmatpush1.msra.mxu0 0.0
    %1835 = vmatprep.subr.mxu0 0.0
    %1836 = vmatpush1.msra.mxu0 0.0
    %1837 = vmatprep.subr.mxu0 0.0
    %1838 = vmatpush1.msra.mxu0 %v1028
    %1839 = vmatprep.subr.mxu0 0.0
    %1840 = vmatpush1.msra.mxu0 %v1027
    %1841 = vmatprep.subr.mxu0 0.0
    %1842 = vmatpush1.msra.mxu0 %v1026
    %1843 = vmatprep.subr.mxu0 0.0
    %1844 = vmatpush1.msra.mxu0 %v1025
    %1845 = vmatprep.subr.mxu0 0.0
    %1846 = vmatpush2.msra.mxu0 0.0
    %1847 = vmatprep.subr.mxu0 0.0
    %1848 = vmatpush2.msra.mxu0 0.0
    %1849 = vmatprep.subr.mxu0 0.0
    %1850 = vmatpush2.msra.mxu0 0.0
    %1851 = vmatprep.subr.mxu0 0.0
    %1852 = vmatpush2.msra.mxu0 0.0
    %1853 = vmatprep.subr.mxu0 0.0
    %1854 = vmatpush2.msra.mxu0 0.0
    %1855 = vmatprep.subr.mxu0 0.0
    %1856 = vmatpush2.msra.mxu0 0.0
    %1857 = vmatprep.subr.mxu0 0.0
    %1858 = vmatpush2.msra.mxu0 0.0
    %1859 = vmatprep.subr.mxu0 0.0
    %1860 = vmatpush2.msra.mxu0 0.0
    %1861 = vmatprep.subr.mxu0 0.0
    %1862 = vmatpush2.msra.mxu0 0.0
    %1863 = vmatprep.subr.mxu0 0.0
    %1864 = vmatpush2.msra.mxu0 0.0
    %1865 = vmatprep.subr.mxu0 0.0
    %1866 = vmatpush2.msra.mxu0 0.0
    %1867 = vmatprep.subr.mxu0 0.0
    %1868 = vmatpush2.msra.mxu0 0.0
    %1869 = vmatprep.subr.mxu0 0.0
    %1870 = vmatpush2.msra.mxu0 0.0
    %1871 = vmatprep.subr.mxu0 0.0
    %1872 = vmatpush2.msra.mxu0 0.0
    %1873 = vmatprep.subr.mxu0 0.0
    %1874 = vmatpush2.msra.mxu0 0.0
    %1875 = vmatprep.subr.mxu0 0.0
    %1876 = vmatpush2.msra.mxu0 0.0
    %1877 = vmatprep.mubr.f32.mxu0 0.0
    %1878 = vmatmul.mubr.f32.gmra.mxu0 %v1806
    %v1879 = vpop.f32.mrf.mxu0
    %v1880 = vadd.f32 %v1804, %v1879
    %v1881 = vpop.f32.mrf.mxu0
    %1882 = vmatprep.mubr.f32.mxu0 0.0
    %1883 = vmatmul.mubr.f32.gmra.mxu0 %v1809
    %v1884 = vpop.f32.mrf.mxu0
    %v1885 = vadd.f32 %v1804, %v1884
    %v1886 = vpop.f32.mrf.mxu0
    %1887 = vmatprep.mubr.f32.mxu0 0.0
    %1888 = vmatmul.mubr.f32.gmra.mxu0 %v1811
    %v1889 = vpop.f32.mrf.mxu0
    %v1890 = vadd.f32 %v1804, %v1889
    %v1891 = vpop.f32.mrf.mxu0
    %1892 = vdwg.mxu0
    %v1893 = vtanh.pop %v1880
    %v1894 = vtanh.pop %v1885
    %v1895 = vtanh.pop %v1890
    %v1896 = vld [vmem:[#allocation2 + $0x194] sm:$0x1]
    %v1897 = vlaneseq
    %v1898 = vshrl.u32 %v1897, 7
    %v1899 = vsub.s32 0, %v1898
    %v1900 = vrot.slane %v1896, %v1899
    %v1901 = vmul.f32 %v1893, %v1900
    %v1902 = vmul.f32 %v1894, %v1900
    %v1903 = vmul.f32 %v1895, %v1900
    %v1904 = vsel %vm150, %v1901, 0.0
    %1905 = vadd.xlane.f32.xlu0 %v1904
    %v1906 = vpop.xlane.xlu0 %1905
    %v1907 = vsel %vm150, %v1902, 0.0
    %1908 = vadd.xlane.f32.xlu0 %v1907
    %v1909 = vpop.xlane.xlu0 %1908
    %v1910 = vsel %vm150, %v1903, 0.0
    %1911 = vadd.xlane.f32.xlu0 %v1910
    %v1912 = vpop.xlane.xlu0 %1911
    %v1913 = vmax.f32 %v1906, %v1909
    %v1914 = vmax.f32 %v1913, %v1912
    %v1915 = vsub.f32 %v1906, %v1914
    %v1916 = vmul.f32 %v1915, 1.442695
    %v1917 = vpow.pop %v1916
    %v1918 = vsub.f32 %v1909, %v1914
    %v1919 = vmul.f32 %v1918, 1.442695
    %v1920 = vpow.pop %v1919
    %v1921 = vsub.f32 %v1912, %v1914
    %v1922 = vmul.f32 %v1921, 1.442695
    %v1923 = vpow.pop %v1922
    %v1924 = vmul.f32 %v1917, %v1638
    %v1925 = vmul.f32 %v1920, %v1755
    %v1926 = vadd.f32 %v1924, %v1925
    %v1927 = vmul.f32 %v1923, %v1796
    %1929 = vrot.lane.b32.xlu0 %v1927, 96
    %v1930 = vpop.permute.xlu0 %1929
    %v1932 = vadd.f32 %v1926, %v1930
    %v1933 = vadd.f32 %v1917, %v1920
    %v1934 = vadd.f32 %v1933, %v1923
    %v1935 = vrcp.pop %v1934
    %v1936 = vmul.f32 %v1932, %v1935
    %v1937 = vld [vmem:[#allocation2 + $0x19c] sm:$0x1]
    %v1938 = vld [vmem:[#allocation2 + $0x19d] sm:$0x1]
    %v1939 = vsel %vm150, %v1936, 0.0
    %1940 = vadd.xlane.f32.xlu0 %v1939
    %v1941 = vpop.xlane.xlu0 %1940
    %v1942 = vmul.f32 %v1941, %v579
    %v1943 = vsub.f32 %v1936, %v1942
    %v1944 = vmul.f32 %v1943, %v1943
    %v1945 = vsel %vm150, %v1944, 0.0
    %1946 = vadd.xlane.f32.xlu0 %v1945
    %v1947 = vpop.xlane.xlu0 %1946
    %v1948 = vmul.f32 %v1947, %v579
    %v1949 = vadd.f32 %v1948, 1e-05
    %v1950 = vrsqrt.pop %v1949
    %v1951 = vmul.f32 %v1943, %v1950
    %v1952 = vlaneseq
    %v1953 = vshrl.u32 %v1952, 7
    %v1954 = vsub.s32 0, %v1953
    %v1955 = vrot.slane %v1937, %v1954
    %v1956 = vmul.f32 %v1951, %v1955
    %v1957 = vlaneseq
    %v1958 = vshrl.u32 %v1957, 7
    %v1959 = vsub.s32 0, %v1958
    %v1960 = vrot.slane %v1938, %v1959
    %v1961 = vadd.f32 %v1956, %v1960
    %v1962 = vld [vmem:[#allocation2 + $0x1a0] sm:$0xff]
    %v1963 = vld [vmem:[#allocation2 + $0x1a8] sm:$0xff]
    %v1964 = vld [vmem:[#allocation2 + $0x1b0] sm:$0xff]
    %v1965 = vld [vmem:[#allocation2 + $0x1b8] sm:$0xff]
    %v1966 = vld [vmem:[#allocation2 + $0x1c0] sm:$0x1]
    %v1967 = vlaneseq
    %v1968 = vshrl.u32 %v1967, 7
    %v1969 = vsub.s32 0, %v1968
    %v1970 = vrot.slane %v1966, %v1969
    %v1972 = vsel %vm150, %v1961, 0
    %1974 = vmatprep.subr.mxu0 0.0
    %1975 = vmatpush1.msra.mxu0 0.0
    %1976 = vmatprep.subr.mxu0 0.0
    %1977 = vmatpush1.msra.mxu0 0.0
    %1978 = vmatprep.subr.mxu0 0.0
    %1979 = vmatpush1.msra.mxu0 0.0
    %1980 = vmatprep.subr.mxu0 0.0
    %1981 = vmatpush1.msra.mxu0 0.0
    %1982 = vmatprep.subr.mxu0 0.0
    %1983 = vmatpush1.msra.mxu0 0.0
    %1984 = vmatprep.subr.mxu0 0.0
    %1985 = vmatpush1.msra.mxu0 0.0
    %1986 = vmatprep.subr.mxu0 0.0
    %1987 = vmatpush1.msra.mxu0 0.0
    %1988 = vmatprep.subr.mxu0 0.0
    %1989 = vmatpush1.msra.mxu0 0.0
    %1990 = vmatprep.subr.mxu0 0.0
    %1991 = vmatpush1.msra.mxu0 0.0
    %1992 = vmatprep.subr.mxu0 0.0
    %1993 = vmatpush1.msra.mxu0 0.0
    %1994 = vmatprep.subr.mxu0 0.0
    %1995 = vmatpush1.msra.mxu0 0.0
    %1996 = vmatprep.subr.mxu0 0.0
    %1997 = vmatpush1.msra.mxu0 0.0
    %1998 = vmatprep.subr.mxu0 0.0
    %1999 = vmatpush1.msra.mxu0 %v1965
    %2000 = vmatprep.subr.mxu0 0.0
    %2001 = vmatpush1.msra.mxu0 %v1964
    %2002 = vmatprep.subr.mxu0 0.0
    %2003 = vmatpush1.msra.mxu0 %v1963
    %2004 = vmatprep.subr.mxu0 0.0
    %2005 = vmatpush1.msra.mxu0 %v1962
    %2006 = vmatprep.subr.mxu0 0.0
    %2007 = vmatpush2.msra.mxu0 0.0
    %2008 = vmatprep.subr.mxu0 0.0
    %2009 = vmatpush2.msra.mxu0 0.0
    %2010 = vmatprep.subr.mxu0 0.0
    %2011 = vmatpush2.msra.mxu0 0.0
    %2012 = vmatprep.subr.mxu0 0.0
    %2013 = vmatpush2.msra.mxu0 0.0
    %2014 = vmatprep.subr.mxu0 0.0
    %2015 = vmatpush2.msra.mxu0 0.0
    %2016 = vmatprep.subr.mxu0 0.0
    %2017 = vmatpush2.msra.mxu0 0.0
    %2018 = vmatprep.subr.mxu0 0.0
    %2019 = vmatpush2.msra.mxu0 0.0
    %2020 = vmatprep.subr.mxu0 0.0
    %2021 = vmatpush2.msra.mxu0 0.0
    %2022 = vmatprep.subr.mxu0 0.0
    %2023 = vmatpush2.msra.mxu0 0.0
    %2024 = vmatprep.subr.mxu0 0.0
    %2025 = vmatpush2.msra.mxu0 0.0
    %2026 = vmatprep.subr.mxu0 0.0
    %2027 = vmatpush2.msra.mxu0 0.0
    %2028 = vmatprep.subr.mxu0 0.0
    %2029 = vmatpush2.msra.mxu0 0.0
    %2030 = vmatprep.subr.mxu0 0.0
    %2031 = vmatpush2.msra.mxu0 0.0
    %2032 = vmatprep.subr.mxu0 0.0
    %2033 = vmatpush2.msra.mxu0 0.0
    %2034 = vmatprep.subr.mxu0 0.0
    %2035 = vmatpush2.msra.mxu0 0.0
    %2036 = vmatprep.subr.mxu0 0.0
    %2037 = vmatpush2.msra.mxu0 0.0
    %2038 = vmatprep.mubr.f32.mxu0 0.0
    %2039 = vmatmul.mubr.f32.gmra.mxu0 %v1972
    %v2040 = vpop.f32.mrf.mxu0
    %v2041 = vadd.f32 %v1970, %v2040
    %v2042 = vpop.f32.mrf.mxu0
    %2043 = vdwg.mxu0
    %v2044 = vtanh.pop %v2041
    %v2045 = vld [vmem:[#allocation2 + $0x1c1] sm:$0x1]
    %v2046 = vlaneseq
    %v2047 = vshrl.u32 %v2046, 7
    %v2048 = vsub.s32 0, %v2047
    %v2049 = vrot.slane %v2045, %v2048
    %v2050 = vmul.f32 %v2044, %v2049
    %v2051 = vsel %vm150, %v2050, 0.0
    %2052 = vadd.xlane.f32.xlu0 %v2051
    %v2053 = vpop.xlane.xlu0 %2052
    %v2054 = vrot.slane %v2053, 4
    %v2055 = vmax.f32 %v2053, %v2054
    %v2056 = vrot.slane %v2055, 2
    %v2057 = vmax.f32 %v2055, %v2056
    %v2058 = vrot.slane %v2057, 1
    %v2059 = vmax.f32 %v2057, %v2058
    %v2060 = vsub.f32 %v2053, %v2059
    %v2061 = vmul.f32 %v2060, 1.442695
    %v2062 = vpow.pop %v2061
    %v2063 = vmul.u32 %v61, 4
    %v2064 = vsub.s32 %v472, %v2063
    %vm2065 = vcmp.ge.s32.totalorder %v2064, 0
    %vm2066 = vcmp.lt.s32.totalorder %v2064, 4
    %vm2067 = vmand %vm2065, %vm2066
    %v2068 = vsel %vm2067, 1, 0
    %v2069 = vcvt.s32.f32 %v2068
    %v2070 = vmul.f32 %v2062, %v1961
    %v2071 = vsel %vm150, %v2070, %v2062
    %vm2072 = vcmask 64512
    %v2074 = vsel %vm2072, %v2069, 0
    %2076 = vmatprep.subr.mxu0 0.0
    %2077 = vmatpush1.msra.mxu0 0.0
    %2078 = vmatprep.subr.mxu0 0.0
    %2079 = vmatpush1.msra.mxu0 0.0
    %2080 = vmatprep.subr.mxu0 0.0
    %2081 = vmatpush1.msra.mxu0 0.0
    %2082 = vmatprep.subr.mxu0 0.0
    %2083 = vmatpush1.msra.mxu0 0.0
    %2084 = vmatprep.subr.mxu0 0.0
    %2085 = vmatpush1.msra.mxu0 0.0
    %2086 = vmatprep.subr.mxu0 0.0
    %2087 = vmatpush1.msra.mxu0 0.0
    %2088 = vmatprep.subr.mxu0 0.0
    %2089 = vmatpush1.msra.mxu0 0.0
    %2090 = vmatprep.subr.mxu0 0.0
    %2091 = vmatpush1.msra.mxu0 0.0
    %2092 = vmatprep.subr.mxu0 0.0
    %2093 = vmatpush1.msra.mxu0 0.0
    %2094 = vmatprep.subr.mxu0 0.0
    %2095 = vmatpush1.msra.mxu0 0.0
    %2096 = vmatprep.subr.mxu0 0.0
    %2097 = vmatpush1.msra.mxu0 0.0
    %2098 = vmatprep.subr.mxu0 0.0
    %2099 = vmatpush1.msra.mxu0 0.0
    %2100 = vmatprep.subr.mxu0 0.0
    %2101 = vmatpush1.msra.mxu0 0.0
    %2102 = vmatprep.subr.mxu0 0.0
    %2103 = vmatpush1.msra.mxu0 0.0
    %2104 = vmatprep.subr.mxu0 0.0
    %2105 = vmatpush1.msra.mxu0 0.0
    %2106 = vmatprep.subr.mxu0 0.0
    %2107 = vmatpush1.msra.mxu0 %v2071
    %2108 = vmatprep.subr.mxu0 0.0
    %2109 = vmatpush2.msra.mxu0 0.0
    %2110 = vmatprep.subr.mxu0 0.0
    %2111 = vmatpush2.msra.mxu0 0.0
    %2112 = vmatprep.subr.mxu0 0.0
    %2113 = vmatpush2.msra.mxu0 0.0
    %2114 = vmatprep.subr.mxu0 0.0
    %2115 = vmatpush2.msra.mxu0 0.0
    %2116 = vmatprep.subr.mxu0 0.0
    %2117 = vmatpush2.msra.mxu0 0.0
    %2118 = vmatprep.subr.mxu0 0.0
    %2119 = vmatpush2.msra.mxu0 0.0
    %2120 = vmatprep.subr.mxu0 0.0
    %2121 = vmatpush2.msra.mxu0 0.0
    %2122 = vmatprep.subr.mxu0 0.0
    %2123 = vmatpush2.msra.mxu0 0.0
    %2124 = vmatprep.subr.mxu0 0.0
    %2125 = vmatpush2.msra.mxu0 0.0
    %2126 = vmatprep.subr.mxu0 0.0
    %2127 = vmatpush2.msra.mxu0 0.0
    %2128 = vmatprep.subr.mxu0 0.0
    %2129 = vmatpush2.msra.mxu0 0.0
    %2130 = vmatprep.subr.mxu0 0.0
    %2131 = vmatpush2.msra.mxu0 0.0
    %2132 = vmatprep.subr.mxu0 0.0
    %2133 = vmatpush2.msra.mxu0 0.0
    %2134 = vmatprep.subr.mxu0 0.0
    %2135 = vmatpush2.msra.mxu0 0.0
    %2136 = vmatprep.subr.mxu0 0.0
    %2137 = vmatpush2.msra.mxu0 0.0
    %2138 = vmatprep.subr.mxu0 0.0
    %2139 = vmatpush2.msra.mxu0 0.0
    %2140 = vmatprep.mubr.f32.mxu0 0.0
    %2141 = vmatmul.mubr.f32.gmra.mxu0 %v2074
    %v2142 = vpop.f32.mrf.mxu0
    %v2143 = vadd.f32 0.0, %v2142
    %v2144 = vpop.f32.mrf.mxu0
    %2145 = vdwg.mxu0
    %2147 = vset.pattern.permute.xlu0 32
    %2148 = vperm.xlu0 %2147, %v2143
    %v2149 = vpop.permute.xlu0 %2148
    %v2151 = vrcp.pop %v2149
    %v2152 = vmul.f32 %v2143, %v2151
    %v2153 = vld [vmem:[#allocation2 + $0x1c2] sm:$0x1]
    %v2154 = vld [vmem:[#allocation2 + $0x1c3] sm:$0x1]
    %v2155 = vsel %vm877, %v2152, 0.0
    %2156 = vadd.xlane.f32.xlu0 %v2155
    %v2157 = vpop.xlane.xlu0 %2156
    %v2158 = vmul.f32 %v2157, %v579
    %v2159 = vsub.f32 %v2152, %v2158
    %v2160 = vmul.f32 %v2159, %v2159
    %v2161 = vsel %vm877, %v2160, 0.0
    %2162 = vadd.xlane.f32.xlu0 %v2161
    %v2163 = vpop.xlane.xlu0 %2162
    %v2164 = vmul.f32 %v2163, %v579
    %v2165 = vadd.f32 %v2164, 1e-05
    %v2166 = vrsqrt.pop %v2165
    %v2167 = vmul.f32 %v2159, %v2166
    %v2168 = vlaneseq
    %v2169 = vshrl.u32 %v2168, 7
    %v2170 = vsub.s32 0, %v2169
    %v2171 = vrot.slane %v2153, %v2170
    %v2172 = vmul.f32 %v2167, %v2171
    %v2173 = vlaneseq
    %v2174 = vshrl.u32 %v2173, 7
    %v2175 = vsub.s32 0, %v2174
    %v2176 = vrot.slane %v2154, %v2175
    %v2177 = vadd.f32 %v2172, %v2176
    %v2178 = vmul.u32 %v472, 3
    %v2179 = vsub.s32 %v61, %v2178
    %vm2180 = vcmp.ge.s32.totalorder %v2179, 0
    %vm2181 = vcmp.lt.s32.totalorder %v2179, 3
    %vm2182 = vmand %vm2180, %vm2181
    %v2183 = vsel %vm2182, 1, 0
    %v2184 = vcvt.s32.f32 %v2183
    %vm2185 = vcmask 15360
    %v2187 = vsel %vm2185, %v2184, 0
    %v2190 = vsel %vm883, %v2177, 0
    %2192 = vmatprep.subr.mxu0 0.0
    %2193 = vmatpush1.msra.mxu0 0.0
    %2194 = vmatprep.subr.mxu0 0.0
    %2195 = vmatpush1.msra.mxu0 0.0
    %2196 = vmatprep.subr.mxu0 0.0
    %2197 = vmatpush1.msra.mxu0 0.0
    %2198 = vmatprep.subr.mxu0 0.0
    %2199 = vmatpush1.msra.mxu0 0.0
    %2200 = vmatprep.subr.mxu0 0.0
    %2201 = vmatpush1.msra.mxu0 0.0
    %2202 = vmatprep.subr.mxu0 0.0
    %2203 = vmatpush1.msra.mxu0 0.0
    %2204 = vmatprep.subr.mxu0 0.0
    %2205 = vmatpush1.msra.mxu0 0.0
    %2206 = vmatprep.subr.mxu0 0.0
    %2207 = vmatpush1.msra.mxu0 0.0
    %2208 = vmatprep.subr.mxu0 0.0
    %2209 = vmatpush1.msra.mxu0 0.0
    %2210 = vmatprep.subr.mxu0 0.0
    %2211 = vmatpush1.msra.mxu0 0.0
    %2212 = vmatprep.subr.mxu0 0.0
    %2213 = vmatpush1.msra.mxu0 0.0
    %2214 = vmatprep.subr.mxu0 0.0
    %2215 = vmatpush1.msra.mxu0 0.0
    %2216 = vmatprep.subr.mxu0 0.0
    %2217 = vmatpush1.msra.mxu0 0.0
    %2218 = vmatprep.subr.mxu0 0.0
    %2219 = vmatpush1.msra.mxu0 0.0
    %2220 = vmatprep.subr.mxu0 0.0
    %2221 = vmatpush1.msra.mxu0 0.0
    %2222 = vmatprep.subr.mxu0 0.0
    %2223 = vmatpush1.msra.mxu0 %v2190
    %2224 = vmatprep.subr.mxu0 0.0
    %2225 = vmatpush2.msra.mxu0 0.0
    %2226 = vmatprep.subr.mxu0 0.0
    %2227 = vmatpush2.msra.mxu0 0.0
    %2228 = vmatprep.subr.mxu0 0.0
    %2229 = vmatpush2.msra.mxu0 0.0
    %2230 = vmatprep.subr.mxu0 0.0
    %2231 = vmatpush2.msra.mxu0 0.0
    %2232 = vmatprep.subr.mxu0 0.0
    %2233 = vmatpush2.msra.mxu0 0.0
    %2234 = vmatprep.subr.mxu0 0.0
    %2235 = vmatpush2.msra.mxu0 0.0
    %2236 = vmatprep.subr.mxu0 0.0
    %2237 = vmatpush2.msra.mxu0 0.0
    %2238 = vmatprep.subr.mxu0 0.0
    %2239 = vmatpush2.msra.mxu0 0.0
    %2240 = vmatprep.subr.mxu0 0.0
    %2241 = vmatpush2.msra.mxu0 0.0
    %2242 = vmatprep.subr.mxu0 0.0
    %2243 = vmatpush2.msra.mxu0 0.0
    %2244 = vmatprep.subr.mxu0 0.0
    %2245 = vmatpush2.msra.mxu0 0.0
    %2246 = vmatprep.subr.mxu0 0.0
    %2247 = vmatpush2.msra.mxu0 0.0
    %2248 = vmatprep.subr.mxu0 0.0
    %2249 = vmatpush2.msra.mxu0 0.0
    %2250 = vmatprep.subr.mxu0 0.0
    %2251 = vmatpush2.msra.mxu0 0.0
    %2252 = vmatprep.subr.mxu0 0.0
    %2253 = vmatpush2.msra.mxu0 0.0
    %2254 = vmatprep.subr.mxu0 0.0
    %2255 = vmatpush2.msra.mxu0 0.0
    %2256 = vmatprep.mubr.f32.mxu0 0.0
    %2257 = vmatmul.mubr.f32.gmra.mxu0 %v2187
    %v2258 = vpop.f32.mrf.mxu0
    %v2259 = vadd.f32 0.0, %v2258
    %v2260 = vpop.f32.mrf.mxu0
    %2261 = vdwg.mxu0
    %v2262 = vmul.f32 %v1000, %v2259
    %v2263 = vsel %vm575, %v2262, 0.0
    %2264 = vadd.xlane.f32.xlu0 %v2263
    %v2265 = vpop.xlane.xlu0 %2264
    %v2266 = vsel %vm150, %v1000, %v2265
    %v2267 = vsel %vm157, %v2266, 0.0
    %v2268 = vsel %vm150, %v1961, 0.0
    %v2270 = vrot.slane %v2268, 2
    %v2272 = vsel %vm763, %v2267, %v2270
    %v2273 = vsel %vm763, %v2270, 0.0
    %2274 = vst [vmem:[%s3] sm:$0xff] %v2272
    %2275 = vst [vmem:[%s3 + $0x8] sm:$0xff] %v2273
    // Predicated region
    $region18: #{naml_forward.1} parent=1 // pred_check
      _
    $region19: #{naml_forward.1} parent=1 // pred_check_branch
      %2277 = sbr.rel (0) target = $region21
    $region20: #{naml_forward.1} parent=1 // pred_region
      _
    $region21: #{naml_forward.1} parent=1 // pred_fallthru
      _
    // Predicated region
    $region22: #{naml_forward.1} parent=1 // pred_check
      _
    $region23: #{naml_forward.1} parent=1 // pred_check_branch
      %2279 = sbr.rel (0) target = $region25
    $region24: #{naml_forward.1} parent=1 // pred_region
      _
    $region25: #{naml_forward.1} parent=1 // pred_fallthru
      _
    %2280 = vsyncpa [#allocation3], 1

</llo_original>
